<compile_context>
chip_gen: v6e
topology: v6e:2x2x1
jax: 0.10.0
libtpu: 0.0.40
codegen_flags: <defaults>
</compile_context>

<pallas_src>
import functools
import math

import jax
import jax.numpy as jnp
from jax.experimental import pallas as pl
from jax.experimental.pallas import tpu as pltpu

PAD = 0
NEG_BIG = -1e30   # finite mask value: avoids (inf - inf) = NaN for all-pad rows


# ---------------------------------------------------------------------------
# In-kernel helpers
# ---------------------------------------------------------------------------
def _layernorm(h, g, b, eps=1e-5):
    mu = jnp.mean(h, axis=-1, keepdims=True)
    var = jnp.mean((h - mu) ** 2, axis=-1, keepdims=True)
    return (h - mu) * jax.lax.rsqrt(var + eps) * g + b


def _shift_rows(x, s, pos_in_seq, seq_len):
    """z[t] = x[t + s] if t+s lies inside t's own length-seq_len sequence, else 0.

    Rows of consecutive sequences are packed along axis 0; the shift uses
    pltpu.roll (XLU slot, overlaps MXU) plus a per-row position mask, so the
    conv halo never leaks across sequence boundaries and no pad/concat copies
    are materialized.
    """
    if s == 0:
        return x
    n = x.shape[0]
    z = pltpu.roll(x, (-s) % n, 0)
    if s > 0:
        return jnp.where(pos_in_seq < float(seq_len - s), z, 0.0)
    return jnp.where(pos_in_seq >= float(-s), z, 0.0)


# ---------------------------------------------------------------------------
# Fused encoder-stack kernel (grid axis = layer, activation carried in VMEM)
# ---------------------------------------------------------------------------
def encoder_stack_kernel(x_ref, keyseg_ref, qryseg_ref, posin_ref, npad_ref,
                         wqkv_ref, bqkv_ref, wfc_ref, bfc_ref, g1_ref, be1_ref,
                         w1_ref, bc1_ref, w2_ref, bc2_ref, g2_ref, be2_ref,
                         out_ref, enc_sc, *, n_head, d_k, conv_k, seq_len):
    layer = pl.program_id(0)

    @pl.when(layer == 0)
    def _():
        enc_sc[...] = x_ref[...]                         # load initial activation

    x = enc_sc[...]                                      # (BL, D) f32, layer carry
    bl, d_model = x.shape
    npad = npad_ref[...]                                 # (BL, 1) 1.0 where valid
    posin = posin_ref[...]                               # (BL, 1) position in sequence
    inv_temp = 1.0 / math.sqrt(d_k)

    # ---- Multi-head self-attention (fused QKV projection, bf16 MXU, f32 acc) ----
    qkv = jnp.dot(x.astype(jnp.bfloat16), wqkv_ref[0],
                  preferred_element_type=jnp.float32) + bqkv_ref[0]   # (BL, 3D)

    # Block-diagonal (per-sequence) + key-pad additive bias, hoisted out of the
    # head loop. key_seg is -1 on padded keys, so they never match any query row.
    bias = jnp.where(qryseg_ref[...] == keyseg_ref[...], 0.0, NEG_BIG)  # (BL, BL)

    attn_out = bfc_ref[0]                                # (1, D), broadcasts over rows
    for h in range(n_head):
        qh = (qkv[:, h * d_k:(h + 1) * d_k] * inv_temp).astype(jnp.bfloat16)
        kh = qkv[:, d_model + h * d_k:d_model + (h + 1) * d_k].astype(jnp.bfloat16)
        vh = qkv[:, 2 * d_model + h * d_k:2 * d_model + (h + 1) * d_k].astype(jnp.bfloat16)
        scores = jnp.dot(qh, kh.T, preferred_element_type=jnp.float32) + bias
        scores = scores - jnp.max(scores, axis=-1, keepdims=True)       # stable softmax
        e = jnp.exp(scores)
        attn = e * pl.reciprocal(jnp.sum(e, axis=-1, keepdims=True), approx=True)
        o_h = jnp.dot(attn.astype(jnp.bfloat16), vh,
                      preferred_element_type=jnp.float32)               # (BL, d_k)
        # Accumulate this head's slice of the output projection (no lane concat).
        attn_out = attn_out + jnp.dot(
            o_h.astype(jnp.bfloat16), wfc_ref[0, h * d_k:(h + 1) * d_k, :],
            preferred_element_type=jnp.float32)

    h1 = _layernorm(attn_out + x, g1_ref[0], be1_ref[0])
    y = h1 * npad                                        # masked FFN input / residual

    # ---- Position-wise FFN: Conv1d(k=conv_k, pad=k//2) -> ReLU -> Conv1d(k=1) ----
    half = conv_k // 2
    acc = bc1_ref[0]                                     # (1, F) bias, broadcasts
    for tap in range(conv_k):
        shifted = _shift_rows(y, tap - half, posin, seq_len).astype(jnp.bfloat16)
        acc = acc + jnp.dot(shifted, w1_ref[0, tap],
                            preferred_element_type=jnp.float32)
    acc = jnp.maximum(acc, 0.0)
    ff = jnp.dot(acc.astype(jnp.bfloat16), w2_ref[0],
                 preferred_element_type=jnp.float32) + bc2_ref[0]
    out = _layernorm(ff + y, g2_ref[0], be2_ref[0]) * npad

    enc_sc[...] = out                                    # carry to next layer

    @pl.when(layer == pl.num_programs(0) - 1)
    def _():
        out_ref[...] = enc_sc[...]                       # single HBM writeback


# ---------------------------------------------------------------------------
# pallas_call wrapper
# ---------------------------------------------------------------------------
_WEIGHT_NAMES = ("wqkv", "bqkv", "wfc", "bfc", "g1", "be1",
                 "w1", "bc1", "w2", "bc2", "g2", "be2")


def encoder_layer_stack(enc_flat, key_seg, qry_seg, pos_in, npad_col, stacked,
                        *, n_head, seq_len):
    bl, d_model = enc_flat.shape
    n_layers = stacked["wqkv"].shape[0]
    d_k = d_model // n_head
    conv_k = stacked["w1"].shape[1]
    f_hid = stacked["w1"].shape[3]
    weights = [stacked[name] for name in _WEIGHT_NAMES]

    def per_layer_spec(arr):                 # weights: walk the layer axis
        nd = arr.ndim
        return pl.BlockSpec((1,) + arr.shape[1:],
                            lambda l, _nd=nd: (l,) + (0,) * (_nd - 1))

    def invariant_spec(arr):                 # activations/masks: fetched once
        nd = arr.ndim
        return pl.BlockSpec(arr.shape, lambda l, _nd=nd: (0,) * _nd)

    flops = n_layers * 2 * bl * (3 * d_model * d_model      # fused QKV projection
                                 + 2 * bl * d_model          # scores + attn@v (all heads)
                                 + d_model * d_model         # output projection
                                 + conv_k * d_model * f_hid  # conv1 (k taps)
                                 + f_hid * d_model)          # conv2 (k=1)
    bytes_accessed = (2 * bl * d_model * 4
                      + bl * (3 * bl + 3) * 4
                      + sum(int(w.size) * w.dtype.itemsize for w in weights))

    kernel = functools.partial(encoder_stack_kernel, n_head=n_head, d_k=d_k,
                               conv_k=conv_k, seq_len=seq_len)
    return pl.pallas_call(
        kernel,
        out_shape=jax.ShapeDtypeStruct((bl, d_model), jnp.float32),
        grid=(n_layers,),
        in_specs=[invariant_spec(enc_flat), invariant_spec(key_seg),
                  invariant_spec(qry_seg), invariant_spec(pos_in),
                  invariant_spec(npad_col)]
                 + [per_layer_spec(w) for w in weights],
        out_specs=pl.BlockSpec((bl, d_model), lambda l: (0, 0)),
        scratch_shapes=[pltpu.VMEM((bl, d_model), jnp.float32)],
        compiler_params=pltpu.CompilerParams(dimension_semantics=("arbitrary",)),
        cost_estimate=pl.CostEstimate(flops=flops,
                                      transcendentals=n_layers * n_head * bl * bl,
                                      bytes_accessed=bytes_accessed),
    )(enc_flat, key_seg, qry_seg, pos_in, npad_col, *weights)


# ---------------------------------------------------------------------------
# Encoder forward (single jit; one pallas_call for the whole layer stack)
# ---------------------------------------------------------------------------
@functools.partial(jax.jit, static_argnames=("n_head",))
def encoder_forward(src_seq, src_pos, params, *, n_head):
    B, L = src_seq.shape
    word_tab = params["word_emb"]
    pos_tab = params["pos_emb"]
    D = word_tab.shape[1]

    # src_word_emb(src_seq) + position_enc(src_pos): pure gather -> XLA (DMA-only).
    # PAD rows of both tables are zero (nn.Embedding padding_idx semantics).
    enc_flat = (jnp.take(word_tab, src_seq.reshape(-1), axis=0)
                + jnp.take(pos_tab, src_pos.reshape(-1), axis=0))        # (B*L, D)

    non_pad_mask = (src_seq != PAD).astype(jnp.float32)[:, :, None]      # (B, L, 1)
    npad_col = non_pad_mask.reshape(B * L, 1)
    batch_ids = jnp.broadcast_to(jnp.arange(B, dtype=jnp.float32)[:, None], (B, L))
    qry_seg = batch_ids.reshape(B * L, 1)                                # query's sequence id
    key_seg = jnp.where(src_seq == PAD, -1.0, batch_ids).reshape(1, B * L)  # -1 on PAD keys
    pos_in = jnp.broadcast_to(jnp.arange(L, dtype=jnp.float32)[None, :],
                              (B, L)).reshape(B * L, 1)                  # position in sequence

    # Stack per-layer weights along a leading layer axis for the fused kernel.
    stacked = {k: jnp.stack([lp[k] for lp in params["layers"]])
               for k in params["layers"][0]}

    out_flat = encoder_layer_stack(enc_flat, key_seg, qry_seg, pos_in, npad_col,
                                   stacked, n_head=n_head, seq_len=L)
    return out_flat.reshape(B, L, D), non_pad_mask


# ---------------------------------------------------------------------------
# Parameter construction (matmul weights stored bf16; biases / LN params f32)
# ---------------------------------------------------------------------------
def init_fft_block_params(key, d_model, n_head, d_hid, conv_k=9):
    d_k = d_model // n_head
    ks = jax.random.split(key, 6)
    s = 1.0 / math.sqrt(d_model)
    return {
        "wqkv": (s * jax.random.normal(ks[0], (d_model, 3 * n_head * d_k),
                                       jnp.float32)).astype(jnp.bfloat16),
        "bqkv": jnp.zeros((1, 3 * n_head * d_k), jnp.float32),
        "wfc": (s * jax.random.normal(ks[1], (n_head * d_k, d_model),
                                      jnp.float32)).astype(jnp.bfloat16),
        "bfc": jnp.zeros((1, d_model), jnp.float32),
        "g1": jnp.ones((1, d_model), jnp.float32),
        "be1": jnp.zeros((1, d_model), jnp.float32),
        "w1": (s * jax.random.normal(ks[2], (conv_k, d_model, d_hid),
                                     jnp.float32)).astype(jnp.bfloat16),
        "bc1": 0.02 * jax.random.normal(ks[3], (1, d_hid), jnp.float32),
        "w2": ((1.0 / math.sqrt(d_hid))
               * jax.random.normal(ks[4], (d_hid, d_model),
                                   jnp.float32)).astype(jnp.bfloat16),
        "bc2": 0.02 * jax.random.normal(ks[5], (1, d_model), jnp.float32),
        "g2": jnp.ones((1, d_model), jnp.float32),
        "be2": jnp.zeros((1, d_model), jnp.float32),
    }


# ---------------------------------------------------------------------------
if __name__ == "__main__":
    # Scaled-down FastSpeechConfig: encoder_dim 256->128, filter 1024->256,
    # layers 4->2, heads 2, conv kernel (9,1)/padding (4,0), vocab 300->48.
    B, L = 2, 16
    D_MODEL, N_HEAD, D_HID, N_LAYER = 128, 2, 256, 2
    VOCAB, N_POS, CONV_K = 48, 32, 9

    key = jax.random.PRNGKey(0)
    k_w, k_p, k_tok, *k_layers = jax.random.split(key, 3 + N_LAYER)

    word_emb = 0.1 * jax.random.normal(k_w, (VOCAB, D_MODEL), jnp.float32)
    pos_emb = 0.1 * jax.random.normal(k_p, (N_POS, D_MODEL), jnp.float32)
    # nn.Embedding(padding_idx=PAD): PAD rows are zero.
    word_emb = word_emb.at[PAD].set(0.0)
    pos_emb = pos_emb.at[PAD].set(0.0)

    params = {
        "word_emb": word_emb,
        "pos_emb": pos_emb,
        "layers": [init_fft_block_params(k_layers[i], D_MODEL, N_HEAD, D_HID, CONV_K)
                   for i in range(N_LAYER)],
    }

    # src_seq: token ids with trailing PAD; src_pos: 1-based positions, 0 at PAD.
    lengths = jnp.array([L, 11], jnp.int32)
    tokens = jax.random.randint(k_tok, (B, L), 4, VOCAB, jnp.int32)
    valid = jnp.arange(L)[None, :] < lengths[:, None]
    src_seq = jnp.where(valid, tokens, PAD)
    src_pos = jnp.where(valid, jnp.arange(1, L + 1, dtype=jnp.int32)[None, :], PAD)

    enc_out, non_pad_mask = encoder_forward(src_seq, src_pos, params, n_head=N_HEAD)
    jax.block_until_ready((enc_out, non_pad_mask))

    assert enc_out.shape == (B, L, D_MODEL)
    assert non_pad_mask.shape == (B, L, 1)
    assert bool(jnp.all(jnp.isfinite(enc_out)))
    # Padded rows must be exactly zero (non_pad_mask multiply).
    assert bool(jnp.all(jnp.abs(enc_out * (1.0 - non_pad_mask)) == 0.0))
    # TODO(synk): nn.Dropout layers are treated as eval-mode identity (stochastic op).
    print("KERNEL_OK")
</pallas_src>

<mosaic_0001>
module attributes {stable_mosaic.version = 11 : i64} {
  func.func @encoder_stack_kernel(%arg0: i32, %arg1: memref<32x128xf32, #tpu.memory_space<vmem>>, %arg2: memref<1x32xf32, #tpu.memory_space<vmem>>, %arg3: memref<32x1xf32, #tpu.memory_space<vmem>>, %arg4: memref<32x1xf32, #tpu.memory_space<vmem>>, %arg5: memref<32x1xf32, #tpu.memory_space<vmem>>, %arg6: memref<1x128x384xbf16, #tpu.memory_space<vmem>>, %arg7: memref<1x1x384xf32, #tpu.memory_space<vmem>>, %arg8: memref<1x128x128xbf16, #tpu.memory_space<vmem>>, %arg9: memref<1x1x128xf32, #tpu.memory_space<vmem>>, %arg10: memref<1x1x128xf32, #tpu.memory_space<vmem>>, %arg11: memref<1x1x128xf32, #tpu.memory_space<vmem>>, %arg12: memref<1x9x128x256xbf16, #tpu.memory_space<vmem>>, %arg13: memref<1x1x256xf32, #tpu.memory_space<vmem>>, %arg14: memref<1x256x128xbf16, #tpu.memory_space<vmem>>, %arg15: memref<1x1x128xf32, #tpu.memory_space<vmem>>, %arg16: memref<1x1x128xf32, #tpu.memory_space<vmem>>, %arg17: memref<1x1x128xf32, #tpu.memory_space<vmem>>, %arg18: memref<32x128xf32, #tpu.memory_space<vmem>>, %arg19: memref<32x128xf32, #tpu.memory_space<vmem>>) attributes {dimension_semantics = [#tpu.dimension_semantics<arbitrary>], iteration_bounds = array<i64: 2>, scalar_prefetch = 0 : i64, scratch_operands = 1 : i64, tpu.core_type = #tpu.core_type<tc>, window_params = [{pipeline_mode = #tpu.pipeline_mode<synchronous>, transform_indices = @transform_0, window_bounds = array<i64: 32, 128>}, {pipeline_mode = #tpu.pipeline_mode<synchronous>, transform_indices = @transform_1, window_bounds = array<i64: 1, 32>}, {pipeline_mode = #tpu.pipeline_mode<synchronous>, transform_indices = @transform_2, window_bounds = array<i64: 32, 1>}, {pipeline_mode = #tpu.pipeline_mode<synchronous>, transform_indices = @transform_3, window_bounds = array<i64: 32, 1>}, {pipeline_mode = #tpu.pipeline_mode<synchronous>, transform_indices = @transform_4, window_bounds = array<i64: 32, 1>}, {transform_indices = @transform_5, window_bounds = array<i64: 1, 128, 384>}, {transform_indices = @transform_6, window_bounds = array<i64: 1, 1, 384>}, {transform_indices = @transform_7, window_bounds = array<i64: 1, 128, 128>}, {transform_indices = @transform_8, window_bounds = array<i64: 1, 1, 128>}, {transform_indices = @transform_9, window_bounds = array<i64: 1, 1, 128>}, {transform_indices = @transform_10, window_bounds = array<i64: 1, 1, 128>}, {transform_indices = @transform_11, window_bounds = array<i64: 1, 9, 128, 256>}, {transform_indices = @transform_12, window_bounds = array<i64: 1, 1, 256>}, {transform_indices = @transform_13, window_bounds = array<i64: 1, 256, 128>}, {transform_indices = @transform_14, window_bounds = array<i64: 1, 1, 128>}, {transform_indices = @transform_15, window_bounds = array<i64: 1, 1, 128>}, {transform_indices = @transform_16, window_bounds = array<i64: 1, 1, 128>}, {pipeline_mode = #tpu.pipeline_mode<synchronous>, transform_indices = @transform_17, window_bounds = array<i64: 32, 128>}]} {
    %c0_i32 = arith.constant 0 : i32
    %0 = arith.cmpi eq, %arg0, %c0_i32 : i32
    %1 = arith.extui %0 : i1 to i32
    %c0_i32_0 = arith.constant 0 : i32
    %2 = arith.cmpi ne, %1, %c0_i32_0 : i32
    scf.if %2 {
      %c0_128 = arith.constant 0 : index
      %c0_129 = arith.constant 0 : index
      %257 = vector.load %arg1[%c0_128, %c0_129] : memref<32x128xf32, #tpu.memory_space<vmem>>, vector<32x128xf32>
      %c0_130 = arith.constant 0 : index
      %c0_131 = arith.constant 0 : index
      %258 = vector.load %arg19[%c0_130, %c0_131] : memref<32x128xf32, #tpu.memory_space<vmem>>, vector<32x128xf32>
      tpu.vector_store %arg19[%c0_130, %c0_131], %257 {strides = array<i32>} : memref<32x128xf32, #tpu.memory_space<vmem>>, vector<32x128xf32>,
    } else {
    }
    %c0 = arith.constant 0 : index
    %c0_1 = arith.constant 0 : index
    %3 = vector.load %arg19[%c0, %c0_1] : memref<32x128xf32, #tpu.memory_space<vmem>>, vector<32x128xf32>
    %c0_2 = arith.constant 0 : index
    %c0_3 = arith.constant 0 : index
    %4 = vector.load %arg5[%c0_2, %c0_3] : memref<32x1xf32, #tpu.memory_space<vmem>>, vector<32x1xf32>
    %c0_4 = arith.constant 0 : index
    %c0_5 = arith.constant 0 : index
    %5 = vector.load %arg4[%c0_4, %c0_5] : memref<32x1xf32, #tpu.memory_space<vmem>>, vector<32x1xf32>
    %6 = arith.truncf %3 : vector<32x128xf32> to vector<32x128xbf16>
    %c0_6 = arith.constant 0 : index
    %c0_7 = arith.constant 0 : index
    %c0_8 = arith.constant 0 : index
    %7 = vector.load %arg6[%c0_6, %c0_7, %c0_8] : memref<1x128x384xbf16, #tpu.memory_space<vmem>>, vector<1x128x384xbf16>
    %8 = vector.shape_cast %7 : vector<1x128x384xbf16> to vector<128x384xbf16>
    %cst = arith.constant dense<0.000000e+00> : vector<32x384xf32>
    %9 = tpu.matmul %6, %8, %cst {dimension_numbers = #tpu.dot_dimension_numbers<[1], [0], [0], [1], [0, 0, 1, 1], [], []>} : vector<32x128xbf16>, vector<128x384xbf16>, vector<32x384xf32> -> vector<32x384xf32>
    %c0_9 = arith.constant 0 : index
    %c0_10 = arith.constant 0 : index
    %c0_11 = arith.constant 0 : index
    %10 = vector.load %arg7[%c0_9, %c0_10, %c0_11] : memref<1x1x384xf32, #tpu.memory_space<vmem>>, vector<1x1x384xf32>
    %11 = vector.shape_cast %10 : vector<1x1x384xf32> to vector<1x384xf32>
    %12 = vector.broadcast %11 : vector<1x384xf32> to vector<32x384xf32>
    %13 = arith.addf %9, %12 : vector<32x384xf32>
    %c0_12 = arith.constant 0 : index
    %c0_13 = arith.constant 0 : index
    %14 = vector.load %arg3[%c0_12, %c0_13] : memref<32x1xf32, #tpu.memory_space<vmem>>, vector<32x1xf32>
    %c0_14 = arith.constant 0 : index
    %c0_15 = arith.constant 0 : index
    %15 = vector.load %arg2[%c0_14, %c0_15] : memref<1x32xf32, #tpu.memory_space<vmem>>, vector<1x32xf32>
    %16 = vector.broadcast %14 : vector<32x1xf32> to vector<32x32xf32>
    %17 = vector.broadcast %15 : vector<1x32xf32> to vector<32x32xf32>
    %18 = arith.cmpf oeq, %16, %17 : vector<32x32xf32>
    %cst_16 = arith.constant 0.000000e+00 : f32
    %cst_17 = arith.constant -1.000000e+30 : f32
    %19 = vector.broadcast %cst_16 : f32 to vector<32x32xf32>
    %20 = vector.broadcast %cst_17 : f32 to vector<32x32xf32>
    %21 = arith.select %18, %19, %20 : vector<32x32xi1>, vector<32x32xf32>
    %c0_18 = arith.constant 0 : index
    %c0_19 = arith.constant 0 : index
    %c0_20 = arith.constant 0 : index
    %22 = vector.load %arg9[%c0_18, %c0_19, %c0_20] : memref<1x1x128xf32, #tpu.memory_space<vmem>>, vector<1x1x128xf32>
    %23 = vector.shape_cast %22 : vector<1x1x128xf32> to vector<1x128xf32>
    %24 = vector.extract_strided_slice %13 {offsets = [0, 0], sizes = [32, 64], strides = [1, 1]} : vector<32x384xf32> to vector<32x64xf32>
    %cst_21 = arith.constant 1.250000e-01 : f32
    %25 = vector.broadcast %cst_21 : f32 to vector<32x64xf32>
    %26 = arith.mulf %24, %25 : vector<32x64xf32>
    %27 = arith.truncf %26 : vector<32x64xf32> to vector<32x64xbf16>
    %28 = vector.extract_strided_slice %13 {offsets = [0, 128], sizes = [32, 64], strides = [1, 1]} : vector<32x384xf32> to vector<32x64xf32>
    %29 = arith.truncf %28 : vector<32x64xf32> to vector<32x64xbf16>
    %30 = vector.extract_strided_slice %13 {offsets = [0, 256], sizes = [32, 64], strides = [1, 1]} : vector<32x384xf32> to vector<32x64xf32>
    %31 = arith.truncf %30 : vector<32x64xf32> to vector<32x64xbf16>
    %32 = tpu.transpose %29, [1, 0] : vector<32x64xbf16> -> vector<64x32xbf16>
    %cst_22 = arith.constant dense<0.000000e+00> : vector<32x32xf32>
    %33 = tpu.matmul %27, %32, %cst_22 {dimension_numbers = #tpu.dot_dimension_numbers<[1], [0], [0], [1], [0, 0, 1, 1], [], []>} : vector<32x64xbf16>, vector<64x32xbf16>, vector<32x32xf32> -> vector<32x32xf32>
    %34 = arith.addf %33, %21 : vector<32x32xf32>
    %cst_23 = arith.constant dense<0xFF800000> : vector<32xf32>
    %35 = vector.multi_reduction <maximumf>, %34, %cst_23 [1] : vector<32x32xf32> to vector<32xf32>
    %36 = vector.shape_cast %35 : vector<32xf32> to vector<32x1xf32>
    %37 = vector.broadcast %36 : vector<32x1xf32> to vector<32x32xf32>
    %38 = arith.subf %34, %37 : vector<32x32xf32>
    %39 = math.exp %38 : vector<32x32xf32>
    %cst_24 = arith.constant dense<0.000000e+00> : vector<32xf32>
    %40 = vector.multi_reduction <add>, %39, %cst_24 [1] : vector<32x32xf32> to vector<32xf32>
    %41 = vector.shape_cast %40 : vector<32xf32> to vector<32x1xf32>
    %42 = tpu.reciprocal %41 {approx = true} : vector<32x1xf32> -> vector<32x1xf32>
    %43 = vector.broadcast %42 : vector<32x1xf32> to vector<32x32xf32>
    %44 = arith.mulf %39, %43 : vector<32x32xf32>
    %45 = arith.truncf %44 : vector<32x32xf32> to vector<32x32xbf16>
    %cst_25 = arith.constant dense<0.000000e+00> : vector<32x64xf32>
    %46 = tpu.matmul %45, %31, %cst_25 {dimension_numbers = #tpu.dot_dimension_numbers<[1], [0], [0], [1], [0, 0, 1, 1], [], []>} : vector<32x32xbf16>, vector<32x64xbf16>, vector<32x64xf32> -> vector<32x64xf32>
    %47 = arith.truncf %46 : vector<32x64xf32> to vector<32x64xbf16>
    %c0_26 = arith.constant 0 : index
    %c0_27 = arith.constant 0 : index
    %c0_28 = arith.constant 0 : index
    %48 = vector.load %arg8[%c0_26, %c0_27, %c0_28] : memref<1x128x128xbf16, #tpu.memory_space<vmem>>, vector<1x64x128xbf16>
    %49 = vector.shape_cast %48 : vector<1x64x128xbf16> to vector<64x128xbf16>
    %cst_29 = arith.constant dense<0.000000e+00> : vector<32x128xf32>
    %50 = tpu.matmul %47, %49, %cst_29 {dimension_numbers = #tpu.dot_dimension_numbers<[1], [0], [0], [1], [0, 0, 1, 1], [], []>} : vector<32x64xbf16>, vector<64x128xbf16>, vector<32x128xf32> -> vector<32x128xf32>
    %51 = vector.broadcast %23 : vector<1x128xf32> to vector<32x128xf32>
    %52 = arith.addf %51, %50 : vector<32x128xf32>
    %53 = vector.extract_strided_slice %13 {offsets = [0, 64], sizes = [32, 64], strides = [1, 1]} : vector<32x384xf32> to vector<32x64xf32>
    %cst_30 = arith.constant 1.250000e-01 : f32
    %54 = vector.broadcast %cst_30 : f32 to vector<32x64xf32>
    %55 = arith.mulf %53, %54 : vector<32x64xf32>
    %56 = arith.truncf %55 : vector<32x64xf32> to vector<32x64xbf16>
    %57 = vector.extract_strided_slice %13 {offsets = [0, 192], sizes = [32, 64], strides = [1, 1]} : vector<32x384xf32> to vector<32x64xf32>
    %58 = arith.truncf %57 : vector<32x64xf32> to vector<32x64xbf16>
    %59 = vector.extract_strided_slice %13 {offsets = [0, 320], sizes = [32, 64], strides = [1, 1]} : vector<32x384xf32> to vector<32x64xf32>
    %60 = arith.truncf %59 : vector<32x64xf32> to vector<32x64xbf16>
    %61 = tpu.transpose %58, [1, 0] : vector<32x64xbf16> -> vector<64x32xbf16>
    %cst_31 = arith.constant dense<0.000000e+00> : vector<32x32xf32>
    %62 = tpu.matmul %56, %61, %cst_31 {dimension_numbers = #tpu.dot_dimension_numbers<[1], [0], [0], [1], [0, 0, 1, 1], [], []>} : vector<32x64xbf16>, vector<64x32xbf16>, vector<32x32xf32> -> vector<32x32xf32>
    %63 = arith.addf %62, %21 : vector<32x32xf32>
    %cst_32 = arith.constant dense<0xFF800000> : vector<32xf32>
    %64 = vector.multi_reduction <maximumf>, %63, %cst_32 [1] : vector<32x32xf32> to vector<32xf32>
    %65 = vector.shape_cast %64 : vector<32xf32> to vector<32x1xf32>
    %66 = vector.broadcast %65 : vector<32x1xf32> to vector<32x32xf32>
    %67 = arith.subf %63, %66 : vector<32x32xf32>
    %68 = math.exp %67 : vector<32x32xf32>
    %cst_33 = arith.constant dense<0.000000e+00> : vector<32xf32>
    %69 = vector.multi_reduction <add>, %68, %cst_33 [1] : vector<32x32xf32> to vector<32xf32>
    %70 = vector.shape_cast %69 : vector<32xf32> to vector<32x1xf32>
    %71 = tpu.reciprocal %70 {approx = true} : vector<32x1xf32> -> vector<32x1xf32>
    %72 = vector.broadcast %71 : vector<32x1xf32> to vector<32x32xf32>
    %73 = arith.mulf %68, %72 : vector<32x32xf32>
    %74 = arith.truncf %73 : vector<32x32xf32> to vector<32x32xbf16>
    %cst_34 = arith.constant dense<0.000000e+00> : vector<32x64xf32>
    %75 = tpu.matmul %74, %60, %cst_34 {dimension_numbers = #tpu.dot_dimension_numbers<[1], [0], [0], [1], [0, 0, 1, 1], [], []>} : vector<32x32xbf16>, vector<32x64xbf16>, vector<32x64xf32> -> vector<32x64xf32>
    %76 = arith.truncf %75 : vector<32x64xf32> to vector<32x64xbf16>
    %c0_35 = arith.constant 0 : index
    %c64 = arith.constant 64 : index
    %c0_36 = arith.constant 0 : index
    %77 = vector.load %arg8[%c0_35, %c64, %c0_36] : memref<1x128x128xbf16, #tpu.memory_space<vmem>>, vector<1x64x128xbf16>
    %78 = vector.shape_cast %77 : vector<1x64x128xbf16> to vector<64x128xbf16>
    %cst_37 = arith.constant dense<0.000000e+00> : vector<32x128xf32>
    %79 = tpu.matmul %76, %78, %cst_37 {dimension_numbers = #tpu.dot_dimension_numbers<[1], [0], [0], [1], [0, 0, 1, 1], [], []>} : vector<32x64xbf16>, vector<64x128xbf16>, vector<32x128xf32> -> vector<32x128xf32>
    %80 = arith.addf %52, %79 : vector<32x128xf32>
    %81 = arith.addf %80, %3 : vector<32x128xf32>
    %c0_38 = arith.constant 0 : index
    %c0_39 = arith.constant 0 : index
    %c0_40 = arith.constant 0 : index
    %82 = vector.load %arg10[%c0_38, %c0_39, %c0_40] : memref<1x1x128xf32, #tpu.memory_space<vmem>>, vector<1x1x128xf32>
    %83 = vector.shape_cast %82 : vector<1x1x128xf32> to vector<1x128xf32>
    %c0_41 = arith.constant 0 : index
    %c0_42 = arith.constant 0 : index
    %c0_43 = arith.constant 0 : index
    %84 = vector.load %arg11[%c0_41, %c0_42, %c0_43] : memref<1x1x128xf32, #tpu.memory_space<vmem>>, vector<1x1x128xf32>
    %85 = vector.shape_cast %84 : vector<1x1x128xf32> to vector<1x128xf32>
    %cst_44 = arith.constant dense<0.000000e+00> : vector<32xf32>
    %86 = vector.multi_reduction <add>, %81, %cst_44 [1] : vector<32x128xf32> to vector<32xf32>
    %87 = vector.shape_cast %86 : vector<32xf32> to vector<32x1xf32>
    %cst_45 = arith.constant 1.280000e+02 : f32
    %88 = vector.broadcast %cst_45 : f32 to vector<32x1xf32>
    %89 = arith.divf %87, %88 : vector<32x1xf32>
    %90 = vector.broadcast %89 : vector<32x1xf32> to vector<32x128xf32>
    %91 = arith.subf %81, %90 : vector<32x128xf32>
    %92 = arith.mulf %91, %91 : vector<32x128xf32>
    %cst_46 = arith.constant dense<0.000000e+00> : vector<32xf32>
    %93 = vector.multi_reduction <add>, %92, %cst_46 [1] : vector<32x128xf32> to vector<32xf32>
    %94 = vector.shape_cast %93 : vector<32xf32> to vector<32x1xf32>
    %cst_47 = arith.constant 1.280000e+02 : f32
    %95 = vector.broadcast %cst_47 : f32 to vector<32x1xf32>
    %96 = arith.divf %94, %95 : vector<32x1xf32>
    %97 = vector.broadcast %89 : vector<32x1xf32> to vector<32x128xf32>
    %98 = arith.subf %81, %97 : vector<32x128xf32>
    %cst_48 = arith.constant 9.99999974E-6 : f32
    %99 = vector.broadcast %cst_48 : f32 to vector<32x1xf32>
    %100 = arith.addf %96, %99 : vector<32x1xf32>
    %101 = math.rsqrt %100 : vector<32x1xf32>
    %102 = vector.broadcast %101 : vector<32x1xf32> to vector<32x128xf32>
    %103 = arith.mulf %98, %102 : vector<32x128xf32>
    %104 = vector.broadcast %83 : vector<1x128xf32> to vector<32x128xf32>
    %105 = arith.mulf %103, %104 : vector<32x128xf32>
    %106 = vector.broadcast %85 : vector<1x128xf32> to vector<32x128xf32>
    %107 = arith.addf %105, %106 : vector<32x128xf32>
    %108 = vector.broadcast %4 : vector<32x1xf32> to vector<32x128xf32>
    %109 = arith.mulf %107, %108 : vector<32x128xf32>
    %c0_49 = arith.constant 0 : index
    %c0_50 = arith.constant 0 : index
    %c0_51 = arith.constant 0 : index
    %110 = vector.load %arg13[%c0_49, %c0_50, %c0_51] : memref<1x1x256xf32, #tpu.memory_space<vmem>>, vector<1x1x256xf32>
    %111 = vector.shape_cast %110 : vector<1x1x256xf32> to vector<1x256xf32>
    %c4_i32 = arith.constant 4 : i32
    %112 = tpu.dynamic_rotate %109 by %c4_i32 dim 0 : vector<32x128xf32>, i32 -> vector<32x128xf32>
    %cst_52 = arith.constant 4.000000e+00 : f32
    %113 = vector.broadcast %cst_52 : f32 to vector<32x1xf32>
    %114 = arith.cmpf oge, %5, %113 : vector<32x1xf32>
    %cst_53 = arith.constant 0.000000e+00 : f32
    %115 = vector.shape_cast %114 : vector<32x1xi1> to vector<32x1xi1>
    %116 = vector.broadcast %115 : vector<32x1xi1> to vector<32x128xi1>
    %117 = vector.broadcast %cst_53 : f32 to vector<32x128xf32>
    %118 = arith.select %116, %112, %117 : vector<32x128xi1>, vector<32x128xf32>
    %119 = arith.truncf %118 : vector<32x128xf32> to vector<32x128xbf16>
    %c0_54 = arith.constant 0 : index
    %c0_55 = arith.constant 0 : index
    %c0_56 = arith.constant 0 : index
    %c0_57 = arith.constant 0 : index
    %120 = vector.load %arg12[%c0_54, %c0_55, %c0_56, %c0_57] : memref<1x9x128x256xbf16, #tpu.memory_space<vmem>>, vector<1x1x128x256xbf16>
    %121 = vector.shape_cast %120 : vector<1x1x128x256xbf16> to vector<128x256xbf16>
    %cst_58 = arith.constant dense<0.000000e+00> : vector<32x256xf32>
    %122 = tpu.matmul %119, %121, %cst_58 {dimension_numbers = #tpu.dot_dimension_numbers<[1], [0], [0], [1], [0, 0, 1, 1], [], []>} : vector<32x128xbf16>, vector<128x256xbf16>, vector<32x256xf32> -> vector<32x256xf32>
    %123 = vector.broadcast %111 : vector<1x256xf32> to vector<32x256xf32>
    %124 = arith.addf %123, %122 : vector<32x256xf32>
    %c3_i32 = arith.constant 3 : i32
    %125 = tpu.dynamic_rotate %109 by %c3_i32 dim 0 : vector<32x128xf32>, i32 -> vector<32x128xf32>
    %cst_59 = arith.constant 3.000000e+00 : f32
    %126 = vector.broadcast %cst_59 : f32 to vector<32x1xf32>
    %127 = arith.cmpf oge, %5, %126 : vector<32x1xf32>
    %cst_60 = arith.constant 0.000000e+00 : f32
    %128 = vector.shape_cast %127 : vector<32x1xi1> to vector<32x1xi1>
    %129 = vector.broadcast %128 : vector<32x1xi1> to vector<32x128xi1>
    %130 = vector.broadcast %cst_60 : f32 to vector<32x128xf32>
    %131 = arith.select %129, %125, %130 : vector<32x128xi1>, vector<32x128xf32>
    %132 = arith.truncf %131 : vector<32x128xf32> to vector<32x128xbf16>
    %c0_61 = arith.constant 0 : index
    %c1 = arith.constant 1 : index
    %c0_62 = arith.constant 0 : index
    %c0_63 = arith.constant 0 : index
    %133 = vector.load %arg12[%c0_61, %c1, %c0_62, %c0_63] : memref<1x9x128x256xbf16, #tpu.memory_space<vmem>>, vector<1x1x128x256xbf16>
    %134 = vector.shape_cast %133 : vector<1x1x128x256xbf16> to vector<128x256xbf16>
    %cst_64 = arith.constant dense<0.000000e+00> : vector<32x256xf32>
    %135 = tpu.matmul %132, %134, %cst_64 {dimension_numbers = #tpu.dot_dimension_numbers<[1], [0], [0], [1], [0, 0, 1, 1], [], []>} : vector<32x128xbf16>, vector<128x256xbf16>, vector<32x256xf32> -> vector<32x256xf32>
    %136 = arith.addf %124, %135 : vector<32x256xf32>
    %c2_i32 = arith.constant 2 : i32
    %137 = tpu.dynamic_rotate %109 by %c2_i32 dim 0 : vector<32x128xf32>, i32 -> vector<32x128xf32>
    %cst_65 = arith.constant 2.000000e+00 : f32
    %138 = vector.broadcast %cst_65 : f32 to vector<32x1xf32>
    %139 = arith.cmpf oge, %5, %138 : vector<32x1xf32>
    %cst_66 = arith.constant 0.000000e+00 : f32
    %140 = vector.shape_cast %139 : vector<32x1xi1> to vector<32x1xi1>
    %141 = vector.broadcast %140 : vector<32x1xi1> to vector<32x128xi1>
    %142 = vector.broadcast %cst_66 : f32 to vector<32x128xf32>
    %143 = arith.select %141, %137, %142 : vector<32x128xi1>, vector<32x128xf32>
    %144 = arith.truncf %143 : vector<32x128xf32> to vector<32x128xbf16>
    %c0_67 = arith.constant 0 : index
    %c2 = arith.constant 2 : index
    %c0_68 = arith.constant 0 : index
    %c0_69 = arith.constant 0 : index
    %145 = vector.load %arg12[%c0_67, %c2, %c0_68, %c0_69] : memref<1x9x128x256xbf16, #tpu.memory_space<vmem>>, vector<1x1x128x256xbf16>
    %146 = vector.shape_cast %145 : vector<1x1x128x256xbf16> to vector<128x256xbf16>
    %cst_70 = arith.constant dense<0.000000e+00> : vector<32x256xf32>
    %147 = tpu.matmul %144, %146, %cst_70 {dimension_numbers = #tpu.dot_dimension_numbers<[1], [0], [0], [1], [0, 0, 1, 1], [], []>} : vector<32x128xbf16>, vector<128x256xbf16>, vector<32x256xf32> -> vector<32x256xf32>
    %148 = arith.addf %136, %147 : vector<32x256xf32>
    %c1_i32 = arith.constant 1 : i32
    %149 = tpu.dynamic_rotate %109 by %c1_i32 dim 0 : vector<32x128xf32>, i32 -> vector<32x128xf32>
    %cst_71 = arith.constant 1.000000e+00 : f32
    %150 = vector.broadcast %cst_71 : f32 to vector<32x1xf32>
    %151 = arith.cmpf oge, %5, %150 : vector<32x1xf32>
    %cst_72 = arith.constant 0.000000e+00 : f32
    %152 = vector.shape_cast %151 : vector<32x1xi1> to vector<32x1xi1>
    %153 = vector.broadcast %152 : vector<32x1xi1> to vector<32x128xi1>
    %154 = vector.broadcast %cst_72 : f32 to vector<32x128xf32>
    %155 = arith.select %153, %149, %154 : vector<32x128xi1>, vector<32x128xf32>
    %156 = arith.truncf %155 : vector<32x128xf32> to vector<32x128xbf16>
    %c0_73 = arith.constant 0 : index
    %c3 = arith.constant 3 : index
    %c0_74 = arith.constant 0 : index
    %c0_75 = arith.constant 0 : index
    %157 = vector.load %arg12[%c0_73, %c3, %c0_74, %c0_75] : memref<1x9x128x256xbf16, #tpu.memory_space<vmem>>, vector<1x1x128x256xbf16>
    %158 = vector.shape_cast %157 : vector<1x1x128x256xbf16> to vector<128x256xbf16>
    %cst_76 = arith.constant dense<0.000000e+00> : vector<32x256xf32>
    %159 = tpu.matmul %156, %158, %cst_76 {dimension_numbers = #tpu.dot_dimension_numbers<[1], [0], [0], [1], [0, 0, 1, 1], [], []>} : vector<32x128xbf16>, vector<128x256xbf16>, vector<32x256xf32> -> vector<32x256xf32>
    %160 = arith.addf %148, %159 : vector<32x256xf32>
    %161 = arith.truncf %109 : vector<32x128xf32> to vector<32x128xbf16>
    %c0_77 = arith.constant 0 : index
    %c4 = arith.constant 4 : index
    %c0_78 = arith.constant 0 : index
    %c0_79 = arith.constant 0 : index
    %162 = vector.load %arg12[%c0_77, %c4, %c0_78, %c0_79] : memref<1x9x128x256xbf16, #tpu.memory_space<vmem>>, vector<1x1x128x256xbf16>
    %163 = vector.shape_cast %162 : vector<1x1x128x256xbf16> to vector<128x256xbf16>
    %cst_80 = arith.constant dense<0.000000e+00> : vector<32x256xf32>
    %164 = tpu.matmul %161, %163, %cst_80 {dimension_numbers = #tpu.dot_dimension_numbers<[1], [0], [0], [1], [0, 0, 1, 1], [], []>} : vector<32x128xbf16>, vector<128x256xbf16>, vector<32x256xf32> -> vector<32x256xf32>
    %165 = arith.addf %160, %164 : vector<32x256xf32>
    %c31_i32 = arith.constant 31 : i32
    %166 = tpu.dynamic_rotate %109 by %c31_i32 dim 0 : vector<32x128xf32>, i32 -> vector<32x128xf32>
    %cst_81 = arith.constant 1.500000e+01 : f32
    %167 = vector.broadcast %cst_81 : f32 to vector<32x1xf32>
    %168 = arith.cmpf olt, %5, %167 : vector<32x1xf32>
    %cst_82 = arith.constant 0.000000e+00 : f32
    %169 = vector.shape_cast %168 : vector<32x1xi1> to vector<32x1xi1>
    %170 = vector.broadcast %169 : vector<32x1xi1> to vector<32x128xi1>
    %171 = vector.broadcast %cst_82 : f32 to vector<32x128xf32>
    %172 = arith.select %170, %166, %171 : vector<32x128xi1>, vector<32x128xf32>
    %173 = arith.truncf %172 : vector<32x128xf32> to vector<32x128xbf16>
    %c0_83 = arith.constant 0 : index
    %c5 = arith.constant 5 : index
    %c0_84 = arith.constant 0 : index
    %c0_85 = arith.constant 0 : index
    %174 = vector.load %arg12[%c0_83, %c5, %c0_84, %c0_85] : memref<1x9x128x256xbf16, #tpu.memory_space<vmem>>, vector<1x1x128x256xbf16>
    %175 = vector.shape_cast %174 : vector<1x1x128x256xbf16> to vector<128x256xbf16>
    %cst_86 = arith.constant dense<0.000000e+00> : vector<32x256xf32>
    %176 = tpu.matmul %173, %175, %cst_86 {dimension_numbers = #tpu.dot_dimension_numbers<[1], [0], [0], [1], [0, 0, 1, 1], [], []>} : vector<32x128xbf16>, vector<128x256xbf16>, vector<32x256xf32> -> vector<32x256xf32>
    %177 = arith.addf %165, %176 : vector<32x256xf32>
    %c30_i32 = arith.constant 30 : i32
    %178 = tpu.dynamic_rotate %109 by %c30_i32 dim 0 : vector<32x128xf32>, i32 -> vector<32x128xf32>
    %cst_87 = arith.constant 1.400000e+01 : f32
    %179 = vector.broadcast %cst_87 : f32 to vector<32x1xf32>
    %180 = arith.cmpf olt, %5, %179 : vector<32x1xf32>
    %cst_88 = arith.constant 0.000000e+00 : f32
    %181 = vector.shape_cast %180 : vector<32x1xi1> to vector<32x1xi1>
    %182 = vector.broadcast %181 : vector<32x1xi1> to vector<32x128xi1>
    %183 = vector.broadcast %cst_88 : f32 to vector<32x128xf32>
    %184 = arith.select %182, %178, %183 : vector<32x128xi1>, vector<32x128xf32>
    %185 = arith.truncf %184 : vector<32x128xf32> to vector<32x128xbf16>
    %c0_89 = arith.constant 0 : index
    %c6 = arith.constant 6 : index
    %c0_90 = arith.constant 0 : index
    %c0_91 = arith.constant 0 : index
    %186 = vector.load %arg12[%c0_89, %c6, %c0_90, %c0_91] : memref<1x9x128x256xbf16, #tpu.memory_space<vmem>>, vector<1x1x128x256xbf16>
    %187 = vector.shape_cast %186 : vector<1x1x128x256xbf16> to vector<128x256xbf16>
    %cst_92 = arith.constant dense<0.000000e+00> : vector<32x256xf32>
    %188 = tpu.matmul %185, %187, %cst_92 {dimension_numbers = #tpu.dot_dimension_numbers<[1], [0], [0], [1], [0, 0, 1, 1], [], []>} : vector<32x128xbf16>, vector<128x256xbf16>, vector<32x256xf32> -> vector<32x256xf32>
    %189 = arith.addf %177, %188 : vector<32x256xf32>
    %c29_i32 = arith.constant 29 : i32
    %190 = tpu.dynamic_rotate %109 by %c29_i32 dim 0 : vector<32x128xf32>, i32 -> vector<32x128xf32>
    %cst_93 = arith.constant 1.300000e+01 : f32
    %191 = vector.broadcast %cst_93 : f32 to vector<32x1xf32>
    %192 = arith.cmpf olt, %5, %191 : vector<32x1xf32>
    %cst_94 = arith.constant 0.000000e+00 : f32
    %193 = vector.shape_cast %192 : vector<32x1xi1> to vector<32x1xi1>
    %194 = vector.broadcast %193 : vector<32x1xi1> to vector<32x128xi1>
    %195 = vector.broadcast %cst_94 : f32 to vector<32x128xf32>
    %196 = arith.select %194, %190, %195 : vector<32x128xi1>, vector<32x128xf32>
    %197 = arith.truncf %196 : vector<32x128xf32> to vector<32x128xbf16>
    %c0_95 = arith.constant 0 : index
    %c7 = arith.constant 7 : index
    %c0_96 = arith.constant 0 : index
    %c0_97 = arith.constant 0 : index
    %198 = vector.load %arg12[%c0_95, %c7, %c0_96, %c0_97] : memref<1x9x128x256xbf16, #tpu.memory_space<vmem>>, vector<1x1x128x256xbf16>
    %199 = vector.shape_cast %198 : vector<1x1x128x256xbf16> to vector<128x256xbf16>
    %cst_98 = arith.constant dense<0.000000e+00> : vector<32x256xf32>
    %200 = tpu.matmul %197, %199, %cst_98 {dimension_numbers = #tpu.dot_dimension_numbers<[1], [0], [0], [1], [0, 0, 1, 1], [], []>} : vector<32x128xbf16>, vector<128x256xbf16>, vector<32x256xf32> -> vector<32x256xf32>
    %201 = arith.addf %189, %200 : vector<32x256xf32>
    %c28_i32 = arith.constant 28 : i32
    %202 = tpu.dynamic_rotate %109 by %c28_i32 dim 0 : vector<32x128xf32>, i32 -> vector<32x128xf32>
    %cst_99 = arith.constant 1.200000e+01 : f32
    %203 = vector.broadcast %cst_99 : f32 to vector<32x1xf32>
    %204 = arith.cmpf olt, %5, %203 : vector<32x1xf32>
    %cst_100 = arith.constant 0.000000e+00 : f32
    %205 = vector.shape_cast %204 : vector<32x1xi1> to vector<32x1xi1>
    %206 = vector.broadcast %205 : vector<32x1xi1> to vector<32x128xi1>
    %207 = vector.broadcast %cst_100 : f32 to vector<32x128xf32>
    %208 = arith.select %206, %202, %207 : vector<32x128xi1>, vector<32x128xf32>
    %209 = arith.truncf %208 : vector<32x128xf32> to vector<32x128xbf16>
    %c0_101 = arith.constant 0 : index
    %c8 = arith.constant 8 : index
    %c0_102 = arith.constant 0 : index
    %c0_103 = arith.constant 0 : index
    %210 = vector.load %arg12[%c0_101, %c8, %c0_102, %c0_103] : memref<1x9x128x256xbf16, #tpu.memory_space<vmem>>, vector<1x1x128x256xbf16>
    %211 = vector.shape_cast %210 : vector<1x1x128x256xbf16> to vector<128x256xbf16>
    %cst_104 = arith.constant dense<0.000000e+00> : vector<32x256xf32>
    %212 = tpu.matmul %209, %211, %cst_104 {dimension_numbers = #tpu.dot_dimension_numbers<[1], [0], [0], [1], [0, 0, 1, 1], [], []>} : vector<32x128xbf16>, vector<128x256xbf16>, vector<32x256xf32> -> vector<32x256xf32>
    %213 = arith.addf %201, %212 : vector<32x256xf32>
    %cst_105 = arith.constant 0.000000e+00 : f32
    %214 = vector.broadcast %cst_105 : f32 to vector<32x256xf32>
    %215 = arith.maximumf %213, %214 : vector<32x256xf32>
    %216 = arith.truncf %215 : vector<32x256xf32> to vector<32x256xbf16>
    %c0_106 = arith.constant 0 : index
    %c0_107 = arith.constant 0 : index
    %c0_108 = arith.constant 0 : index
    %217 = vector.load %arg14[%c0_106, %c0_107, %c0_108] : memref<1x256x128xbf16, #tpu.memory_space<vmem>>, vector<1x256x128xbf16>
    %218 = vector.shape_cast %217 : vector<1x256x128xbf16> to vector<256x128xbf16>
    %cst_109 = arith.constant dense<0.000000e+00> : vector<32x128xf32>
    %219 = tpu.matmul %216, %218, %cst_109 {dimension_numbers = #tpu.dot_dimension_numbers<[1], [0], [0], [1], [0, 0, 1, 1], [], []>} : vector<32x256xbf16>, vector<256x128xbf16>, vector<32x128xf32> -> vector<32x128xf32>
    %c0_110 = arith.constant 0 : index
    %c0_111 = arith.constant 0 : index
    %c0_112 = arith.constant 0 : index
    %220 = vector.load %arg15[%c0_110, %c0_111, %c0_112] : memref<1x1x128xf32, #tpu.memory_space<vmem>>, vector<1x1x128xf32>
    %221 = vector.shape_cast %220 : vector<1x1x128xf32> to vector<1x128xf32>
    %222 = vector.broadcast %221 : vector<1x128xf32> to vector<32x128xf32>
    %223 = arith.addf %219, %222 : vector<32x128xf32>
    %224 = arith.addf %223, %109 : vector<32x128xf32>
    %c0_113 = arith.constant 0 : index
    %c0_114 = arith.constant 0 : index
    %c0_115 = arith.constant 0 : index
    %225 = vector.load %arg16[%c0_113, %c0_114, %c0_115] : memref<1x1x128xf32, #tpu.memory_space<vmem>>, vector<1x1x128xf32>
    %226 = vector.shape_cast %225 : vector<1x1x128xf32> to vector<1x128xf32>
    %c0_116 = arith.constant 0 : index
    %c0_117 = arith.constant 0 : index
    %c0_118 = arith.constant 0 : index
    %227 = vector.load %arg17[%c0_116, %c0_117, %c0_118] : memref<1x1x128xf32, #tpu.memory_space<vmem>>, vector<1x1x128xf32>
    %228 = vector.shape_cast %227 : vector<1x1x128xf32> to vector<1x128xf32>
    %cst_119 = arith.constant dense<0.000000e+00> : vector<32xf32>
    %229 = vector.multi_reduction <add>, %224, %cst_119 [1] : vector<32x128xf32> to vector<32xf32>
    %230 = vector.shape_cast %229 : vector<32xf32> to vector<32x1xf32>
    %cst_120 = arith.constant 1.280000e+02 : f32
    %231 = vector.broadcast %cst_120 : f32 to vector<32x1xf32>
    %232 = arith.divf %230, %231 : vector<32x1xf32>
    %233 = vector.broadcast %232 : vector<32x1xf32> to vector<32x128xf32>
    %234 = arith.subf %224, %233 : vector<32x128xf32>
    %235 = arith.mulf %234, %234 : vector<32x128xf32>
    %cst_121 = arith.constant dense<0.000000e+00> : vector<32xf32>
    %236 = vector.multi_reduction <add>, %235, %cst_121 [1] : vector<32x128xf32> to vector<32xf32>
    %237 = vector.shape_cast %236 : vector<32xf32> to vector<32x1xf32>
    %cst_122 = arith.constant 1.280000e+02 : f32
    %238 = vector.broadcast %cst_122 : f32 to vector<32x1xf32>
    %239 = arith.divf %237, %238 : vector<32x1xf32>
    %240 = vector.broadcast %232 : vector<32x1xf32> to vector<32x128xf32>
    %241 = arith.subf %224, %240 : vector<32x128xf32>
    %cst_123 = arith.constant 9.99999974E-6 : f32
    %242 = vector.broadcast %cst_123 : f32 to vector<32x1xf32>
    %243 = arith.addf %239, %242 : vector<32x1xf32>
    %244 = math.rsqrt %243 : vector<32x1xf32>
    %245 = vector.broadcast %244 : vector<32x1xf32> to vector<32x128xf32>
    %246 = arith.mulf %241, %245 : vector<32x128xf32>
    %247 = vector.broadcast %226 : vector<1x128xf32> to vector<32x128xf32>
    %248 = arith.mulf %246, %247 : vector<32x128xf32>
    %249 = vector.broadcast %228 : vector<1x128xf32> to vector<32x128xf32>
    %250 = arith.addf %248, %249 : vector<32x128xf32>
    %251 = vector.broadcast %4 : vector<32x1xf32> to vector<32x128xf32>
    %252 = arith.mulf %250, %251 : vector<32x128xf32>
    %c0_124 = arith.constant 0 : index
    %c0_125 = arith.constant 0 : index
    %253 = vector.load %arg19[%c0_124, %c0_125] : memref<32x128xf32, #tpu.memory_space<vmem>>, vector<32x128xf32>
    tpu.vector_store %arg19[%c0_124, %c0_125], %252 {strides = array<i32>} : memref<32x128xf32, #tpu.memory_space<vmem>>, vector<32x128xf32>,
    %c1_i32_126 = arith.constant 1 : i32
    %254 = arith.cmpi eq, %arg0, %c1_i32_126 : i32
    %255 = arith.extui %254 : i1 to i32
    %c0_i32_127 = arith.constant 0 : i32
    %256 = arith.cmpi ne, %255, %c0_i32_127 : i32
    scf.if %256 {
      %c0_128 = arith.constant 0 : index
      %c0_129 = arith.constant 0 : index
      %257 = vector.load %arg19[%c0_128, %c0_129] : memref<32x128xf32, #tpu.memory_space<vmem>>, vector<32x128xf32>
      %c0_130 = arith.constant 0 : index
      %c0_131 = arith.constant 0 : index
      %258 = vector.load %arg18[%c0_130, %c0_131] : memref<32x128xf32, #tpu.memory_space<vmem>>, vector<32x128xf32>
      tpu.vector_store %arg18[%c0_130, %c0_131], %257 {strides = array<i32>} : memref<32x128xf32, #tpu.memory_space<vmem>>, vector<32x128xf32>,
    } else {
    }
    return
  }
  func.func @transform_0(%arg0: i32) -> (i32, i32) {
    %c0_i32 = arith.constant 0 : i32
    %c0_i32_0 = arith.constant 0 : i32
    %c0_i32_1 = arith.constant 0 : i32
    return %c0_i32, %c0_i32_0 : i32, i32
  }
  func.func @transform_1(%arg0: i32) -> (i32, i32) {
    %c0_i32 = arith.constant 0 : i32
    %c0_i32_0 = arith.constant 0 : i32
    %c0_i32_1 = arith.constant 0 : i32
    return %c0_i32, %c0_i32_0 : i32, i32
  }
  func.func @transform_2(%arg0: i32) -> (i32, i32) {
    %c0_i32 = arith.constant 0 : i32
    %c0_i32_0 = arith.constant 0 : i32
    %c0_i32_1 = arith.constant 0 : i32
    return %c0_i32, %c0_i32_0 : i32, i32
  }
  func.func @transform_3(%arg0: i32) -> (i32, i32) {
    %c0_i32 = arith.constant 0 : i32
    %c0_i32_0 = arith.constant 0 : i32
    %c0_i32_1 = arith.constant 0 : i32
    return %c0_i32, %c0_i32_0 : i32, i32
  }
  func.func @transform_4(%arg0: i32) -> (i32, i32) {
    %c0_i32 = arith.constant 0 : i32
    %c0_i32_0 = arith.constant 0 : i32
    %c0_i32_1 = arith.constant 0 : i32
    return %c0_i32, %c0_i32_0 : i32, i32
  }
  func.func @transform_5(%arg0: i32) -> (i32, i32, i32) {
    %c0_i32 = arith.constant 0 : i32
    %c0_i32_0 = arith.constant 0 : i32
    %c0_i32_1 = arith.constant 0 : i32
    return %arg0, %c0_i32, %c0_i32_0 : i32, i32, i32
  }
  func.func @transform_6(%arg0: i32) -> (i32, i32, i32) {
    %c0_i32 = arith.constant 0 : i32
    %c0_i32_0 = arith.constant 0 : i32
    %c0_i32_1 = arith.constant 0 : i32
    return %arg0, %c0_i32, %c0_i32_0 : i32, i32, i32
  }
  func.func @transform_7(%arg0: i32) -> (i32, i32, i32) {
    %c0_i32 = arith.constant 0 : i32
    %c0_i32_0 = arith.constant 0 : i32
    %c0_i32_1 = arith.constant 0 : i32
    return %arg0, %c0_i32, %c0_i32_0 : i32, i32, i32
  }
  func.func @transform_8(%arg0: i32) -> (i32, i32, i32) {
    %c0_i32 = arith.constant 0 : i32
    %c0_i32_0 = arith.constant 0 : i32
    %c0_i32_1 = arith.constant 0 : i32
    return %arg0, %c0_i32, %c0_i32_0 : i32, i32, i32
  }
  func.func @transform_9(%arg0: i32) -> (i32, i32, i32) {
    %c0_i32 = arith.constant 0 : i32
    %c0_i32_0 = arith.constant 0 : i32
    %c0_i32_1 = arith.constant 0 : i32
    return %arg0, %c0_i32, %c0_i32_0 : i32, i32, i32
  }
  func.func @transform_10(%arg0: i32) -> (i32, i32, i32) {
    %c0_i32 = arith.constant 0 : i32
    %c0_i32_0 = arith.constant 0 : i32
    %c0_i32_1 = arith.constant 0 : i32
    return %arg0, %c0_i32, %c0_i32_0 : i32, i32, i32
  }
  func.func @transform_11(%arg0: i32) -> (i32, i32, i32, i32) {
    %c0_i32 = arith.constant 0 : i32
    %c0_i32_0 = arith.constant 0 : i32
    %c0_i32_1 = arith.constant 0 : i32
    %c0_i32_2 = arith.constant 0 : i32
    return %arg0, %c0_i32, %c0_i32_0, %c0_i32_1 : i32, i32, i32, i32
  }
  func.func @transform_12(%arg0: i32) -> (i32, i32, i32) {
    %c0_i32 = arith.constant 0 : i32
    %c0_i32_0 = arith.constant 0 : i32
    %c0_i32_1 = arith.constant 0 : i32
    return %arg0, %c0_i32, %c0_i32_0 : i32, i32, i32
  }
  func.func @transform_13(%arg0: i32) -> (i32, i32, i32) {
    %c0_i32 = arith.constant 0 : i32
    %c0_i32_0 = arith.constant 0 : i32
    %c0_i32_1 = arith.constant 0 : i32
    return %arg0, %c0_i32, %c0_i32_0 : i32, i32, i32
  }
  func.func @transform_14(%arg0: i32) -> (i32, i32, i32) {
    %c0_i32 = arith.constant 0 : i32
    %c0_i32_0 = arith.constant 0 : i32
    %c0_i32_1 = arith.constant 0 : i32
    return %arg0, %c0_i32, %c0_i32_0 : i32, i32, i32
  }
  func.func @transform_15(%arg0: i32) -> (i32, i32, i32) {
    %c0_i32 = arith.constant 0 : i32
    %c0_i32_0 = arith.constant 0 : i32
    %c0_i32_1 = arith.constant 0 : i32
    return %arg0, %c0_i32, %c0_i32_0 : i32, i32, i32
  }
  func.func @transform_16(%arg0: i32) -> (i32, i32, i32) {
    %c0_i32 = arith.constant 0 : i32
    %c0_i32_0 = arith.constant 0 : i32
    %c0_i32_1 = arith.constant 0 : i32
    return %arg0, %c0_i32, %c0_i32_0 : i32, i32, i32
  }
  func.func @transform_17(%arg0: i32) -> (i32, i32) {
    %c0_i32 = arith.constant 0 : i32
    %c0_i32_0 = arith.constant 0 : i32
    %c0_i32_1 = arith.constant 0 : i32
    return %c0_i32, %c0_i32_0 : i32, i32
  }
}

</mosaic_0001>

<llo_original>
// kernel: encoder_forward.1
$region0: #{encoder_forward.1}
  #allocation0 [shape = 'u32[]', space=smem, size = 0x4, offset = 0x4, fixed_abs, tag = 'smem constant byte address 0x4 - core index']
  #allocation1 [shape = 'u32[144,128]{1,0:T(1,128)}', space=vmem, size = 0x12000, scoped, tag = 'internal scratch']
  #allocation2 [shape = 'f32[32,128]{1,0:T(8,128)}', space=vmem, size = 0x4000, scoped, tag = 'scratch operand']
  %s0 = inlined_call_operand.vmem [shape: f32[32,128], index: 0, kind: input, shape index: {}]
  %s1 = inlined_call_operand.vmem [shape: f32[1,32], index: 1, kind: input, shape index: {}]
  %s2 = inlined_call_operand.vmem [shape: f32[32,1], index: 2, kind: input, shape index: {}]
  %s3 = inlined_call_operand.vmem [shape: f32[32,1], index: 3, kind: input, shape index: {}]
  %s4 = inlined_call_operand.vmem [shape: f32[32,1], index: 4, kind: input, shape index: {}]
  %s5 = inlined_call_operand.vmem [shape: bf16[2,128,384], index: 5, kind: input, shape index: {}]
  %s6 = inlined_call_operand.vmem [shape: f32[2,1,384], index: 6, kind: input, shape index: {}]
  %s7 = inlined_call_operand.vmem [shape: bf16[2,128,128], index: 7, kind: input, shape index: {}]
  %s8 = inlined_call_operand.vmem [shape: f32[2,1,128], index: 8, kind: input, shape index: {}]
  %s9 = inlined_call_operand.vmem [shape: f32[2,1,128], index: 9, kind: input, shape index: {}]
  %s10 = inlined_call_operand.vmem [shape: f32[2,1,128], index: 10, kind: input, shape index: {}]
  %s11 = inlined_call_operand.vmem [shape: bf16[2,9,128,256], index: 11, kind: input, shape index: {}]
  %s12 = inlined_call_operand.vmem [shape: f32[2,1,256], index: 12, kind: input, shape index: {}]
  %s13 = inlined_call_operand.vmem [shape: bf16[2,256,128], index: 13, kind: input, shape index: {}]
  %s14 = inlined_call_operand.vmem [shape: f32[2,1,128], index: 14, kind: input, shape index: {}]
  %s15 = inlined_call_operand.vmem [shape: f32[2,1,128], index: 15, kind: input, shape index: {}]
  %s16 = inlined_call_operand.vmem [shape: f32[2,1,128], index: 16, kind: input, shape index: {}]
  %s17 = inlined_call_operand.hbm [shape: f32[32,128], index: 17, kind: output, shape index: {}]
  %s18 = sld [smem:[#allocation0]]
  $region109: #{encoder_forward.1} parent=0
    _
  %s20 = ssub.s32 1, %s18
  %s21 = scalar_select 0, %s20, %s18
  $region1: #{encoder_forward.1} parent=0
    #allocation3 [shape = 'u8[16384]{0}', space=vmem, size = 0x4000, scoped, tag = 'output window, operand 0, single buffered']
    #allocation4 [shape = 's32[2]{0}', space=sflag, size = 0x8, scoped, tag = 'scoped memory for encoder_forward.1']
    %22 = vsyncpa [#allocation4], 0
    loop: start=0, step=1, limit=4
    $region2: #{encoder_forward.1} parent=1 // loop_pre_header
      _
    $region3: #{encoder_forward.1} parent=1 // loop_header
      %s24 = sphi 0, %s28
      %p25 = scmp.ge.s32.totalorder %s24, 4
      %s32 = sphi 0, %s32
      %s34 = sphi 0, %s32
      %s35 = sphi 0, %s34
      %s49 = sphi 0, %s35
      %s53 = sphi 0, %s53
      %s55 = sphi 0, %s53
      %s56 = sphi 0, %s55
      %s70 = sphi 0, %s56
      %s74 = sphi 0, %s74
      %s76 = sphi 0, %s74
      %s77 = sphi 0, %s76
      %s91 = sphi 0, %s77
      %s95 = sphi 0, %s95
      %s97 = sphi 0, %s95
      %s98 = sphi 0, %s97
      %s112 = sphi 0, %s98
      %s116 = sphi 0, %s116
      %s118 = sphi 0, %s116
      %s119 = sphi 0, %s118
      %s133 = sphi 0, %s119
      %s139 = sphi 0, %s141
      %s142 = sphi 0, %s139
      %s143 = sphi 0, %s142
      %s159 = sphi 0, %s143
      %s165 = sphi 0, %s167
      %s168 = sphi 0, %s165
      %s169 = sphi 0, %s168
      %s185 = sphi 0, %s169
      %s191 = sphi 0, %s193
      %s194 = sphi 0, %s191
      %s195 = sphi 0, %s194
      %s211 = sphi 0, %s195
      %s217 = sphi 0, %s219
      %s220 = sphi 0, %s217
      %s221 = sphi 0, %s220
      %s237 = sphi 0, %s221
      %s243 = sphi 0, %s245
      %s246 = sphi 0, %s243
      %s247 = sphi 0, %s246
      %s263 = sphi 0, %s247
      %s269 = sphi 0, %s271
      %s272 = sphi 0, %s269
      %s273 = sphi 0, %s272
      %s289 = sphi 0, %s273
      %s295 = sphi 0, %s297
      %s298 = sphi 0, %s295
      %s299 = sphi 0, %s298
      %s315 = sphi 0, %s299
      %s321 = sphi 0, %s323
      %s324 = sphi 0, %s321
      %s325 = sphi 0, %s324
      %s341 = sphi 0, %s325
      %s347 = sphi 0, %s349
      %s350 = sphi 0, %s347
      %s351 = sphi 0, %s350
      %s367 = sphi 0, %s351
      %s373 = sphi 0, %s375
      %s376 = sphi 0, %s373
      %s377 = sphi 0, %s376
      %s393 = sphi 0, %s377
      %s399 = sphi 0, %s401
      %s402 = sphi 0, %s399
      %s403 = sphi 0, %s402
      %s419 = sphi 0, %s403
      %s425 = sphi 0, %s427
      %s428 = sphi 0, %s425
      %s429 = sphi 0, %s428
      %s445 = sphi 0, %s429
      %s449 = sphi 0, %s449
      %s451 = sphi 0, %s449
      %s452 = sphi 0, %s451
      %s466 = sphi 0, %s452
    $region4: #{encoder_forward.1} parent=1 // loop_header_branch
      %27 = sbr.rel (%p25) target = $region8
    $region5: #{encoder_forward.1} parent=1 // loop_body
      %s29 = ssub.s32 %s24, 1
      %s30 = ssub.s32 %s24, 2
      %s31 = sadd.s32 %s24, 1
      %s33 = sadd.s32 %s32, 1
      %p36 = scmp.eq.s32.totalorder %s24, 1
      %p37 = scmp.ne.s32.totalorder %s32, %s34
      %p38 = scmp.eq.s32.totalorder %s24, 0
      %p39 = por %p37, %p38
      %p40 = scmp.ne.s32.totalorder %s32, %s34
      %p41 = scmp.eq.s32.totalorder %s29, 1
      %p42 = por %p40, %p41
      %p43 = scmp.ne.s32.totalorder %s34, %s35
      %p44 = scmp.eq.s32.totalorder %s29, 0
      %p45 = por %p43, %p44
      %p46 = scmp.ne.s32.totalorder %s34, %s35
      %p47 = scmp.eq.s32.totalorder %s30, 1
      %p48 = por %p46, %p47
      %p50 = scmp.ne.s32.totalorder %s35, %s49
      %p51 = scmp.eq.s32.totalorder %s30, 0
      %p52 = por %p50, %p51
      %s54 = sadd.s32 %s53, 1
      %p57 = scmp.eq.s32.totalorder %s24, 1
      %p58 = scmp.ne.s32.totalorder %s53, %s55
      %p59 = scmp.eq.s32.totalorder %s24, 0
      %p60 = por %p58, %p59
      %p61 = scmp.ne.s32.totalorder %s53, %s55
      %p62 = scmp.eq.s32.totalorder %s29, 1
      %p63 = por %p61, %p62
      %p64 = scmp.ne.s32.totalorder %s55, %s56
      %p65 = scmp.eq.s32.totalorder %s29, 0
      %p66 = por %p64, %p65
      %p67 = scmp.ne.s32.totalorder %s55, %s56
      %p68 = scmp.eq.s32.totalorder %s30, 1
      %p69 = por %p67, %p68
      %p71 = scmp.ne.s32.totalorder %s56, %s70
      %p72 = scmp.eq.s32.totalorder %s30, 0
      %p73 = por %p71, %p72
      %s75 = sadd.s32 %s74, 1
      %p78 = scmp.eq.s32.totalorder %s24, 1
      %p79 = scmp.ne.s32.totalorder %s74, %s76
      %p80 = scmp.eq.s32.totalorder %s24, 0
      %p81 = por %p79, %p80
      %p82 = scmp.ne.s32.totalorder %s74, %s76
      %p83 = scmp.eq.s32.totalorder %s29, 1
      %p84 = por %p82, %p83
      %p85 = scmp.ne.s32.totalorder %s76, %s77
      %p86 = scmp.eq.s32.totalorder %s29, 0
      %p87 = por %p85, %p86
      %p88 = scmp.ne.s32.totalorder %s76, %s77
      %p89 = scmp.eq.s32.totalorder %s30, 1
      %p90 = por %p88, %p89
      %p92 = scmp.ne.s32.totalorder %s77, %s91
      %p93 = scmp.eq.s32.totalorder %s30, 0
      %p94 = por %p92, %p93
      %s96 = sadd.s32 %s95, 1
      %p99 = scmp.eq.s32.totalorder %s24, 1
      %p100 = scmp.ne.s32.totalorder %s95, %s97
      %p101 = scmp.eq.s32.totalorder %s24, 0
      %p102 = por %p100, %p101
      %p103 = scmp.ne.s32.totalorder %s95, %s97
      %p104 = scmp.eq.s32.totalorder %s29, 1
      %p105 = por %p103, %p104
      %p106 = scmp.ne.s32.totalorder %s97, %s98
      %p107 = scmp.eq.s32.totalorder %s29, 0
      %p108 = por %p106, %p107
      %p109 = scmp.ne.s32.totalorder %s97, %s98
      %p110 = scmp.eq.s32.totalorder %s30, 1
      %p111 = por %p109, %p110
      %p113 = scmp.ne.s32.totalorder %s98, %s112
      %p114 = scmp.eq.s32.totalorder %s30, 0
      %p115 = por %p113, %p114
      %s117 = sadd.s32 %s116, 1
      %p120 = scmp.eq.s32.totalorder %s24, 1
      %p121 = scmp.ne.s32.totalorder %s116, %s118
      %p122 = scmp.eq.s32.totalorder %s24, 0
      %p123 = por %p121, %p122
      %p124 = scmp.ne.s32.totalorder %s116, %s118
      %p125 = scmp.eq.s32.totalorder %s29, 1
      %p126 = por %p124, %p125
      %p127 = scmp.ne.s32.totalorder %s118, %s119
      %p128 = scmp.eq.s32.totalorder %s29, 0
      %p129 = por %p127, %p128
      %p130 = scmp.ne.s32.totalorder %s118, %s119
      %p131 = scmp.eq.s32.totalorder %s30, 1
      %p132 = por %p130, %p131
      %p134 = scmp.ne.s32.totalorder %s119, %s133
      %p135 = scmp.eq.s32.totalorder %s30, 0
      %p136 = por %p134, %p135
      %s137 = ssub.s32 %s24, %s31
      %p138 = scmp.eq.s32.totalorder %s137, 0
      %s140 = sadd.s32 %s139, 1
      %s141 = scalar_select %p138, %s139, %s140
      %p144 = pneg %p138
      %p145 = scmp.eq.s32.totalorder %s24, 1
      %p146 = por %p144, %p145
      %p147 = scmp.ne.s32.totalorder %s139, %s142
      %p148 = scmp.eq.s32.totalorder %s24, 0
      %p149 = por %p147, %p148
      %p150 = scmp.ne.s32.totalorder %s139, %s142
      %p151 = scmp.eq.s32.totalorder %s29, 1
      %p152 = por %p150, %p151
      %p153 = scmp.ne.s32.totalorder %s142, %s143
      %p154 = scmp.eq.s32.totalorder %s29, 0
      %p155 = por %p153, %p154
      %p156 = scmp.ne.s32.totalorder %s142, %s143
      %p157 = scmp.eq.s32.totalorder %s30, 1
      %p158 = por %p156, %p157
      %p160 = scmp.ne.s32.totalorder %s143, %s159
      %p161 = scmp.eq.s32.totalorder %s30, 0
      %p162 = por %p160, %p161
      %s163 = ssub.s32 %s24, %s31
      %p164 = scmp.eq.s32.totalorder %s163, 0
      %s166 = sadd.s32 %s165, 1
      %s167 = scalar_select %p164, %s165, %s166
      %p170 = pneg %p164
      %p171 = scmp.eq.s32.totalorder %s24, 1
      %p172 = por %p170, %p171
      %p173 = scmp.ne.s32.totalorder %s165, %s168
      %p174 = scmp.eq.s32.totalorder %s24, 0
      %p175 = por %p173, %p174
      %p176 = scmp.ne.s32.totalorder %s165, %s168
      %p177 = scmp.eq.s32.totalorder %s29, 1
      %p178 = por %p176, %p177
      %p179 = scmp.ne.s32.totalorder %s168, %s169
      %p180 = scmp.eq.s32.totalorder %s29, 0
      %p181 = por %p179, %p180
      %p182 = scmp.ne.s32.totalorder %s168, %s169
      %p183 = scmp.eq.s32.totalorder %s30, 1
      %p184 = por %p182, %p183
      %p186 = scmp.ne.s32.totalorder %s169, %s185
      %p187 = scmp.eq.s32.totalorder %s30, 0
      %p188 = por %p186, %p187
      %s189 = ssub.s32 %s24, %s31
      %p190 = scmp.eq.s32.totalorder %s189, 0
      %s192 = sadd.s32 %s191, 1
      %s193 = scalar_select %p190, %s191, %s192
      %p196 = pneg %p190
      %p197 = scmp.eq.s32.totalorder %s24, 1
      %p198 = por %p196, %p197
      %p199 = scmp.ne.s32.totalorder %s191, %s194
      %p200 = scmp.eq.s32.totalorder %s24, 0
      %p201 = por %p199, %p200
      %p202 = scmp.ne.s32.totalorder %s191, %s194
      %p203 = scmp.eq.s32.totalorder %s29, 1
      %p204 = por %p202, %p203
      %p205 = scmp.ne.s32.totalorder %s194, %s195
      %p206 = scmp.eq.s32.totalorder %s29, 0
      %p207 = por %p205, %p206
      %p208 = scmp.ne.s32.totalorder %s194, %s195
      %p209 = scmp.eq.s32.totalorder %s30, 1
      %p210 = por %p208, %p209
      %p212 = scmp.ne.s32.totalorder %s195, %s211
      %p213 = scmp.eq.s32.totalorder %s30, 0
      %p214 = por %p212, %p213
      %s215 = ssub.s32 %s24, %s31
      %p216 = scmp.eq.s32.totalorder %s215, 0
      %s218 = sadd.s32 %s217, 1
      %s219 = scalar_select %p216, %s217, %s218
      %p222 = pneg %p216
      %p223 = scmp.eq.s32.totalorder %s24, 1
      %p224 = por %p222, %p223
      %p225 = scmp.ne.s32.totalorder %s217, %s220
      %p226 = scmp.eq.s32.totalorder %s24, 0
      %p227 = por %p225, %p226
      %p228 = scmp.ne.s32.totalorder %s217, %s220
      %p229 = scmp.eq.s32.totalorder %s29, 1
      %p230 = por %p228, %p229
      %p231 = scmp.ne.s32.totalorder %s220, %s221
      %p232 = scmp.eq.s32.totalorder %s29, 0
      %p233 = por %p231, %p232
      %p234 = scmp.ne.s32.totalorder %s220, %s221
      %p235 = scmp.eq.s32.totalorder %s30, 1
      %p236 = por %p234, %p235
      %p238 = scmp.ne.s32.totalorder %s221, %s237
      %p239 = scmp.eq.s32.totalorder %s30, 0
      %p240 = por %p238, %p239
      %s241 = ssub.s32 %s24, %s31
      %p242 = scmp.eq.s32.totalorder %s241, 0
      %s244 = sadd.s32 %s243, 1
      %s245 = scalar_select %p242, %s243, %s244
      %p248 = pneg %p242
      %p249 = scmp.eq.s32.totalorder %s24, 1
      %p250 = por %p248, %p249
      %p251 = scmp.ne.s32.totalorder %s243, %s246
      %p252 = scmp.eq.s32.totalorder %s24, 0
      %p253 = por %p251, %p252
      %p254 = scmp.ne.s32.totalorder %s243, %s246
      %p255 = scmp.eq.s32.totalorder %s29, 1
      %p256 = por %p254, %p255
      %p257 = scmp.ne.s32.totalorder %s246, %s247
      %p258 = scmp.eq.s32.totalorder %s29, 0
      %p259 = por %p257, %p258
      %p260 = scmp.ne.s32.totalorder %s246, %s247
      %p261 = scmp.eq.s32.totalorder %s30, 1
      %p262 = por %p260, %p261
      %p264 = scmp.ne.s32.totalorder %s247, %s263
      %p265 = scmp.eq.s32.totalorder %s30, 0
      %p266 = por %p264, %p265
      %s267 = ssub.s32 %s24, %s31
      %p268 = scmp.eq.s32.totalorder %s267, 0
      %s270 = sadd.s32 %s269, 1
      %s271 = scalar_select %p268, %s269, %s270
      %p274 = pneg %p268
      %p275 = scmp.eq.s32.totalorder %s24, 1
      %p276 = por %p274, %p275
      %p277 = scmp.ne.s32.totalorder %s269, %s272
      %p278 = scmp.eq.s32.totalorder %s24, 0
      %p279 = por %p277, %p278
      %p280 = scmp.ne.s32.totalorder %s269, %s272
      %p281 = scmp.eq.s32.totalorder %s29, 1
      %p282 = por %p280, %p281
      %p283 = scmp.ne.s32.totalorder %s272, %s273
      %p284 = scmp.eq.s32.totalorder %s29, 0
      %p285 = por %p283, %p284
      %p286 = scmp.ne.s32.totalorder %s272, %s273
      %p287 = scmp.eq.s32.totalorder %s30, 1
      %p288 = por %p286, %p287
      %p290 = scmp.ne.s32.totalorder %s273, %s289
      %p291 = scmp.eq.s32.totalorder %s30, 0
      %p292 = por %p290, %p291
      %s293 = ssub.s32 %s24, %s31
      %p294 = scmp.eq.s32.totalorder %s293, 0
      %s296 = sadd.s32 %s295, 1
      %s297 = scalar_select %p294, %s295, %s296
      %p300 = pneg %p294
      %p301 = scmp.eq.s32.totalorder %s24, 1
      %p302 = por %p300, %p301
      %p303 = scmp.ne.s32.totalorder %s295, %s298
      %p304 = scmp.eq.s32.totalorder %s24, 0
      %p305 = por %p303, %p304
      %p306 = scmp.ne.s32.totalorder %s295, %s298
      %p307 = scmp.eq.s32.totalorder %s29, 1
      %p308 = por %p306, %p307
      %p309 = scmp.ne.s32.totalorder %s298, %s299
      %p310 = scmp.eq.s32.totalorder %s29, 0
      %p311 = por %p309, %p310
      %p312 = scmp.ne.s32.totalorder %s298, %s299
      %p313 = scmp.eq.s32.totalorder %s30, 1
      %p314 = por %p312, %p313
      %p316 = scmp.ne.s32.totalorder %s299, %s315
      %p317 = scmp.eq.s32.totalorder %s30, 0
      %p318 = por %p316, %p317
      %s319 = ssub.s32 %s24, %s31
      %p320 = scmp.eq.s32.totalorder %s319, 0
      %s322 = sadd.s32 %s321, 1
      %s323 = scalar_select %p320, %s321, %s322
      %p326 = pneg %p320
      %p327 = scmp.eq.s32.totalorder %s24, 1
      %p328 = por %p326, %p327
      %p329 = scmp.ne.s32.totalorder %s321, %s324
      %p330 = scmp.eq.s32.totalorder %s24, 0
      %p331 = por %p329, %p330
      %p332 = scmp.ne.s32.totalorder %s321, %s324
      %p333 = scmp.eq.s32.totalorder %s29, 1
      %p334 = por %p332, %p333
      %p335 = scmp.ne.s32.totalorder %s324, %s325
      %p336 = scmp.eq.s32.totalorder %s29, 0
      %p337 = por %p335, %p336
      %p338 = scmp.ne.s32.totalorder %s324, %s325
      %p339 = scmp.eq.s32.totalorder %s30, 1
      %p340 = por %p338, %p339
      %p342 = scmp.ne.s32.totalorder %s325, %s341
      %p343 = scmp.eq.s32.totalorder %s30, 0
      %p344 = por %p342, %p343
      %s345 = ssub.s32 %s24, %s31
      %p346 = scmp.eq.s32.totalorder %s345, 0
      %s348 = sadd.s32 %s347, 1
      %s349 = scalar_select %p346, %s347, %s348
      %p352 = pneg %p346
      %p353 = scmp.eq.s32.totalorder %s24, 1
      %p354 = por %p352, %p353
      %p355 = scmp.ne.s32.totalorder %s347, %s350
      %p356 = scmp.eq.s32.totalorder %s24, 0
      %p357 = por %p355, %p356
      %p358 = scmp.ne.s32.totalorder %s347, %s350
      %p359 = scmp.eq.s32.totalorder %s29, 1
      %p360 = por %p358, %p359
      %p361 = scmp.ne.s32.totalorder %s350, %s351
      %p362 = scmp.eq.s32.totalorder %s29, 0
      %p363 = por %p361, %p362
      %p364 = scmp.ne.s32.totalorder %s350, %s351
      %p365 = scmp.eq.s32.totalorder %s30, 1
      %p366 = por %p364, %p365
      %p368 = scmp.ne.s32.totalorder %s351, %s367
      %p369 = scmp.eq.s32.totalorder %s30, 0
      %p370 = por %p368, %p369
      %s371 = ssub.s32 %s24, %s31
      %p372 = scmp.eq.s32.totalorder %s371, 0
      %s374 = sadd.s32 %s373, 1
      %s375 = scalar_select %p372, %s373, %s374
      %p378 = pneg %p372
      %p379 = scmp.eq.s32.totalorder %s24, 1
      %p380 = por %p378, %p379
      %p381 = scmp.ne.s32.totalorder %s373, %s376
      %p382 = scmp.eq.s32.totalorder %s24, 0
      %p383 = por %p381, %p382
      %p384 = scmp.ne.s32.totalorder %s373, %s376
      %p385 = scmp.eq.s32.totalorder %s29, 1
      %p386 = por %p384, %p385
      %p387 = scmp.ne.s32.totalorder %s376, %s377
      %p388 = scmp.eq.s32.totalorder %s29, 0
      %p389 = por %p387, %p388
      %p390 = scmp.ne.s32.totalorder %s376, %s377
      %p391 = scmp.eq.s32.totalorder %s30, 1
      %p392 = por %p390, %p391
      %p394 = scmp.ne.s32.totalorder %s377, %s393
      %p395 = scmp.eq.s32.totalorder %s30, 0
      %p396 = por %p394, %p395
      %s397 = ssub.s32 %s24, %s31
      %p398 = scmp.eq.s32.totalorder %s397, 0
      %s400 = sadd.s32 %s399, 1
      %s401 = scalar_select %p398, %s399, %s400
      %p404 = pneg %p398
      %p405 = scmp.eq.s32.totalorder %s24, 1
      %p406 = por %p404, %p405
      %p407 = scmp.ne.s32.totalorder %s399, %s402
      %p408 = scmp.eq.s32.totalorder %s24, 0
      %p409 = por %p407, %p408
      %p410 = scmp.ne.s32.totalorder %s399, %s402
      %p411 = scmp.eq.s32.totalorder %s29, 1
      %p412 = por %p410, %p411
      %p413 = scmp.ne.s32.totalorder %s402, %s403
      %p414 = scmp.eq.s32.totalorder %s29, 0
      %p415 = por %p413, %p414
      %p416 = scmp.ne.s32.totalorder %s402, %s403
      %p417 = scmp.eq.s32.totalorder %s30, 1
      %p418 = por %p416, %p417
      %p420 = scmp.ne.s32.totalorder %s403, %s419
      %p421 = scmp.eq.s32.totalorder %s30, 0
      %p422 = por %p420, %p421
      %s423 = ssub.s32 %s24, %s31
      %p424 = scmp.eq.s32.totalorder %s423, 0
      %s426 = sadd.s32 %s425, 1
      %s427 = scalar_select %p424, %s425, %s426
      %p430 = pneg %p424
      %p431 = scmp.eq.s32.totalorder %s24, 1
      %p432 = por %p430, %p431
      %p433 = scmp.ne.s32.totalorder %s425, %s428
      %p434 = scmp.eq.s32.totalorder %s24, 0
      %p435 = por %p433, %p434
      %p436 = scmp.ne.s32.totalorder %s425, %s428
      %p437 = scmp.eq.s32.totalorder %s29, 1
      %p438 = por %p436, %p437
      %p439 = scmp.ne.s32.totalorder %s428, %s429
      %p440 = scmp.eq.s32.totalorder %s29, 0
      %p441 = por %p439, %p440
      %p442 = scmp.ne.s32.totalorder %s428, %s429
      %p443 = scmp.eq.s32.totalorder %s30, 1
      %p444 = por %p442, %p443
      %p446 = scmp.ne.s32.totalorder %s429, %s445
      %p447 = scmp.eq.s32.totalorder %s30, 0
      %p448 = por %p446, %p447
      %s450 = sadd.s32 %s449, 1
      %p453 = scmp.eq.s32.totalorder %s24, 1
      %p454 = scmp.ne.s32.totalorder %s449, %s451
      %p455 = scmp.eq.s32.totalorder %s24, 0
      %p456 = por %p454, %p455
      %p457 = scmp.ne.s32.totalorder %s449, %s451
      %p458 = scmp.eq.s32.totalorder %s29, 1
      %p459 = por %p457, %p458
      %p460 = scmp.ne.s32.totalorder %s451, %s452
      %p461 = scmp.eq.s32.totalorder %s29, 0
      %p462 = por %p460, %p461
      %p463 = scmp.ne.s32.totalorder %s451, %s452
      %p464 = scmp.eq.s32.totalorder %s30, 1
      %p465 = por %p463, %p464
      %p467 = scmp.ne.s32.totalorder %s452, %s466
      %p468 = scmp.eq.s32.totalorder %s30, 0
      %p469 = por %p467, %p468
      %p470 = scmp.le.s32.totalorder 1, %s24
      %p471 = scmp.lt.s32.totalorder %s24, 3
      %p472 = pnand %p470, %p471
      %p473 = pneg %p472
      // Predicated region
      $region9: #{encoder_forward.1} parent=5 // pred_check
        _
      $region10: #{encoder_forward.1} parent=5 // pred_check_branch
        %475 = sbr.rel (%p472) target = $region12
      $region11: #{encoder_forward.1} parent=5 // pred_region
        %s476 = ssub.s32 %s24, 1
        // Predicated region
        $region13: #{encoder_forward.1} parent=11 // pred_check
          %p477 = pneg %p45
        $region14: #{encoder_forward.1} parent=11 // pred_check_branch
          %479 = sbr.rel (%p477) target = $region16
        $region15: #{encoder_forward.1} parent=11 // pred_region
          _
        $region16: #{encoder_forward.1} parent=11 // pred_fallthru
          _
        // Predicated region
        $region17: #{encoder_forward.1} parent=11 // pred_check
          %p480 = pneg %p66
        $region18: #{encoder_forward.1} parent=11 // pred_check_branch
          %482 = sbr.rel (%p480) target = $region20
        $region19: #{encoder_forward.1} parent=11 // pred_region
          _
        $region20: #{encoder_forward.1} parent=11 // pred_fallthru
          _
        // Predicated region
        $region21: #{encoder_forward.1} parent=11 // pred_check
          %p483 = pneg %p87
        $region22: #{encoder_forward.1} parent=11 // pred_check_branch
          %485 = sbr.rel (%p483) target = $region24
        $region23: #{encoder_forward.1} parent=11 // pred_region
          _
        $region24: #{encoder_forward.1} parent=11 // pred_fallthru
          _
        // Predicated region
        $region25: #{encoder_forward.1} parent=11 // pred_check
          %p486 = pneg %p108
        $region26: #{encoder_forward.1} parent=11 // pred_check_branch
          %488 = sbr.rel (%p486) target = $region28
        $region27: #{encoder_forward.1} parent=11 // pred_region
          _
        $region28: #{encoder_forward.1} parent=11 // pred_fallthru
          _
        // Predicated region
        $region29: #{encoder_forward.1} parent=11 // pred_check
          %p489 = pneg %p129
        $region30: #{encoder_forward.1} parent=11 // pred_check_branch
          %491 = sbr.rel (%p489) target = $region32
        $region31: #{encoder_forward.1} parent=11 // pred_region
          _
        $region32: #{encoder_forward.1} parent=11 // pred_fallthru
          _
      $region12: #{encoder_forward.1} parent=5 // pred_fallthru
        _
      %p492 = scmp.lt.s32.totalorder %s24, 2
      // Predicated region
      $region33: #{encoder_forward.1} parent=5 // pred_check
        %p493 = pneg %p492
      $region34: #{encoder_forward.1} parent=5 // pred_check_branch
        %495 = sbr.rel (%p493) target = $region36
      $region35: #{encoder_forward.1} parent=5 // pred_region
        // Predicated region
        $region37: #{encoder_forward.1} parent=35 // pred_check
          %p496 = pneg %p149
        $region38: #{encoder_forward.1} parent=35 // pred_check_branch
          %498 = sbr.rel (%p496) target = $region40
        $region39: #{encoder_forward.1} parent=35 // pred_region
          %p499 = scmp.lt.s32.totalorder %s24, 1
          %s500 = scalar_select %p499, %s24, 1
          %s501 = smul.addr %s500, 48
          %s502 = smul.addr %s501, 4
          %s503 = scalar_lea.vmem %s5, %s502
        $region40: #{encoder_forward.1} parent=35 // pred_fallthru
          _
        // Predicated region
        $region41: #{encoder_forward.1} parent=35 // pred_check
          %p504 = pneg %p175
        $region42: #{encoder_forward.1} parent=35 // pred_check_branch
          %506 = sbr.rel (%p504) target = $region44
        $region43: #{encoder_forward.1} parent=35 // pred_region
          %p507 = scmp.lt.s32.totalorder %s24, 1
          %s508 = scalar_select %p507, %s24, 1
          %s509 = smul.addr %s508, 3
          %s510 = scalar_lea.vmem %s6, %s509
        $region44: #{encoder_forward.1} parent=35 // pred_fallthru
          _
        // Predicated region
        $region45: #{encoder_forward.1} parent=35 // pred_check
          %p511 = pneg %p201
        $region46: #{encoder_forward.1} parent=35 // pred_check_branch
          %513 = sbr.rel (%p511) target = $region48
        $region47: #{encoder_forward.1} parent=35 // pred_region
          %p514 = scmp.lt.s32.totalorder %s24, 1
          %s515 = scalar_select %p514, %s24, 1
          %s516 = smul.addr %s515, 16
          %s517 = smul.addr %s516, 4
          %s518 = scalar_lea.vmem %s7, %s517
        $region48: #{encoder_forward.1} parent=35 // pred_fallthru
          _
        // Predicated region
        $region49: #{encoder_forward.1} parent=35 // pred_check
          %p519 = pneg %p227
        $region50: #{encoder_forward.1} parent=35 // pred_check_branch
          %521 = sbr.rel (%p519) target = $region52
        $region51: #{encoder_forward.1} parent=35 // pred_region
          %p522 = scmp.lt.s32.totalorder %s24, 1
          %s523 = scalar_select %p522, %s24, 1
          %s524 = scalar_lea.vmem %s8, %s523
        $region52: #{encoder_forward.1} parent=35 // pred_fallthru
          _
        // Predicated region
        $region53: #{encoder_forward.1} parent=35 // pred_check
          %p525 = pneg %p253
        $region54: #{encoder_forward.1} parent=35 // pred_check_branch
          %527 = sbr.rel (%p525) target = $region56
        $region55: #{encoder_forward.1} parent=35 // pred_region
          %p528 = scmp.lt.s32.totalorder %s24, 1
          %s529 = scalar_select %p528, %s24, 1
          %s530 = scalar_lea.vmem %s9, %s529
        $region56: #{encoder_forward.1} parent=35 // pred_fallthru
          _
        // Predicated region
        $region57: #{encoder_forward.1} parent=35 // pred_check
          %p531 = pneg %p279
        $region58: #{encoder_forward.1} parent=35 // pred_check_branch
          %533 = sbr.rel (%p531) target = $region60
        $region59: #{encoder_forward.1} parent=35 // pred_region
          %p534 = scmp.lt.s32.totalorder %s24, 1
          %s535 = scalar_select %p534, %s24, 1
          %s536 = scalar_lea.vmem %s10, %s535
        $region60: #{encoder_forward.1} parent=35 // pred_fallthru
          _
        // Predicated region
        $region61: #{encoder_forward.1} parent=35 // pred_check
          %p537 = pneg %p305
        $region62: #{encoder_forward.1} parent=35 // pred_check_branch
          %539 = sbr.rel (%p537) target = $region64
        $region63: #{encoder_forward.1} parent=35 // pred_region
          %p540 = scmp.lt.s32.totalorder %s24, 1
          %s541 = scalar_select %p540, %s24, 1
          %s542 = smul.addr %s541, 288
          %s543 = smul.addr %s542, 4
          %s544 = scalar_lea.vmem %s11, %s543
        $region64: #{encoder_forward.1} parent=35 // pred_fallthru
          _
        // Predicated region
        $region65: #{encoder_forward.1} parent=35 // pred_check
          %p545 = pneg %p331
        $region66: #{encoder_forward.1} parent=35 // pred_check_branch
          %547 = sbr.rel (%p545) target = $region68
        $region67: #{encoder_forward.1} parent=35 // pred_region
          %p548 = scmp.lt.s32.totalorder %s24, 1
          %s549 = scalar_select %p548, %s24, 1
          %s550 = smul.addr %s549, 2
          %s551 = scalar_lea.vmem %s12, %s550
        $region68: #{encoder_forward.1} parent=35 // pred_fallthru
          _
        // Predicated region
        $region69: #{encoder_forward.1} parent=35 // pred_check
          %p552 = pneg %p357
        $region70: #{encoder_forward.1} parent=35 // pred_check_branch
          %554 = sbr.rel (%p552) target = $region72
        $region71: #{encoder_forward.1} parent=35 // pred_region
          %p555 = scmp.lt.s32.totalorder %s24, 1
          %s556 = scalar_select %p555, %s24, 1
          %s557 = smul.addr %s556, 32
          %s558 = smul.addr %s557, 4
          %s559 = scalar_lea.vmem %s13, %s558
        $region72: #{encoder_forward.1} parent=35 // pred_fallthru
          _
        // Predicated region
        $region73: #{encoder_forward.1} parent=35 // pred_check
          %p560 = pneg %p383
        $region74: #{encoder_forward.1} parent=35 // pred_check_branch
          %562 = sbr.rel (%p560) target = $region76
        $region75: #{encoder_forward.1} parent=35 // pred_region
          %p563 = scmp.lt.s32.totalorder %s24, 1
          %s564 = scalar_select %p563, %s24, 1
          %s565 = scalar_lea.vmem %s14, %s564
        $region76: #{encoder_forward.1} parent=35 // pred_fallthru
          _
        // Predicated region
        $region77: #{encoder_forward.1} parent=35 // pred_check
          %p566 = pneg %p409
        $region78: #{encoder_forward.1} parent=35 // pred_check_branch
          %568 = sbr.rel (%p566) target = $region80
        $region79: #{encoder_forward.1} parent=35 // pred_region
          %p569 = scmp.lt.s32.totalorder %s24, 1
          %s570 = scalar_select %p569, %s24, 1
          %s571 = scalar_lea.vmem %s15, %s570
        $region80: #{encoder_forward.1} parent=35 // pred_fallthru
          _
        // Predicated region
        $region81: #{encoder_forward.1} parent=35 // pred_check
          %p572 = pneg %p435
        $region82: #{encoder_forward.1} parent=35 // pred_check_branch
          %574 = sbr.rel (%p572) target = $region84
        $region83: #{encoder_forward.1} parent=35 // pred_region
          %p575 = scmp.lt.s32.totalorder %s24, 1
          %s576 = scalar_select %p575, %s24, 1
          %s577 = scalar_lea.vmem %s16, %s576
        $region84: #{encoder_forward.1} parent=35 // pred_fallthru
          _
      $region36: #{encoder_forward.1} parent=5 // pred_fallthru
        _
      %p578 = scmp.le.s32.totalorder 1, %s24
      %p579 = scmp.lt.s32.totalorder %s24, 3
      %p580 = pnand %p578, %p579
      %p581 = pneg %p580
      // Predicated region
      $region85: #{encoder_forward.1} parent=5 // pred_check
        _
      $region86: #{encoder_forward.1} parent=5 // pred_check_branch
        %583 = sbr.rel (%p580) target = $region88
      $region87: #{encoder_forward.1} parent=5 // pred_region
        %s584 = ssub.s32 %s24, 1
        %p585 = pneg %p45
        %p586 = pneg %p42
        %p587 = pneg %p66
        %p588 = pneg %p63
        %p589 = pneg %p87
        %p590 = pneg %p84
        %p591 = pneg %p108
        %p592 = pneg %p105
        %p593 = pneg %p129
        %p594 = pneg %p126
        %p595 = scmp.lt.s32.totalorder %s29, 1
        %s596 = scalar_select %p595, %s29, 1
        %s597 = smul.addr %s596, 48
        %s598 = smul.addr %s597, 4
        %s599 = scalar_lea.vmem %s5, %s598
        %p600 = pneg %p155
        %p601 = pneg %p152
        %p602 = scmp.lt.s32.totalorder %s29, 1
        %s603 = scalar_select %p602, %s29, 1
        %s604 = smul.addr %s603, 3
        %s605 = scalar_lea.vmem %s6, %s604
        %p606 = pneg %p181
        %p607 = pneg %p178
        %p608 = scmp.lt.s32.totalorder %s29, 1
        %s609 = scalar_select %p608, %s29, 1
        %s610 = smul.addr %s609, 16
        %s611 = smul.addr %s610, 4
        %s612 = scalar_lea.vmem %s7, %s611
        %p613 = pneg %p207
        %p614 = pneg %p204
        %p615 = scmp.lt.s32.totalorder %s29, 1
        %s616 = scalar_select %p615, %s29, 1
        %s617 = scalar_lea.vmem %s8, %s616
        %p618 = pneg %p233
        %p619 = pneg %p230
        %p620 = scmp.lt.s32.totalorder %s29, 1
        %s621 = scalar_select %p620, %s29, 1
        %s622 = scalar_lea.vmem %s9, %s621
        %p623 = pneg %p259
        %p624 = pneg %p256
        %p625 = scmp.lt.s32.totalorder %s29, 1
        %s626 = scalar_select %p625, %s29, 1
        %s627 = scalar_lea.vmem %s10, %s626
        %p628 = pneg %p285
        %p629 = pneg %p282
        %p630 = scmp.lt.s32.totalorder %s29, 1
        %s631 = scalar_select %p630, %s29, 1
        %s632 = smul.addr %s631, 288
        %s633 = smul.addr %s632, 4
        %s634 = scalar_lea.vmem %s11, %s633
        %p635 = pneg %p311
        %p636 = pneg %p308
        %p637 = scmp.lt.s32.totalorder %s29, 1
        %s638 = scalar_select %p637, %s29, 1
        %s639 = smul.addr %s638, 2
        %s640 = scalar_lea.vmem %s12, %s639
        %p641 = pneg %p337
        %p642 = pneg %p334
        %p643 = scmp.lt.s32.totalorder %s29, 1
        %s644 = scalar_select %p643, %s29, 1
        %s645 = smul.addr %s644, 32
        %s646 = smul.addr %s645, 4
        %s647 = scalar_lea.vmem %s13, %s646
        %p648 = pneg %p363
        %p649 = pneg %p360
        %p650 = scmp.lt.s32.totalorder %s29, 1
        %s651 = scalar_select %p650, %s29, 1
        %s652 = scalar_lea.vmem %s14, %s651
        %p653 = pneg %p389
        %p654 = pneg %p386
        %p655 = scmp.lt.s32.totalorder %s29, 1
        %s656 = scalar_select %p655, %s29, 1
        %s657 = scalar_lea.vmem %s15, %s656
        %p658 = pneg %p415
        %p659 = pneg %p412
        %p660 = scmp.lt.s32.totalorder %s29, 1
        %s661 = scalar_select %p660, %s29, 1
        %s662 = scalar_lea.vmem %s16, %s661
        %p663 = pneg %p441
        %p664 = pneg %p438
        %p665 = pneg %p462
        %p666 = pneg %p459
        %p667 = scmp.lt.s32.totalorder %s29, 1
        %s668 = scalar_select %p667, %s29, 1
        %s669 = smul.addr %s668, 48
        %s670 = smul.addr %s669, 4
        %s671 = scalar_lea.vmem %s5, %s670
        %p672 = scmp.lt.s32.totalorder %s29, 1
        %s673 = scalar_select %p672, %s29, 1
        %s674 = smul.addr %s673, 3
        %s675 = scalar_lea.vmem %s6, %s674
        %p676 = scmp.lt.s32.totalorder %s29, 1
        %s677 = scalar_select %p676, %s29, 1
        %s678 = smul.addr %s677, 16
        %s679 = smul.addr %s678, 4
        %s680 = scalar_lea.vmem %s7, %s679
        %p681 = scmp.lt.s32.totalorder %s29, 1
        %s682 = scalar_select %p681, %s29, 1
        %s683 = scalar_lea.vmem %s8, %s682
        %p684 = scmp.lt.s32.totalorder %s29, 1
        %s685 = scalar_select %p684, %s29, 1
        %s686 = scalar_lea.vmem %s9, %s685
        %p687 = scmp.lt.s32.totalorder %s29, 1
        %s688 = scalar_select %p687, %s29, 1
        %s689 = scalar_lea.vmem %s10, %s688
        %p690 = scmp.lt.s32.totalorder %s29, 1
        %s691 = scalar_select %p690, %s29, 1
        %s692 = smul.addr %s691, 288
        %s693 = smul.addr %s692, 4
        %s694 = scalar_lea.vmem %s11, %s693
        %p695 = scmp.lt.s32.totalorder %s29, 1
        %s696 = scalar_select %p695, %s29, 1
        %s697 = smul.addr %s696, 2
        %s698 = scalar_lea.vmem %s12, %s697
        %p699 = scmp.lt.s32.totalorder %s29, 1
        %s700 = scalar_select %p699, %s29, 1
        %s701 = smul.addr %s700, 32
        %s702 = smul.addr %s701, 4
        %s703 = scalar_lea.vmem %s13, %s702
        %p704 = scmp.lt.s32.totalorder %s29, 1
        %s705 = scalar_select %p704, %s29, 1
        %s706 = scalar_lea.vmem %s14, %s705
        %p707 = scmp.lt.s32.totalorder %s29, 1
        %s708 = scalar_select %p707, %s29, 1
        %s709 = scalar_lea.vmem %s15, %s708
        %p710 = scmp.lt.s32.totalorder %s29, 1
        %s711 = scalar_select %p710, %s29, 1
        %s712 = scalar_lea.vmem %s16, %s711
        %p714 = scmp.eq.s32.totalorder %s29, 0
        // Predicated region
        $region89: #{encoder_forward.1} parent=87 // pred_check
          %p715 = pneg %p714
        $region90: #{encoder_forward.1} parent=87 // pred_check_branch
          %717 = sbr.rel (%p715) target = $region92
        $region91: #{encoder_forward.1} parent=87 // pred_region
          %v718 = vld [vmem:[%s0] sm:$0xff]
          %v719 = vld [vmem:[%s0 + $0x8] sm:$0xff]
          %v720 = vld [vmem:[%s0 + $0x10] sm:$0xff]
          %v721 = vld [vmem:[%s0 + $0x18] sm:$0xff]
          %722 = vst [vmem:[#allocation2] sm:$0xff] %v718
          %723 = vst [vmem:[#allocation2 + $0x8] sm:$0xff] %v719
          %724 = vst [vmem:[#allocation2 + $0x10] sm:$0xff] %v720
          %725 = vst [vmem:[#allocation2 + $0x18] sm:$0xff] %v721
        $region92: #{encoder_forward.1} parent=87 // pred_fallthru
          _
        %v726 = vld [vmem:[#allocation2] sm:$0xff]
        %v727 = vld [vmem:[#allocation2 + $0x8] sm:$0xff]
        %v728 = vld [vmem:[#allocation2 + $0x10] sm:$0xff]
        %v729 = vld [vmem:[#allocation2 + $0x18] sm:$0xff]
        %v730 = vld [vmem:[%s4] sm:$0xff]
        %v731 = vld [vmem:[%s4 + $0x8] sm:$0xff]
        %v732 = vld [vmem:[%s4 + $0x10] sm:$0xff]
        %v733 = vld [vmem:[%s4 + $0x18] sm:$0xff]
        %v734 = vld [vmem:[%s3] sm:$0xff]
        %v735 = vld [vmem:[%s3 + $0x8] sm:$0xff]
        %v736 = vld [vmem:[%s3 + $0x10] sm:$0xff]
        %v737 = vld [vmem:[%s3 + $0x18] sm:$0xff]
        %v738 = vpack.c.bf16 %v727, %v726
        %v739 = vpack.c.bf16 %v729, %v728
        %v740 = vld [vmem:[%s671] sm:$0xff]
        %v741 = vld [vmem:[%s671 + $0x8] sm:$0xf]
        %v742 = vld [vmem:[%s671 + $0xc] sm:$0xff]
        %v743 = vld [vmem:[%s671 + $0x14] sm:$0xf]
        %v744 = vld [vmem:[%s671 + $0x18] sm:$0xff]
        %v745 = vld [vmem:[%s671 + $0x20] sm:$0xf]
        %v746 = vld [vmem:[%s671 + $0x24] sm:$0xff]
        %v747 = vld [vmem:[%s671 + $0x2c] sm:$0xf]
        %v748 = vld [vmem:[%s671 + $0x30] sm:$0xff]
        %v749 = vld [vmem:[%s671 + $0x38] sm:$0xf]
        %v750 = vld [vmem:[%s671 + $0x3c] sm:$0xff]
        %v751 = vld [vmem:[%s671 + $0x44] sm:$0xf]
        %v752 = vld [vmem:[%s671 + $0x48] sm:$0xff]
        %v753 = vld [vmem:[%s671 + $0x50] sm:$0xf]
        %v754 = vld [vmem:[%s671 + $0x54] sm:$0xff]
        %v755 = vld [vmem:[%s671 + $0x5c] sm:$0xf]
        %v756 = vld [vmem:[%s671 + $0x60] sm:$0xff]
        %v757 = vld [vmem:[%s671 + $0x68] sm:$0xf]
        %v758 = vld [vmem:[%s671 + $0x6c] sm:$0xff]
        %v759 = vld [vmem:[%s671 + $0x74] sm:$0xf]
        %v760 = vld [vmem:[%s671 + $0x78] sm:$0xff]
        %v761 = vld [vmem:[%s671 + $0x80] sm:$0xf]
        %v762 = vld [vmem:[%s671 + $0x84] sm:$0xff]
        %v763 = vld [vmem:[%s671 + $0x8c] sm:$0xf]
        %v764 = vld [vmem:[%s671 + $0x90] sm:$0xff]
        %v765 = vld [vmem:[%s671 + $0x98] sm:$0xf]
        %v766 = vld [vmem:[%s671 + $0x9c] sm:$0xff]
        %v767 = vld [vmem:[%s671 + $0xa4] sm:$0xf]
        %v768 = vld [vmem:[%s671 + $0xa8] sm:$0xff]
        %v769 = vld [vmem:[%s671 + $0xb0] sm:$0xf]
        %v770 = vld [vmem:[%s671 + $0xb4] sm:$0xff]
        %v771 = vld [vmem:[%s671 + $0xbc] sm:$0xf]
        %v772 = vld [vmem:[%s675] sm:$0x7]
        %v774 = vlaneseq
        %v775 = vshrl.u32 %v774, 7
        %v776 = vsub.s32 0, %v775
        %v777 = vrot.slane %v772, %v776
        %v778 = vlaneseq
        %v779 = vshrl.u32 %v778, 7
        %v780 = vsub.s32 1, %v779
        %v781 = vrot.slane %v772, %v780
        %v782 = vlaneseq
        %v783 = vshrl.u32 %v782, 7
        %v784 = vsub.s32 2, %v783
        %v785 = vrot.slane %v772, %v784
        %v821 = vunpack.c.l.b16 %v740
        %v822 = vunpack.c.h.b16 %v740
        %v823 = vunpack.c.l.b16 %v741
        %v824 = vunpack.c.l.b16 %v742
        %v825 = vunpack.c.h.b16 %v742
        %v826 = vunpack.c.l.b16 %v743
        %v827 = vunpack.c.l.b16 %v744
        %v828 = vunpack.c.h.b16 %v744
        %v829 = vunpack.c.l.b16 %v745
        %v830 = vunpack.c.l.b16 %v746
        %v831 = vunpack.c.h.b16 %v746
        %v832 = vunpack.c.l.b16 %v747
        %v833 = vunpack.c.l.b16 %v748
        %v834 = vunpack.c.h.b16 %v748
        %v835 = vunpack.c.l.b16 %v749
        %v836 = vunpack.c.l.b16 %v750
        %v837 = vunpack.c.h.b16 %v750
        %v838 = vunpack.c.l.b16 %v751
        %v839 = vunpack.c.l.b16 %v752
        %v840 = vunpack.c.h.b16 %v752
        %v841 = vunpack.c.l.b16 %v753
        %v842 = vunpack.c.l.b16 %v754
        %v843 = vunpack.c.h.b16 %v754
        %v844 = vunpack.c.l.b16 %v755
        %v845 = vunpack.c.l.b16 %v756
        %v846 = vunpack.c.h.b16 %v756
        %v847 = vunpack.c.l.b16 %v757
        %v848 = vunpack.c.l.b16 %v758
        %v849 = vunpack.c.h.b16 %v758
        %v850 = vunpack.c.l.b16 %v759
        %v851 = vunpack.c.l.b16 %v760
        %v852 = vunpack.c.h.b16 %v760
        %v853 = vunpack.c.l.b16 %v761
        %v854 = vunpack.c.l.b16 %v762
        %v855 = vunpack.c.h.b16 %v762
        %v856 = vunpack.c.l.b16 %v763
        %v857 = vunpack.c.l.b16 %v764
        %v858 = vunpack.c.h.b16 %v764
        %v859 = vunpack.c.l.b16 %v765
        %v860 = vunpack.c.l.b16 %v766
        %v861 = vunpack.c.h.b16 %v766
        %v862 = vunpack.c.l.b16 %v767
        %v863 = vunpack.c.l.b16 %v768
        %v864 = vunpack.c.h.b16 %v768
        %v865 = vunpack.c.l.b16 %v769
        %v866 = vunpack.c.l.b16 %v770
        %v867 = vunpack.c.h.b16 %v770
        %v868 = vunpack.c.l.b16 %v771
        %v869 = vpack.c.b16 %v824, %v821
        %v870 = vpack.c.b16 %v825, %v822
        %v871 = vpack.c.b16 %v826, %v823
        %v872 = vpack.c.b16 %v830, %v827
        %v873 = vpack.c.b16 %v831, %v828
        %v874 = vpack.c.b16 %v832, %v829
        %v875 = vpack.c.b16 %v836, %v833
        %v876 = vpack.c.b16 %v837, %v834
        %v877 = vpack.c.b16 %v838, %v835
        %v878 = vpack.c.b16 %v842, %v839
        %v879 = vpack.c.b16 %v843, %v840
        %v880 = vpack.c.b16 %v844, %v841
        %v881 = vpack.c.b16 %v848, %v845
        %v882 = vpack.c.b16 %v849, %v846
        %v883 = vpack.c.b16 %v850, %v847
        %v884 = vpack.c.b16 %v854, %v851
        %v885 = vpack.c.b16 %v855, %v852
        %v886 = vpack.c.b16 %v856, %v853
        %v887 = vpack.c.b16 %v860, %v857
        %v888 = vpack.c.b16 %v861, %v858
        %v889 = vpack.c.b16 %v862, %v859
        %v890 = vpack.c.b16 %v866, %v863
        %v891 = vpack.c.b16 %v867, %v864
        %v892 = vpack.c.b16 %v868, %v865
        %917 = vmatprep.subr.bf16.mxu0 %v891
        %918 = vmatpush1.bf16.msra.mxu0 %v890
        %919 = vmatprep.subr.bf16.mxu0 %v888
        %920 = vmatpush1.bf16.msra.mxu0 %v887
        %921 = vmatprep.subr.bf16.mxu0 %v885
        %922 = vmatpush1.bf16.msra.mxu0 %v884
        %923 = vmatprep.subr.bf16.mxu0 %v882
        %924 = vmatpush1.bf16.msra.mxu0 %v881
        %925 = vmatprep.subr.bf16.mxu0 %v879
        %926 = vmatpush1.bf16.msra.mxu0 %v878
        %927 = vmatprep.subr.bf16.mxu0 %v876
        %928 = vmatpush1.bf16.msra.mxu0 %v875
        %929 = vmatprep.subr.bf16.mxu0 %v873
        %930 = vmatpush1.bf16.msra.mxu0 %v872
        %931 = vmatprep.subr.bf16.mxu0 %v870
        %932 = vmatpush1.bf16.msra.mxu0 %v869
        %933 = vmatprep.subr.bf16.mxu0 0
        %934 = vmatpush2.bf16.msra.mxu0 0
        %935 = vmatprep.subr.bf16.mxu0 0
        %936 = vmatpush2.bf16.msra.mxu0 0
        %937 = vmatprep.subr.bf16.mxu0 0
        %938 = vmatpush2.bf16.msra.mxu0 0
        %939 = vmatprep.subr.bf16.mxu0 0
        %940 = vmatpush2.bf16.msra.mxu0 0
        %941 = vmatprep.subr.bf16.mxu0 0
        %942 = vmatpush2.bf16.msra.mxu0 0
        %943 = vmatprep.subr.bf16.mxu0 0
        %944 = vmatpush2.bf16.msra.mxu0 0
        %945 = vmatprep.subr.bf16.mxu0 0
        %946 = vmatpush2.bf16.msra.mxu0 0
        %947 = vmatprep.subr.bf16.mxu0 0
        %948 = vmatpush2.bf16.msra.mxu0 0
        %949 = vmatprep.mubr.bf16.mxu0 0
        %950 = vmatmul.mubr.bf16.gmra.mxu0 %v738
        %v951 = vpop.f32.mrf.mxu0
        %v952 = vadd.f32 %v777, %v951
        %v953 = vpop.f32.mrf.mxu0
        %v954 = vadd.f32 %v781, %v953
        %v955 = vpop.f32.mrf.mxu0
        %v956 = vadd.f32 %v777, %v955
        %v957 = vpop.f32.mrf.mxu0
        %v958 = vadd.f32 %v781, %v957
        %959 = vmatprep.mubr.bf16.mxu0 0
        %960 = vmatmul.mubr.bf16.gmra.mxu0 %v739
        %v961 = vpop.f32.mrf.mxu0
        %v962 = vadd.f32 %v777, %v961
        %v963 = vpop.f32.mrf.mxu0
        %v964 = vadd.f32 %v781, %v963
        %v965 = vpop.f32.mrf.mxu0
        %v966 = vadd.f32 %v777, %v965
        %v967 = vpop.f32.mrf.mxu0
        %v968 = vadd.f32 %v781, %v967
        %969 = vdwg.mxu0
        %970 = vmatprep.subr.bf16.mxu0 0
        %971 = vmatpush1.bf16.msra.mxu0 %v892
        %972 = vmatprep.subr.bf16.mxu0 0
        %973 = vmatpush1.bf16.msra.mxu0 %v889
        %974 = vmatprep.subr.bf16.mxu0 0
        %975 = vmatpush1.bf16.msra.mxu0 %v886
        %976 = vmatprep.subr.bf16.mxu0 0
        %977 = vmatpush1.bf16.msra.mxu0 %v883
        %978 = vmatprep.subr.bf16.mxu0 0
        %979 = vmatpush1.bf16.msra.mxu0 %v880
        %980 = vmatprep.subr.bf16.mxu0 0
        %981 = vmatpush1.bf16.msra.mxu0 %v877
        %982 = vmatprep.subr.bf16.mxu0 0
        %983 = vmatpush1.bf16.msra.mxu0 %v874
        %984 = vmatprep.subr.bf16.mxu0 0
        %985 = vmatpush1.bf16.msra.mxu0 %v871
        %986 = vmatprep.subr.bf16.mxu0 0
        %987 = vmatpush2.bf16.msra.mxu0 0
        %988 = vmatprep.subr.bf16.mxu0 0
        %989 = vmatpush2.bf16.msra.mxu0 0
        %990 = vmatprep.subr.bf16.mxu0 0
        %991 = vmatpush2.bf16.msra.mxu0 0
        %992 = vmatprep.subr.bf16.mxu0 0
        %993 = vmatpush2.bf16.msra.mxu0 0
        %994 = vmatprep.subr.bf16.mxu0 0
        %995 = vmatpush2.bf16.msra.mxu0 0
        %996 = vmatprep.subr.bf16.mxu0 0
        %997 = vmatpush2.bf16.msra.mxu0 0
        %998 = vmatprep.subr.bf16.mxu0 0
        %999 = vmatpush2.bf16.msra.mxu0 0
        %1000 = vmatprep.subr.bf16.mxu0 0
        %1001 = vmatpush2.bf16.msra.mxu0 0
        %1002 = vmatprep.mubr.bf16.mxu0 0
        %1003 = vmatmul.mubr.bf16.gmra.mxu0 %v738
        %v1004 = vpop.f32.mrf.mxu0
        %v1005 = vadd.f32 %v785, %v1004
        %v1006 = vpop.f32.mrf.mxu0
        %v1007 = vpop.f32.mrf.mxu0
        %v1008 = vadd.f32 %v785, %v1007
        %v1009 = vpop.f32.mrf.mxu0
        %1010 = vmatprep.mubr.bf16.mxu0 0
        %1011 = vmatmul.mubr.bf16.gmra.mxu0 %v739
        %v1012 = vpop.f32.mrf.mxu0
        %v1013 = vadd.f32 %v785, %v1012
        %v1014 = vpop.f32.mrf.mxu0
        %v1015 = vpop.f32.mrf.mxu0
        %v1016 = vadd.f32 %v785, %v1015
        %v1017 = vpop.f32.mrf.mxu0
        %1018 = vdwg.mxu0
        %v1019 = vld [vmem:[%s2] sm:$0xff]
        %v1020 = vld [vmem:[%s2 + $0x8] sm:$0xff]
        %v1021 = vld [vmem:[%s2 + $0x10] sm:$0xff]
        %v1022 = vld [vmem:[%s2 + $0x18] sm:$0xff]
        %v1023 = vld [vmem:[%s1] sm:$0x1]
        %1025 = vset.pattern.permute.xlu0 0
        %1026 = vperm.xlu0 %1025, %v1019
        %v1027 = vpop.permute.xlu0 %1026
        %1030 = vset.pattern.permute.xlu0 0
        %1031 = vperm.xlu0 %1030, %v1020
        %v1032 = vpop.permute.xlu0 %1031
        %1035 = vset.pattern.permute.xlu0 0
        %1036 = vperm.xlu0 %1035, %v1021
        %v1037 = vpop.permute.xlu0 %1036
        %1040 = vset.pattern.permute.xlu0 0
        %1041 = vperm.xlu0 %1040, %v1022
        %v1042 = vpop.permute.xlu0 %1041
        %v1045 = vlaneseq
        %v1046 = vshrl.u32 %v1045, 7
        %v1047 = vsub.s32 0, %v1046
        %v1048 = vrot.slane %v1023, %v1047
        %vm1050 = vcmp.eq.f32.partialorder %v1027, %v1048
        %vm1051 = vcmp.eq.f32.partialorder %v1032, %v1048
        %vm1052 = vcmp.eq.f32.partialorder %v1037, %v1048
        %vm1053 = vcmp.eq.f32.partialorder %v1042, %v1048
        %v1054 = vsel %vm1050, 0.0, -1e+30
        %v1055 = vsel %vm1051, 0.0, -1e+30
        %v1056 = vsel %vm1052, 0.0, -1e+30
        %v1057 = vsel %vm1053, 0.0, -1e+30
        %v1058 = vld [vmem:[%s683] sm:$0x1]
        %v1059 = vmul.f32 %v952, 0.125
        %v1060 = vmul.f32 %v956, 0.125
        %v1061 = vmul.f32 %v962, 0.125
        %v1062 = vmul.f32 %v966, 0.125
        %v1063 = vpack.c.bf16 %v1060, %v1059
        %v1064 = vpack.c.bf16 %v1062, %v1061
        %v1065 = vpack.c.bf16 %v958, %v954
        %v1066 = vpack.c.bf16 %v968, %v964
        %v1067 = vpack.c.bf16 %v1008, %v1005
        %v1068 = vpack.c.bf16 %v1016, %v1013
        %vm1069 = vcmask 523264
        %v1071 = vsel %vm1069, %v1063, 0
        %v1074 = vsel %vm1069, %v1064, 0
        %v1077 = vsel %vm1069, %v1065, 0
        %v1080 = vsel %vm1069, %v1066, 0
        %1082 = vmatprep.subr.bf16.mxu0 0
        %1083 = vmatpush1.bf16.xpose.msra.mxu0 0
        %1084 = vmatprep.subr.bf16.mxu0 0
        %1085 = vmatpush1.bf16.xpose.msra.mxu0 0
        %1086 = vmatprep.subr.bf16.mxu0 0
        %1087 = vmatpush1.bf16.xpose.msra.mxu0 0
        %1088 = vmatprep.subr.bf16.mxu0 0
        %1089 = vmatpush1.bf16.xpose.msra.mxu0 0
        %1090 = vmatprep.subr.bf16.mxu0 0
        %1091 = vmatpush1.bf16.xpose.msra.mxu0 0
        %1092 = vmatprep.subr.bf16.mxu0 0
        %1093 = vmatpush1.bf16.xpose.msra.mxu0 0
        %1094 = vmatprep.subr.bf16.mxu0 0
        %1095 = vmatpush1.bf16.xpose.msra.mxu0 %v1080
        %1096 = vmatprep.subr.bf16.mxu0 0
        %1097 = vmatpush1.bf16.xpose.msra.mxu0 %v1077
        %1098 = vmatprep.subr.bf16.mxu0 0
        %1099 = vmatpush2.bf16.xpose.msra.mxu0 0
        %1100 = vmatprep.subr.bf16.mxu0 0
        %1101 = vmatpush2.bf16.xpose.msra.mxu0 0
        %1102 = vmatprep.subr.bf16.mxu0 0
        %1103 = vmatpush2.bf16.xpose.msra.mxu0 0
        %1104 = vmatprep.subr.bf16.mxu0 0
        %1105 = vmatpush2.bf16.xpose.msra.mxu0 0
        %1106 = vmatprep.subr.bf16.mxu0 0
        %1107 = vmatpush2.bf16.xpose.msra.mxu0 0
        %1108 = vmatprep.subr.bf16.mxu0 0
        %1109 = vmatpush2.bf16.xpose.msra.mxu0 0
        %1110 = vmatprep.subr.bf16.mxu0 0
        %1111 = vmatpush2.bf16.xpose.msra.mxu0 0
        %1112 = vmatprep.subr.bf16.mxu0 0
        %1113 = vmatpush2.bf16.xpose.msra.mxu0 0
        %1114 = vmatprep.mubr.bf16.mxu0 0
        %1115 = vmatmul.mubr.bf16.gmra.mxu0 %v1071
        %v1116 = vpop.f32.mrf.mxu0
        %v1117 = vadd.f32 %v1054, %v1116
        %v1118 = vpop.f32.mrf.mxu0
        %v1119 = vpop.f32.mrf.mxu0
        %v1120 = vadd.f32 %v1055, %v1119
        %v1121 = vpop.f32.mrf.mxu0
        %1122 = vmatprep.mubr.bf16.mxu0 0
        %1123 = vmatmul.mubr.bf16.gmra.mxu0 %v1074
        %v1124 = vpop.f32.mrf.mxu0
        %v1125 = vadd.f32 %v1056, %v1124
        %v1126 = vpop.f32.mrf.mxu0
        %v1127 = vpop.f32.mrf.mxu0
        %v1128 = vadd.f32 %v1057, %v1127
        %v1129 = vpop.f32.mrf.mxu0
        %1130 = vdwg.mxu0
        %vm1131 = vcmask 261120
        %v1132 = vsel %vm1131, %v1117, -inf
        %1133 = vmax.xlane.f32.xlu0 %v1132
        %v1134 = vpop.xlane.xlu0 %1133
        %v1135 = vsel %vm1131, %v1120, -inf
        %1136 = vmax.xlane.f32.xlu0 %v1135
        %v1137 = vpop.xlane.xlu0 %1136
        %v1138 = vsel %vm1131, %v1125, -inf
        %1139 = vmax.xlane.f32.xlu0 %v1138
        %v1140 = vpop.xlane.xlu0 %1139
        %v1141 = vsel %vm1131, %v1128, -inf
        %1142 = vmax.xlane.f32.xlu0 %v1141
        %v1143 = vpop.xlane.xlu0 %1142
        %v1144 = vsub.f32 %v1117, %v1134
        %v1145 = vsub.f32 %v1120, %v1137
        %v1146 = vsub.f32 %v1125, %v1140
        %v1147 = vsub.f32 %v1128, %v1143
        %v1148 = vmul.f32 %v1144, 1.442695
        %v1149 = vpow.pop %v1148
        %v1150 = vmul.f32 %v1145, 1.442695
        %v1151 = vpow.pop %v1150
        %v1152 = vmul.f32 %v1146, 1.442695
        %v1153 = vpow.pop %v1152
        %v1154 = vmul.f32 %v1147, 1.442695
        %v1155 = vpow.pop %v1154
        %v1156 = vsel %vm1131, %v1149, 0.0
        %1157 = vadd.xlane.f32.xlu0 %v1156
        %v1158 = vpop.xlane.xlu0 %1157
        %v1159 = vsel %vm1131, %v1151, 0.0
        %1160 = vadd.xlane.f32.xlu0 %v1159
        %v1161 = vpop.xlane.xlu0 %1160
        %v1162 = vsel %vm1131, %v1153, 0.0
        %1163 = vadd.xlane.f32.xlu0 %v1162
        %v1164 = vpop.xlane.xlu0 %1163
        %v1165 = vsel %vm1131, %v1155, 0.0
        %1166 = vadd.xlane.f32.xlu0 %v1165
        %v1167 = vpop.xlane.xlu0 %1166
        %v1168 = vrcp.pop %v1158
        %v1169 = vrcp.pop %v1161
        %v1170 = vrcp.pop %v1164
        %v1171 = vrcp.pop %v1167
        %v1172 = vmul.f32 %v1149, %v1168
        %v1173 = vmul.f32 %v1151, %v1169
        %v1174 = vmul.f32 %v1153, %v1170
        %v1175 = vmul.f32 %v1155, %v1171
        %v1176 = vpack.c.bf16 %v1173, %v1172
        %v1177 = vpack.c.bf16 %v1175, %v1174
        %v1179 = vsel %vm1131, %v1176, 0
        %v1182 = vsel %vm1131, %v1177, 0
        %1184 = vmatprep.subr.bf16.mxu0 0
        %1185 = vmatpush1.bf16.msra.mxu0 0
        %1186 = vmatprep.subr.bf16.mxu0 0
        %1187 = vmatpush1.bf16.msra.mxu0 0
        %1188 = vmatprep.subr.bf16.mxu0 0
        %1189 = vmatpush1.bf16.msra.mxu0 0
        %1190 = vmatprep.subr.bf16.mxu0 0
        %1191 = vmatpush1.bf16.msra.mxu0 0
        %1192 = vmatprep.subr.bf16.mxu0 0
        %1193 = vmatpush1.bf16.msra.mxu0 0
        %1194 = vmatprep.subr.bf16.mxu0 0
        %1195 = vmatpush1.bf16.msra.mxu0 0
        %1196 = vmatprep.subr.bf16.mxu0 0
        %1197 = vmatpush1.bf16.msra.mxu0 %v1068
        %1198 = vmatprep.subr.bf16.mxu0 0
        %1199 = vmatpush1.bf16.msra.mxu0 %v1067
        %1200 = vmatprep.subr.bf16.mxu0 0
        %1201 = vmatpush2.bf16.msra.mxu0 0
        %1202 = vmatprep.subr.bf16.mxu0 0
        %1203 = vmatpush2.bf16.msra.mxu0 0
        %1204 = vmatprep.subr.bf16.mxu0 0
        %1205 = vmatpush2.bf16.msra.mxu0 0
        %1206 = vmatprep.subr.bf16.mxu0 0
        %1207 = vmatpush2.bf16.msra.mxu0 0
        %1208 = vmatprep.subr.bf16.mxu0 0
        %1209 = vmatpush2.bf16.msra.mxu0 0
        %1210 = vmatprep.subr.bf16.mxu0 0
        %1211 = vmatpush2.bf16.msra.mxu0 0
        %1212 = vmatprep.subr.bf16.mxu0 0
        %1213 = vmatpush2.bf16.msra.mxu0 0
        %1214 = vmatprep.subr.bf16.mxu0 0
        %1215 = vmatpush2.bf16.msra.mxu0 0
        %1216 = vmatprep.mubr.bf16.mxu0 0
        %1217 = vmatmul.mubr.bf16.gmra.mxu0 %v1179
        %v1218 = vpop.f32.mrf.mxu0
        %v1219 = vadd.f32 0.0, %v1218
        %v1220 = vpop.f32.mrf.mxu0
        %v1221 = vpop.f32.mrf.mxu0
        %v1222 = vadd.f32 0.0, %v1221
        %v1223 = vpop.f32.mrf.mxu0
        %1224 = vmatprep.mubr.bf16.mxu0 0
        %1225 = vmatmul.mubr.bf16.gmra.mxu0 %v1182
        %v1226 = vpop.f32.mrf.mxu0
        %v1227 = vadd.f32 0.0, %v1226
        %v1228 = vpop.f32.mrf.mxu0
        %v1229 = vpop.f32.mrf.mxu0
        %v1230 = vadd.f32 0.0, %v1229
        %v1231 = vpop.f32.mrf.mxu0
        %1232 = vdwg.mxu0
        %v1233 = vpack.c.bf16 %v1222, %v1219
        %v1234 = vpack.c.bf16 %v1230, %v1227
        %v1235 = vld [vmem:[%s680] sm:$0xf]
        %v1236 = vld [vmem:[%s680 + $0x4] sm:$0xf]
        %v1237 = vld [vmem:[%s680 + $0x8] sm:$0xf]
        %v1238 = vld [vmem:[%s680 + $0xc] sm:$0xf]
        %v1239 = vld [vmem:[%s680 + $0x10] sm:$0xf]
        %v1240 = vld [vmem:[%s680 + $0x14] sm:$0xf]
        %v1241 = vld [vmem:[%s680 + $0x18] sm:$0xf]
        %v1242 = vld [vmem:[%s680 + $0x1c] sm:$0xf]
        %v1251 = vunpack.c.l.b16 %v1235
        %v1252 = vunpack.c.l.b16 %v1236
        %v1253 = vunpack.c.l.b16 %v1237
        %v1254 = vunpack.c.l.b16 %v1238
        %v1255 = vunpack.c.l.b16 %v1239
        %v1256 = vunpack.c.l.b16 %v1240
        %v1257 = vunpack.c.l.b16 %v1241
        %v1258 = vunpack.c.l.b16 %v1242
        %v1259 = vpack.c.b16 %v1252, %v1251
        %v1260 = vpack.c.b16 %v1254, %v1253
        %v1261 = vpack.c.b16 %v1256, %v1255
        %v1262 = vpack.c.b16 %v1258, %v1257
        %v1268 = vsel %vm1069, %v1233, 0
        %v1271 = vsel %vm1069, %v1234, 0
        %1273 = vmatprep.subr.bf16.mxu0 0
        %1274 = vmatpush1.bf16.msra.mxu0 0
        %1275 = vmatprep.subr.bf16.mxu0 0
        %1276 = vmatpush1.bf16.msra.mxu0 0
        %1277 = vmatprep.subr.bf16.mxu0 0
        %1278 = vmatpush1.bf16.msra.mxu0 0
        %1279 = vmatprep.subr.bf16.mxu0 0
        %1280 = vmatpush1.bf16.msra.mxu0 0
        %1281 = vmatprep.subr.bf16.mxu0 0
        %1282 = vmatpush1.bf16.msra.mxu0 %v1262
        %1283 = vmatprep.subr.bf16.mxu0 0
        %1284 = vmatpush1.bf16.msra.mxu0 %v1261
        %1285 = vmatprep.subr.bf16.mxu0 0
        %1286 = vmatpush1.bf16.msra.mxu0 %v1260
        %1287 = vmatprep.subr.bf16.mxu0 0
        %1288 = vmatpush1.bf16.msra.mxu0 %v1259
        %1289 = vmatprep.subr.bf16.mxu0 0
        %1290 = vmatpush2.bf16.msra.mxu0 0
        %1291 = vmatprep.subr.bf16.mxu0 0
        %1292 = vmatpush2.bf16.msra.mxu0 0
        %1293 = vmatprep.subr.bf16.mxu0 0
        %1294 = vmatpush2.bf16.msra.mxu0 0
        %1295 = vmatprep.subr.bf16.mxu0 0
        %1296 = vmatpush2.bf16.msra.mxu0 0
        %1297 = vmatprep.subr.bf16.mxu0 0
        %1298 = vmatpush2.bf16.msra.mxu0 0
        %1299 = vmatprep.subr.bf16.mxu0 0
        %1300 = vmatpush2.bf16.msra.mxu0 0
        %1301 = vmatprep.subr.bf16.mxu0 0
        %1302 = vmatpush2.bf16.msra.mxu0 0
        %1303 = vmatprep.subr.bf16.mxu0 0
        %1304 = vmatpush2.bf16.msra.mxu0 0
        %1305 = vmatprep.mubr.bf16.mxu0 0
        %1306 = vmatmul.mubr.bf16.gmra.mxu0 %v1268
        %v1307 = vpop.f32.mrf.mxu0
        %v1308 = vadd.f32 0.0, %v1307
        %v1309 = vpop.f32.mrf.mxu0
        %v1310 = vpop.f32.mrf.mxu0
        %v1311 = vadd.f32 0.0, %v1310
        %v1312 = vpop.f32.mrf.mxu0
        %1313 = vmatprep.mubr.bf16.mxu0 0
        %1314 = vmatmul.mubr.bf16.gmra.mxu0 %v1271
        %v1315 = vpop.f32.mrf.mxu0
        %v1316 = vadd.f32 0.0, %v1315
        %v1317 = vpop.f32.mrf.mxu0
        %v1318 = vpop.f32.mrf.mxu0
        %v1319 = vadd.f32 0.0, %v1318
        %v1320 = vpop.f32.mrf.mxu0
        %1321 = vdwg.mxu0
        %v1323 = vlaneseq
        %v1324 = vshrl.u32 %v1323, 7
        %v1325 = vsub.s32 0, %v1324
        %v1326 = vrot.slane %v1058, %v1325
        %v1328 = vadd.f32 %v1326, %v1308
        %v1329 = vadd.f32 %v1326, %v1311
        %v1330 = vadd.f32 %v1326, %v1316
        %v1331 = vadd.f32 %v1326, %v1319
        %1334 = vrot.lane.b32.xlu0 %v1063, 64
        %v1335 = vpop.permute.xlu0 %1334
        %1336 = vrot.lane.b32.xlu0 %v1064, 64
        %v1337 = vpop.permute.xlu0 %1336
        %1340 = vrot.lane.b32.xlu0 %v1065, 64
        %v1341 = vpop.permute.xlu0 %1340
        %1342 = vrot.lane.b32.xlu0 %v1066, 64
        %v1343 = vpop.permute.xlu0 %1342
        %v1345 = vsel %vm1069, %v1335, 0
        %v1348 = vsel %vm1069, %v1337, 0
        %v1351 = vsel %vm1069, %v1341, 0
        %v1354 = vsel %vm1069, %v1343, 0
        %1356 = vmatprep.subr.bf16.mxu0 0
        %1357 = vmatpush1.bf16.xpose.msra.mxu0 0
        %1358 = vmatprep.subr.bf16.mxu0 0
        %1359 = vmatpush1.bf16.xpose.msra.mxu0 0
        %1360 = vmatprep.subr.bf16.mxu0 0
        %1361 = vmatpush1.bf16.xpose.msra.mxu0 0
        %1362 = vmatprep.subr.bf16.mxu0 0
        %1363 = vmatpush1.bf16.xpose.msra.mxu0 0
        %1364 = vmatprep.subr.bf16.mxu0 0
        %1365 = vmatpush1.bf16.xpose.msra.mxu0 0
        %1366 = vmatprep.subr.bf16.mxu0 0
        %1367 = vmatpush1.bf16.xpose.msra.mxu0 0
        %1368 = vmatprep.subr.bf16.mxu0 0
        %1369 = vmatpush1.bf16.xpose.msra.mxu0 %v1354
        %1370 = vmatprep.subr.bf16.mxu0 0
        %1371 = vmatpush1.bf16.xpose.msra.mxu0 %v1351
        %1372 = vmatprep.subr.bf16.mxu0 0
        %1373 = vmatpush2.bf16.xpose.msra.mxu0 0
        %1374 = vmatprep.subr.bf16.mxu0 0
        %1375 = vmatpush2.bf16.xpose.msra.mxu0 0
        %1376 = vmatprep.subr.bf16.mxu0 0
        %1377 = vmatpush2.bf16.xpose.msra.mxu0 0
        %1378 = vmatprep.subr.bf16.mxu0 0
        %1379 = vmatpush2.bf16.xpose.msra.mxu0 0
        %1380 = vmatprep.subr.bf16.mxu0 0
        %1381 = vmatpush2.bf16.xpose.msra.mxu0 0
        %1382 = vmatprep.subr.bf16.mxu0 0
        %1383 = vmatpush2.bf16.xpose.msra.mxu0 0
        %1384 = vmatprep.subr.bf16.mxu0 0
        %1385 = vmatpush2.bf16.xpose.msra.mxu0 0
        %1386 = vmatprep.subr.bf16.mxu0 0
        %1387 = vmatpush2.bf16.xpose.msra.mxu0 0
        %1388 = vmatprep.mubr.bf16.mxu0 0
        %1389 = vmatmul.mubr.bf16.gmra.mxu0 %v1345
        %v1390 = vpop.f32.mrf.mxu0
        %v1391 = vadd.f32 %v1054, %v1390
        %v1392 = vpop.f32.mrf.mxu0
        %v1393 = vpop.f32.mrf.mxu0
        %v1394 = vadd.f32 %v1055, %v1393
        %v1395 = vpop.f32.mrf.mxu0
        %1396 = vmatprep.mubr.bf16.mxu0 0
        %1397 = vmatmul.mubr.bf16.gmra.mxu0 %v1348
        %v1398 = vpop.f32.mrf.mxu0
        %v1399 = vadd.f32 %v1056, %v1398
        %v1400 = vpop.f32.mrf.mxu0
        %v1401 = vpop.f32.mrf.mxu0
        %v1402 = vadd.f32 %v1057, %v1401
        %v1403 = vpop.f32.mrf.mxu0
        %1404 = vdwg.mxu0
        %v1405 = vsel %vm1131, %v1391, -inf
        %1406 = vmax.xlane.f32.xlu0 %v1405
        %v1407 = vpop.xlane.xlu0 %1406
        %v1408 = vsel %vm1131, %v1394, -inf
        %1409 = vmax.xlane.f32.xlu0 %v1408
        %v1410 = vpop.xlane.xlu0 %1409
        %v1411 = vsel %vm1131, %v1399, -inf
        %1412 = vmax.xlane.f32.xlu0 %v1411
        %v1413 = vpop.xlane.xlu0 %1412
        %v1414 = vsel %vm1131, %v1402, -inf
        %1415 = vmax.xlane.f32.xlu0 %v1414
        %v1416 = vpop.xlane.xlu0 %1415
        %v1417 = vsub.f32 %v1391, %v1407
        %v1418 = vsub.f32 %v1394, %v1410
        %v1419 = vsub.f32 %v1399, %v1413
        %v1420 = vsub.f32 %v1402, %v1416
        %v1421 = vmul.f32 %v1417, 1.442695
        %v1422 = vpow.pop %v1421
        %v1423 = vmul.f32 %v1418, 1.442695
        %v1424 = vpow.pop %v1423
        %v1425 = vmul.f32 %v1419, 1.442695
        %v1426 = vpow.pop %v1425
        %v1427 = vmul.f32 %v1420, 1.442695
        %v1428 = vpow.pop %v1427
        %v1429 = vsel %vm1131, %v1422, 0.0
        %1430 = vadd.xlane.f32.xlu0 %v1429
        %v1431 = vpop.xlane.xlu0 %1430
        %v1432 = vsel %vm1131, %v1424, 0.0
        %1433 = vadd.xlane.f32.xlu0 %v1432
        %v1434 = vpop.xlane.xlu0 %1433
        %v1435 = vsel %vm1131, %v1426, 0.0
        %1436 = vadd.xlane.f32.xlu0 %v1435
        %v1437 = vpop.xlane.xlu0 %1436
        %v1438 = vsel %vm1131, %v1428, 0.0
        %1439 = vadd.xlane.f32.xlu0 %v1438
        %v1440 = vpop.xlane.xlu0 %1439
        %v1441 = vrcp.pop %v1431
        %v1442 = vrcp.pop %v1434
        %v1443 = vrcp.pop %v1437
        %v1444 = vrcp.pop %v1440
        %v1445 = vmul.f32 %v1422, %v1441
        %v1446 = vmul.f32 %v1424, %v1442
        %v1447 = vmul.f32 %v1426, %v1443
        %v1448 = vmul.f32 %v1428, %v1444
        %v1449 = vpack.c.bf16 %v1446, %v1445
        %v1450 = vpack.c.bf16 %v1448, %v1447
        %1453 = vrot.lane.b32.xlu0 %v1067, 64
        %v1454 = vpop.permute.xlu0 %1453
        %1455 = vrot.lane.b32.xlu0 %v1068, 64
        %v1456 = vpop.permute.xlu0 %1455
        %v1460 = vsel %vm1131, %v1449, 0
        %v1463 = vsel %vm1131, %v1450, 0
        %1465 = vmatprep.subr.bf16.mxu0 0
        %1466 = vmatpush1.bf16.msra.mxu0 0
        %1467 = vmatprep.subr.bf16.mxu0 0
        %1468 = vmatpush1.bf16.msra.mxu0 0
        %1469 = vmatprep.subr.bf16.mxu0 0
        %1470 = vmatpush1.bf16.msra.mxu0 0
        %1471 = vmatprep.subr.bf16.mxu0 0
        %1472 = vmatpush1.bf16.msra.mxu0 0
        %1473 = vmatprep.subr.bf16.mxu0 0
        %1474 = vmatpush1.bf16.msra.mxu0 0
        %1475 = vmatprep.subr.bf16.mxu0 0
        %1476 = vmatpush1.bf16.msra.mxu0 0
        %1477 = vmatprep.subr.bf16.mxu0 0
        %1478 = vmatpush1.bf16.msra.mxu0 %v1456
        %1479 = vmatprep.subr.bf16.mxu0 0
        %1480 = vmatpush1.bf16.msra.mxu0 %v1454
        %1481 = vmatprep.subr.bf16.mxu0 0
        %1482 = vmatpush2.bf16.msra.mxu0 0
        %1483 = vmatprep.subr.bf16.mxu0 0
        %1484 = vmatpush2.bf16.msra.mxu0 0
        %1485 = vmatprep.subr.bf16.mxu0 0
        %1486 = vmatpush2.bf16.msra.mxu0 0
        %1487 = vmatprep.subr.bf16.mxu0 0
        %1488 = vmatpush2.bf16.msra.mxu0 0
        %1489 = vmatprep.subr.bf16.mxu0 0
        %1490 = vmatpush2.bf16.msra.mxu0 0
        %1491 = vmatprep.subr.bf16.mxu0 0
        %1492 = vmatpush2.bf16.msra.mxu0 0
        %1493 = vmatprep.subr.bf16.mxu0 0
        %1494 = vmatpush2.bf16.msra.mxu0 0
        %1495 = vmatprep.subr.bf16.mxu0 0
        %1496 = vmatpush2.bf16.msra.mxu0 0
        %1497 = vmatprep.mubr.bf16.mxu0 0
        %1498 = vmatmul.mubr.bf16.gmra.mxu0 %v1460
        %v1499 = vpop.f32.mrf.mxu0
        %v1500 = vadd.f32 0.0, %v1499
        %v1501 = vpop.f32.mrf.mxu0
        %v1502 = vpop.f32.mrf.mxu0
        %v1503 = vadd.f32 0.0, %v1502
        %v1504 = vpop.f32.mrf.mxu0
        %1505 = vmatprep.mubr.bf16.mxu0 0
        %1506 = vmatmul.mubr.bf16.gmra.mxu0 %v1463
        %v1507 = vpop.f32.mrf.mxu0
        %v1508 = vadd.f32 0.0, %v1507
        %v1509 = vpop.f32.mrf.mxu0
        %v1510 = vpop.f32.mrf.mxu0
        %v1511 = vadd.f32 0.0, %v1510
        %v1512 = vpop.f32.mrf.mxu0
        %1513 = vdwg.mxu0
        %v1514 = vpack.c.bf16 %v1503, %v1500
        %v1515 = vpack.c.bf16 %v1511, %v1508
        %v1516 = vld [vmem:[%s680 + $0x20] sm:$0xf]
        %v1517 = vld [vmem:[%s680 + $0x24] sm:$0xf]
        %v1518 = vld [vmem:[%s680 + $0x28] sm:$0xf]
        %v1519 = vld [vmem:[%s680 + $0x2c] sm:$0xf]
        %v1520 = vld [vmem:[%s680 + $0x30] sm:$0xf]
        %v1521 = vld [vmem:[%s680 + $0x34] sm:$0xf]
        %v1522 = vld [vmem:[%s680 + $0x38] sm:$0xf]
        %v1523 = vld [vmem:[%s680 + $0x3c] sm:$0xf]
        %v1532 = vunpack.c.l.b16 %v1516
        %v1533 = vunpack.c.l.b16 %v1517
        %v1534 = vunpack.c.l.b16 %v1518
        %v1535 = vunpack.c.l.b16 %v1519
        %v1536 = vunpack.c.l.b16 %v1520
        %v1537 = vunpack.c.l.b16 %v1521
        %v1538 = vunpack.c.l.b16 %v1522
        %v1539 = vunpack.c.l.b16 %v1523
        %v1540 = vpack.c.b16 %v1533, %v1532
        %v1541 = vpack.c.b16 %v1535, %v1534
        %v1542 = vpack.c.b16 %v1537, %v1536
        %v1543 = vpack.c.b16 %v1539, %v1538
        %v1549 = vsel %vm1069, %v1514, 0
        %v1552 = vsel %vm1069, %v1515, 0
        %1554 = vmatprep.subr.bf16.mxu0 0
        %1555 = vmatpush1.bf16.msra.mxu0 0
        %1556 = vmatprep.subr.bf16.mxu0 0
        %1557 = vmatpush1.bf16.msra.mxu0 0
        %1558 = vmatprep.subr.bf16.mxu0 0
        %1559 = vmatpush1.bf16.msra.mxu0 0
        %1560 = vmatprep.subr.bf16.mxu0 0
        %1561 = vmatpush1.bf16.msra.mxu0 0
        %1562 = vmatprep.subr.bf16.mxu0 0
        %1563 = vmatpush1.bf16.msra.mxu0 %v1543
        %1564 = vmatprep.subr.bf16.mxu0 0
        %1565 = vmatpush1.bf16.msra.mxu0 %v1542
        %1566 = vmatprep.subr.bf16.mxu0 0
        %1567 = vmatpush1.bf16.msra.mxu0 %v1541
        %1568 = vmatprep.subr.bf16.mxu0 0
        %1569 = vmatpush1.bf16.msra.mxu0 %v1540
        %1570 = vmatprep.subr.bf16.mxu0 0
        %1571 = vmatpush2.bf16.msra.mxu0 0
        %1572 = vmatprep.subr.bf16.mxu0 0
        %1573 = vmatpush2.bf16.msra.mxu0 0
        %1574 = vmatprep.subr.bf16.mxu0 0
        %1575 = vmatpush2.bf16.msra.mxu0 0
        %1576 = vmatprep.subr.bf16.mxu0 0
        %1577 = vmatpush2.bf16.msra.mxu0 0
        %1578 = vmatprep.subr.bf16.mxu0 0
        %1579 = vmatpush2.bf16.msra.mxu0 0
        %1580 = vmatprep.subr.bf16.mxu0 0
        %1581 = vmatpush2.bf16.msra.mxu0 0
        %1582 = vmatprep.subr.bf16.mxu0 0
        %1583 = vmatpush2.bf16.msra.mxu0 0
        %1584 = vmatprep.subr.bf16.mxu0 0
        %1585 = vmatpush2.bf16.msra.mxu0 0
        %1586 = vmatprep.mubr.bf16.mxu0 0
        %1587 = vmatmul.mubr.bf16.gmra.mxu0 %v1549
        %v1588 = vpop.f32.mrf.mxu0
        %v1589 = vadd.f32 0.0, %v1588
        %v1590 = vpop.f32.mrf.mxu0
        %v1591 = vpop.f32.mrf.mxu0
        %v1592 = vadd.f32 0.0, %v1591
        %v1593 = vpop.f32.mrf.mxu0
        %1594 = vmatprep.mubr.bf16.mxu0 0
        %1595 = vmatmul.mubr.bf16.gmra.mxu0 %v1552
        %v1596 = vpop.f32.mrf.mxu0
        %v1597 = vadd.f32 0.0, %v1596
        %v1598 = vpop.f32.mrf.mxu0
        %v1599 = vpop.f32.mrf.mxu0
        %v1600 = vadd.f32 0.0, %v1599
        %v1601 = vpop.f32.mrf.mxu0
        %1602 = vdwg.mxu0
        %v1603 = vadd.f32 %v1328, %v1589
        %v1604 = vadd.f32 %v1329, %v1592
        %v1605 = vadd.f32 %v1330, %v1597
        %v1606 = vadd.f32 %v1331, %v1600
        %v1607 = vadd.f32 %v1603, %v726
        %v1608 = vadd.f32 %v1604, %v727
        %v1609 = vadd.f32 %v1605, %v728
        %v1610 = vadd.f32 %v1606, %v729
        %v1611 = vld [vmem:[%s686] sm:$0x1]
        %v1612 = vld [vmem:[%s689] sm:$0x1]
        %1613 = vadd.xlane.f32.xlu0 %v1607
        %v1614 = vpop.xlane.xlu0 %1613
        %1615 = vadd.xlane.f32.xlu0 %v1608
        %v1616 = vpop.xlane.xlu0 %1615
        %1617 = vadd.xlane.f32.xlu0 %v1609
        %v1618 = vpop.xlane.xlu0 %1617
        %1619 = vadd.xlane.f32.xlu0 %v1610
        %v1620 = vpop.xlane.xlu0 %1619
        %v1621 = vrcp.pop 128.0
        %v1622 = vmul.f32 %v1614, %v1621
        %v1623 = vmul.f32 %v1616, %v1621
        %v1624 = vmul.f32 %v1618, %v1621
        %v1625 = vmul.f32 %v1620, %v1621
        %v1626 = vsub.f32 %v1607, %v1622
        %v1627 = vsub.f32 %v1608, %v1623
        %v1628 = vsub.f32 %v1609, %v1624
        %v1629 = vsub.f32 %v1610, %v1625
        %v1630 = vmul.f32 %v1626, %v1626
        %v1631 = vmul.f32 %v1627, %v1627
        %v1632 = vmul.f32 %v1628, %v1628
        %v1633 = vmul.f32 %v1629, %v1629
        %1634 = vadd.xlane.f32.xlu0 %v1630
        %v1635 = vpop.xlane.xlu0 %1634
        %1636 = vadd.xlane.f32.xlu0 %v1631
        %v1637 = vpop.xlane.xlu0 %1636
        %1638 = vadd.xlane.f32.xlu0 %v1632
        %v1639 = vpop.xlane.xlu0 %1638
        %1640 = vadd.xlane.f32.xlu0 %v1633
        %v1641 = vpop.xlane.xlu0 %1640
        %v1642 = vmul.f32 %v1635, %v1621
        %v1643 = vmul.f32 %v1637, %v1621
        %v1644 = vmul.f32 %v1639, %v1621
        %v1645 = vmul.f32 %v1641, %v1621
        %v1646 = vadd.f32 %v1642, 1e-05
        %v1647 = vadd.f32 %v1643, 1e-05
        %v1648 = vadd.f32 %v1644, 1e-05
        %v1649 = vadd.f32 %v1645, 1e-05
        %v1650 = vrsqrt.pop %v1646
        %v1651 = vrsqrt.pop %v1647
        %v1652 = vrsqrt.pop %v1648
        %v1653 = vrsqrt.pop %v1649
        %v1654 = vmul.f32 %v1626, %v1650
        %v1655 = vmul.f32 %v1627, %v1651
        %v1656 = vmul.f32 %v1628, %v1652
        %v1657 = vmul.f32 %v1629, %v1653
        %v1659 = vlaneseq
        %v1660 = vshrl.u32 %v1659, 7
        %v1661 = vsub.s32 0, %v1660
        %v1662 = vrot.slane %v1611, %v1661
        %v1664 = vmul.f32 %v1654, %v1662
        %v1665 = vmul.f32 %v1655, %v1662
        %v1666 = vmul.f32 %v1656, %v1662
        %v1667 = vmul.f32 %v1657, %v1662
        %v1669 = vlaneseq
        %v1670 = vshrl.u32 %v1669, 7
        %v1671 = vsub.s32 0, %v1670
        %v1672 = vrot.slane %v1612, %v1671
        %v1674 = vadd.f32 %v1664, %v1672
        %v1675 = vadd.f32 %v1665, %v1672
        %v1676 = vadd.f32 %v1666, %v1672
        %v1677 = vadd.f32 %v1667, %v1672
        %1679 = vset.pattern.permute.xlu0 0
        %1680 = vperm.xlu0 %1679, %v730
        %v1681 = vpop.permute.xlu0 %1680
        %1684 = vset.pattern.permute.xlu0 0
        %1685 = vperm.xlu0 %1684, %v731
        %v1686 = vpop.permute.xlu0 %1685
        %1689 = vset.pattern.permute.xlu0 0
        %1690 = vperm.xlu0 %1689, %v732
        %v1691 = vpop.permute.xlu0 %1690
        %1694 = vset.pattern.permute.xlu0 0
        %1695 = vperm.xlu0 %1694, %v733
        %v1696 = vpop.permute.xlu0 %1695
        %v1698 = vmul.f32 %v1674, %v1681
        %v1699 = vmul.f32 %v1675, %v1686
        %v1700 = vmul.f32 %v1676, %v1691
        %v1701 = vmul.f32 %v1677, %v1696
        %v1702 = vld [vmem:[%s698] sm:$0x3]
        %v1703 = vrot.slane %v1698, 4
        %v1704 = vrot.slane %v1699, 4
        %v1705 = vrot.slane %v1700, 4
        %v1706 = vrot.slane %v1701, 4
        %v1707 = vlaneseq
        %v1708 = vshrl.u32 %v1707, 7
        %vm1709 = vcmp.lt.s32.totalorder %v1708, 4
        %v1710 = vsel %vm1709, %v1705, %v1706
        %v1711 = vsel %vm1709, %v1704, %v1705
        %v1712 = vsel %vm1709, %v1703, %v1704
        %v1713 = vsel %vm1709, %v1706, %v1703
        %vm1714 = vcmp.ge.f32.partialorder %v734, 4.0
        %vm1715 = vcmp.ge.f32.partialorder %v735, 4.0
        %vm1716 = vcmp.ge.f32.partialorder %v736, 4.0
        %vm1717 = vcmp.ge.f32.partialorder %v737, 4.0
        %v1718 = vsel %vm1714, 1, 0
        %v1719 = vsel %vm1715, 1, 0
        %v1720 = vsel %vm1716, 1, 0
        %v1721 = vsel %vm1717, 1, 0
        %1722 = vset.pattern.permute.xlu0 0
        %1723 = vperm.xlu0 %1722, %v1718
        %v1724 = vpop.permute.xlu0 %1723
        %1725 = vset.pattern.permute.xlu0 0
        %1726 = vperm.xlu0 %1725, %v1719
        %v1727 = vpop.permute.xlu0 %1726
        %1728 = vset.pattern.permute.xlu0 0
        %1729 = vperm.xlu0 %1728, %v1720
        %v1730 = vpop.permute.xlu0 %1729
        %1731 = vset.pattern.permute.xlu0 0
        %1732 = vperm.xlu0 %1731, %v1721
        %v1733 = vpop.permute.xlu0 %1732
        %vm1734 = vcmp.eq.s32.totalorder %v1724, 1
        %vm1735 = vcmp.eq.s32.totalorder %v1727, 1
        %vm1736 = vcmp.eq.s32.totalorder %v1730, 1
        %vm1737 = vcmp.eq.s32.totalorder %v1733, 1
        %v1738 = vsel %vm1734, %v1713, 0.0
        %v1739 = vsel %vm1735, %v1712, 0.0
        %v1740 = vsel %vm1736, %v1711, 0.0
        %v1741 = vsel %vm1737, %v1710, 0.0
        %v1742 = vpack.c.bf16 %v1739, %v1738
        %v1743 = vpack.c.bf16 %v1741, %v1740
        %v1744 = vld [vmem:[%s694] sm:$0xff]
        %v1745 = vld [vmem:[%s694 + $0x8] sm:$0xff]
        %v1746 = vld [vmem:[%s694 + $0x10] sm:$0xff]
        %v1747 = vld [vmem:[%s694 + $0x18] sm:$0xff]
        %v1748 = vld [vmem:[%s694 + $0x20] sm:$0xff]
        %v1749 = vld [vmem:[%s694 + $0x28] sm:$0xff]
        %v1750 = vld [vmem:[%s694 + $0x30] sm:$0xff]
        %v1751 = vld [vmem:[%s694 + $0x38] sm:$0xff]
        %v1752 = vld [vmem:[%s694 + $0x40] sm:$0xff]
        %v1753 = vld [vmem:[%s694 + $0x48] sm:$0xff]
        %v1754 = vld [vmem:[%s694 + $0x50] sm:$0xff]
        %v1755 = vld [vmem:[%s694 + $0x58] sm:$0xff]
        %v1756 = vld [vmem:[%s694 + $0x60] sm:$0xff]
        %v1757 = vld [vmem:[%s694 + $0x68] sm:$0xff]
        %v1758 = vld [vmem:[%s694 + $0x70] sm:$0xff]
        %v1759 = vld [vmem:[%s694 + $0x78] sm:$0xff]
        %v1776 = vunpack.c.l.b16 %v1744
        %v1777 = vunpack.c.h.b16 %v1744
        %v1778 = vunpack.c.l.b16 %v1745
        %v1779 = vunpack.c.h.b16 %v1745
        %v1780 = vunpack.c.l.b16 %v1746
        %v1781 = vunpack.c.h.b16 %v1746
        %v1782 = vunpack.c.l.b16 %v1747
        %v1783 = vunpack.c.h.b16 %v1747
        %v1784 = vunpack.c.l.b16 %v1748
        %v1785 = vunpack.c.h.b16 %v1748
        %v1786 = vunpack.c.l.b16 %v1749
        %v1787 = vunpack.c.h.b16 %v1749
        %v1788 = vunpack.c.l.b16 %v1750
        %v1789 = vunpack.c.h.b16 %v1750
        %v1790 = vunpack.c.l.b16 %v1751
        %v1791 = vunpack.c.h.b16 %v1751
        %v1792 = vunpack.c.l.b16 %v1752
        %v1793 = vunpack.c.h.b16 %v1752
        %v1794 = vunpack.c.l.b16 %v1753
        %v1795 = vunpack.c.h.b16 %v1753
        %v1796 = vunpack.c.l.b16 %v1754
        %v1797 = vunpack.c.h.b16 %v1754
        %v1798 = vunpack.c.l.b16 %v1755
        %v1799 = vunpack.c.h.b16 %v1755
        %v1800 = vunpack.c.l.b16 %v1756
        %v1801 = vunpack.c.h.b16 %v1756
        %v1802 = vunpack.c.l.b16 %v1757
        %v1803 = vunpack.c.h.b16 %v1757
        %v1804 = vunpack.c.l.b16 %v1758
        %v1805 = vunpack.c.h.b16 %v1758
        %v1806 = vunpack.c.l.b16 %v1759
        %v1807 = vunpack.c.h.b16 %v1759
        %v1808 = vpack.c.b16 %v1778, %v1776
        %v1809 = vpack.c.b16 %v1779, %v1777
        %v1810 = vpack.c.b16 %v1782, %v1780
        %v1811 = vpack.c.b16 %v1783, %v1781
        %v1812 = vpack.c.b16 %v1786, %v1784
        %v1813 = vpack.c.b16 %v1787, %v1785
        %v1814 = vpack.c.b16 %v1790, %v1788
        %v1815 = vpack.c.b16 %v1791, %v1789
        %v1816 = vpack.c.b16 %v1794, %v1792
        %v1817 = vpack.c.b16 %v1795, %v1793
        %v1818 = vpack.c.b16 %v1798, %v1796
        %v1819 = vpack.c.b16 %v1799, %v1797
        %v1820 = vpack.c.b16 %v1802, %v1800
        %v1821 = vpack.c.b16 %v1803, %v1801
        %v1822 = vpack.c.b16 %v1806, %v1804
        %v1823 = vpack.c.b16 %v1807, %v1805
        %1840 = vmatprep.subr.bf16.mxu0 %v1823
        %1841 = vmatpush1.bf16.msra.mxu0 %v1822
        %1842 = vmatprep.subr.bf16.mxu0 %v1821
        %1843 = vmatpush1.bf16.msra.mxu0 %v1820
        %1844 = vmatprep.subr.bf16.mxu0 %v1819
        %1845 = vmatpush1.bf16.msra.mxu0 %v1818
        %1846 = vmatprep.subr.bf16.mxu0 %v1817
        %1847 = vmatpush1.bf16.msra.mxu0 %v1816
        %1848 = vmatprep.subr.bf16.mxu0 %v1815
        %1849 = vmatpush1.bf16.msra.mxu0 %v1814
        %1850 = vmatprep.subr.bf16.mxu0 %v1813
        %1851 = vmatpush1.bf16.msra.mxu0 %v1812
        %1852 = vmatprep.subr.bf16.mxu0 %v1811
        %1853 = vmatpush1.bf16.msra.mxu0 %v1810
        %1854 = vmatprep.subr.bf16.mxu0 %v1809
        %1855 = vmatpush1.bf16.msra.mxu0 %v1808
        %1856 = vmatprep.subr.bf16.mxu0 0
        %1857 = vmatpush2.bf16.msra.mxu0 0
        %1858 = vmatprep.subr.bf16.mxu0 0
        %1859 = vmatpush2.bf16.msra.mxu0 0
        %1860 = vmatprep.subr.bf16.mxu0 0
        %1861 = vmatpush2.bf16.msra.mxu0 0
        %1862 = vmatprep.subr.bf16.mxu0 0
        %1863 = vmatpush2.bf16.msra.mxu0 0
        %1864 = vmatprep.subr.bf16.mxu0 0
        %1865 = vmatpush2.bf16.msra.mxu0 0
        %1866 = vmatprep.subr.bf16.mxu0 0
        %1867 = vmatpush2.bf16.msra.mxu0 0
        %1868 = vmatprep.subr.bf16.mxu0 0
        %1869 = vmatpush2.bf16.msra.mxu0 0
        %1870 = vmatprep.subr.bf16.mxu0 0
        %1871 = vmatpush2.bf16.msra.mxu0 0
        %1872 = vmatprep.mubr.bf16.mxu0 0
        %1873 = vmatmul.mubr.bf16.gmra.mxu0 %v1742
        %v1874 = vpop.f32.mrf.mxu0
        %v1875 = vadd.f32 0.0, %v1874
        %v1876 = vpop.f32.mrf.mxu0
        %v1877 = vadd.f32 0.0, %v1876
        %v1878 = vpop.f32.mrf.mxu0
        %v1879 = vadd.f32 0.0, %v1878
        %v1880 = vpop.f32.mrf.mxu0
        %v1881 = vadd.f32 0.0, %v1880
        %1882 = vmatprep.mubr.bf16.mxu0 0
        %1883 = vmatmul.mubr.bf16.gmra.mxu0 %v1743
        %v1884 = vpop.f32.mrf.mxu0
        %v1885 = vadd.f32 0.0, %v1884
        %v1886 = vpop.f32.mrf.mxu0
        %v1887 = vadd.f32 0.0, %v1886
        %v1888 = vpop.f32.mrf.mxu0
        %v1889 = vadd.f32 0.0, %v1888
        %v1890 = vpop.f32.mrf.mxu0
        %v1891 = vadd.f32 0.0, %v1890
        %1892 = vdwg.mxu0
        %v1894 = vlaneseq
        %v1895 = vshrl.u32 %v1894, 7
        %v1896 = vsub.s32 0, %v1895
        %v1897 = vrot.slane %v1702, %v1896
        %v1898 = vlaneseq
        %v1899 = vshrl.u32 %v1898, 7
        %v1900 = vsub.s32 1, %v1899
        %v1901 = vrot.slane %v1702, %v1900
        %v1904 = vadd.f32 %v1897, %v1875
        %v1905 = vadd.f32 %v1901, %v1877
        %v1906 = vadd.f32 %v1897, %v1879
        %v1907 = vadd.f32 %v1901, %v1881
        %v1908 = vadd.f32 %v1897, %v1885
        %v1909 = vadd.f32 %v1901, %v1887
        %v1910 = vadd.f32 %v1897, %v1889
        %v1911 = vadd.f32 %v1901, %v1891
        %v1912 = vrot.slane %v1698, 5
        %v1913 = vrot.slane %v1699, 5
        %v1914 = vrot.slane %v1700, 5
        %v1915 = vrot.slane %v1701, 5
        %vm1916 = vcmp.lt.s32.totalorder %v1708, 3
        %v1917 = vsel %vm1916, %v1914, %v1915
        %v1918 = vsel %vm1916, %v1913, %v1914
        %v1919 = vsel %vm1916, %v1912, %v1913
        %v1920 = vsel %vm1916, %v1915, %v1912
        %vm1921 = vcmp.ge.f32.partialorder %v734, 3.0
        %vm1922 = vcmp.ge.f32.partialorder %v735, 3.0
        %vm1923 = vcmp.ge.f32.partialorder %v736, 3.0
        %vm1924 = vcmp.ge.f32.partialorder %v737, 3.0
        %v1925 = vsel %vm1921, 1, 0
        %v1926 = vsel %vm1922, 1, 0
        %v1927 = vsel %vm1923, 1, 0
        %v1928 = vsel %vm1924, 1, 0
        %1929 = vset.pattern.permute.xlu0 0
        %1930 = vperm.xlu0 %1929, %v1925
        %v1931 = vpop.permute.xlu0 %1930
        %1932 = vset.pattern.permute.xlu0 0
        %1933 = vperm.xlu0 %1932, %v1926
        %v1934 = vpop.permute.xlu0 %1933
        %1935 = vset.pattern.permute.xlu0 0
        %1936 = vperm.xlu0 %1935, %v1927
        %v1937 = vpop.permute.xlu0 %1936
        %1938 = vset.pattern.permute.xlu0 0
        %1939 = vperm.xlu0 %1938, %v1928
        %v1940 = vpop.permute.xlu0 %1939
        %vm1941 = vcmp.eq.s32.totalorder %v1931, 1
        %vm1942 = vcmp.eq.s32.totalorder %v1934, 1
        %vm1943 = vcmp.eq.s32.totalorder %v1937, 1
        %vm1944 = vcmp.eq.s32.totalorder %v1940, 1
        %v1945 = vsel %vm1941, %v1920, 0.0
        %v1946 = vsel %vm1942, %v1919, 0.0
        %v1947 = vsel %vm1943, %v1918, 0.0
        %v1948 = vsel %vm1944, %v1917, 0.0
        %v1949 = vpack.c.bf16 %v1946, %v1945
        %v1950 = vpack.c.bf16 %v1948, %v1947
        %s1951 = scalar_lea.vmem %s694, 128
        %v1952 = vld [vmem:[%s1951] sm:$0xff]
        %v1953 = vld [vmem:[%s1951 + $0x8] sm:$0xff]
        %v1954 = vld [vmem:[%s1951 + $0x10] sm:$0xff]
        %v1955 = vld [vmem:[%s1951 + $0x18] sm:$0xff]
        %v1956 = vld [vmem:[%s1951 + $0x20] sm:$0xff]
        %v1957 = vld [vmem:[%s1951 + $0x28] sm:$0xff]
        %v1958 = vld [vmem:[%s1951 + $0x30] sm:$0xff]
        %v1959 = vld [vmem:[%s1951 + $0x38] sm:$0xff]
        %v1960 = vld [vmem:[%s1951 + $0x40] sm:$0xff]
        %v1961 = vld [vmem:[%s1951 + $0x48] sm:$0xff]
        %v1962 = vld [vmem:[%s1951 + $0x50] sm:$0xff]
        %v1963 = vld [vmem:[%s1951 + $0x58] sm:$0xff]
        %v1964 = vld [vmem:[%s1951 + $0x60] sm:$0xff]
        %v1965 = vld [vmem:[%s1951 + $0x68] sm:$0xff]
        %v1966 = vld [vmem:[%s1951 + $0x70] sm:$0xff]
        %v1967 = vld [vmem:[%s1951 + $0x78] sm:$0xff]
        %v1984 = vunpack.c.l.b16 %v1952
        %v1985 = vunpack.c.h.b16 %v1952
        %v1986 = vunpack.c.l.b16 %v1953
        %v1987 = vunpack.c.h.b16 %v1953
        %v1988 = vunpack.c.l.b16 %v1954
        %v1989 = vunpack.c.h.b16 %v1954
        %v1990 = vunpack.c.l.b16 %v1955
        %v1991 = vunpack.c.h.b16 %v1955
        %v1992 = vunpack.c.l.b16 %v1956
        %v1993 = vunpack.c.h.b16 %v1956
        %v1994 = vunpack.c.l.b16 %v1957
        %v1995 = vunpack.c.h.b16 %v1957
        %v1996 = vunpack.c.l.b16 %v1958
        %v1997 = vunpack.c.h.b16 %v1958
        %v1998 = vunpack.c.l.b16 %v1959
        %v1999 = vunpack.c.h.b16 %v1959
        %v2000 = vunpack.c.l.b16 %v1960
        %v2001 = vunpack.c.h.b16 %v1960
        %v2002 = vunpack.c.l.b16 %v1961
        %v2003 = vunpack.c.h.b16 %v1961
        %v2004 = vunpack.c.l.b16 %v1962
        %v2005 = vunpack.c.h.b16 %v1962
        %v2006 = vunpack.c.l.b16 %v1963
        %v2007 = vunpack.c.h.b16 %v1963
        %v2008 = vunpack.c.l.b16 %v1964
        %v2009 = vunpack.c.h.b16 %v1964
        %v2010 = vunpack.c.l.b16 %v1965
        %v2011 = vunpack.c.h.b16 %v1965
        %v2012 = vunpack.c.l.b16 %v1966
        %v2013 = vunpack.c.h.b16 %v1966
        %v2014 = vunpack.c.l.b16 %v1967
        %v2015 = vunpack.c.h.b16 %v1967
        %v2016 = vpack.c.b16 %v1986, %v1984
        %v2017 = vpack.c.b16 %v1987, %v1985
        %v2018 = vpack.c.b16 %v1990, %v1988
        %v2019 = vpack.c.b16 %v1991, %v1989
        %v2020 = vpack.c.b16 %v1994, %v1992
        %v2021 = vpack.c.b16 %v1995, %v1993
        %v2022 = vpack.c.b16 %v1998, %v1996
        %v2023 = vpack.c.b16 %v1999, %v1997
        %v2024 = vpack.c.b16 %v2002, %v2000
        %v2025 = vpack.c.b16 %v2003, %v2001
        %v2026 = vpack.c.b16 %v2006, %v2004
        %v2027 = vpack.c.b16 %v2007, %v2005
        %v2028 = vpack.c.b16 %v2010, %v2008
        %v2029 = vpack.c.b16 %v2011, %v2009
        %v2030 = vpack.c.b16 %v2014, %v2012
        %v2031 = vpack.c.b16 %v2015, %v2013
        %2048 = vmatprep.subr.bf16.mxu0 %v2031
        %2049 = vmatpush1.bf16.msra.mxu0 %v2030
        %2050 = vmatprep.subr.bf16.mxu0 %v2029
        %2051 = vmatpush1.bf16.msra.mxu0 %v2028
        %2052 = vmatprep.subr.bf16.mxu0 %v2027
        %2053 = vmatpush1.bf16.msra.mxu0 %v2026
        %2054 = vmatprep.subr.bf16.mxu0 %v2025
        %2055 = vmatpush1.bf16.msra.mxu0 %v2024
        %2056 = vmatprep.subr.bf16.mxu0 %v2023
        %2057 = vmatpush1.bf16.msra.mxu0 %v2022
        %2058 = vmatprep.subr.bf16.mxu0 %v2021
        %2059 = vmatpush1.bf16.msra.mxu0 %v2020
        %2060 = vmatprep.subr.bf16.mxu0 %v2019
        %2061 = vmatpush1.bf16.msra.mxu0 %v2018
        %2062 = vmatprep.subr.bf16.mxu0 %v2017
        %2063 = vmatpush1.bf16.msra.mxu0 %v2016
        %2064 = vmatprep.subr.bf16.mxu0 0
        %2065 = vmatpush2.bf16.msra.mxu0 0
        %2066 = vmatprep.subr.bf16.mxu0 0
        %2067 = vmatpush2.bf16.msra.mxu0 0
        %2068 = vmatprep.subr.bf16.mxu0 0
        %2069 = vmatpush2.bf16.msra.mxu0 0
        %2070 = vmatprep.subr.bf16.mxu0 0
        %2071 = vmatpush2.bf16.msra.mxu0 0
        %2072 = vmatprep.subr.bf16.mxu0 0
        %2073 = vmatpush2.bf16.msra.mxu0 0
        %2074 = vmatprep.subr.bf16.mxu0 0
        %2075 = vmatpush2.bf16.msra.mxu0 0
        %2076 = vmatprep.subr.bf16.mxu0 0
        %2077 = vmatpush2.bf16.msra.mxu0 0
        %2078 = vmatprep.subr.bf16.mxu0 0
        %2079 = vmatpush2.bf16.msra.mxu0 0
        %2080 = vmatprep.mubr.bf16.mxu0 0
        %2081 = vmatmul.mubr.bf16.gmra.mxu0 %v1949
        %v2082 = vpop.f32.mrf.mxu0
        %v2083 = vadd.f32 0.0, %v2082
        %v2084 = vpop.f32.mrf.mxu0
        %v2085 = vadd.f32 0.0, %v2084
        %v2086 = vpop.f32.mrf.mxu0
        %v2087 = vadd.f32 0.0, %v2086
        %v2088 = vpop.f32.mrf.mxu0
        %v2089 = vadd.f32 0.0, %v2088
        %2090 = vmatprep.mubr.bf16.mxu0 0
        %2091 = vmatmul.mubr.bf16.gmra.mxu0 %v1950
        %v2092 = vpop.f32.mrf.mxu0
        %v2093 = vadd.f32 0.0, %v2092
        %v2094 = vpop.f32.mrf.mxu0
        %v2095 = vadd.f32 0.0, %v2094
        %v2096 = vpop.f32.mrf.mxu0
        %v2097 = vadd.f32 0.0, %v2096
        %v2098 = vpop.f32.mrf.mxu0
        %v2099 = vadd.f32 0.0, %v2098
        %2100 = vdwg.mxu0
        %v2101 = vadd.f32 %v1904, %v2083
        %v2102 = vadd.f32 %v1905, %v2085
        %v2103 = vadd.f32 %v1906, %v2087
        %v2104 = vadd.f32 %v1907, %v2089
        %v2105 = vadd.f32 %v1908, %v2093
        %v2106 = vadd.f32 %v1909, %v2095
        %v2107 = vadd.f32 %v1910, %v2097
        %v2108 = vadd.f32 %v1911, %v2099
        %v2109 = vrot.slane %v1698, 6
        %v2110 = vrot.slane %v1699, 6
        %v2111 = vrot.slane %v1700, 6
        %v2112 = vrot.slane %v1701, 6
        %vm2113 = vcmp.lt.s32.totalorder %v1708, 2
        %v2114 = vsel %vm2113, %v2111, %v2112
        %v2115 = vsel %vm2113, %v2110, %v2111
        %v2116 = vsel %vm2113, %v2109, %v2110
        %v2117 = vsel %vm2113, %v2112, %v2109
        %vm2118 = vcmp.ge.f32.partialorder %v734, 2.0
        %vm2119 = vcmp.ge.f32.partialorder %v735, 2.0
        %vm2120 = vcmp.ge.f32.partialorder %v736, 2.0
        %vm2121 = vcmp.ge.f32.partialorder %v737, 2.0
        %v2122 = vsel %vm2118, 1, 0
        %v2123 = vsel %vm2119, 1, 0
        %v2124 = vsel %vm2120, 1, 0
        %v2125 = vsel %vm2121, 1, 0
        %2126 = vset.pattern.permute.xlu0 0
        %2127 = vperm.xlu0 %2126, %v2122
        %v2128 = vpop.permute.xlu0 %2127
        %2129 = vset.pattern.permute.xlu0 0
        %2130 = vperm.xlu0 %2129, %v2123
        %v2131 = vpop.permute.xlu0 %2130
        %2132 = vset.pattern.permute.xlu0 0
        %2133 = vperm.xlu0 %2132, %v2124
        %v2134 = vpop.permute.xlu0 %2133
        %2135 = vset.pattern.permute.xlu0 0
        %2136 = vperm.xlu0 %2135, %v2125
        %v2137 = vpop.permute.xlu0 %2136
        %vm2138 = vcmp.eq.s32.totalorder %v2128, 1
        %vm2139 = vcmp.eq.s32.totalorder %v2131, 1
        %vm2140 = vcmp.eq.s32.totalorder %v2134, 1
        %vm2141 = vcmp.eq.s32.totalorder %v2137, 1
        %v2142 = vsel %vm2138, %v2117, 0.0
        %v2143 = vsel %vm2139, %v2116, 0.0
        %v2144 = vsel %vm2140, %v2115, 0.0
        %v2145 = vsel %vm2141, %v2114, 0.0
        %v2146 = vpack.c.bf16 %v2143, %v2142
        %v2147 = vpack.c.bf16 %v2145, %v2144
        %s2148 = scalar_lea.vmem %s694, 256
        %v2149 = vld [vmem:[%s2148] sm:$0xff]
        %v2150 = vld [vmem:[%s2148 + $0x8] sm:$0xff]
        %v2151 = vld [vmem:[%s2148 + $0x10] sm:$0xff]
        %v2152 = vld [vmem:[%s2148 + $0x18] sm:$0xff]
        %v2153 = vld [vmem:[%s2148 + $0x20] sm:$0xff]
        %v2154 = vld [vmem:[%s2148 + $0x28] sm:$0xff]
        %v2155 = vld [vmem:[%s2148 + $0x30] sm:$0xff]
        %v2156 = vld [vmem:[%s2148 + $0x38] sm:$0xff]
        %v2157 = vld [vmem:[%s2148 + $0x40] sm:$0xff]
        %v2158 = vld [vmem:[%s2148 + $0x48] sm:$0xff]
        %v2159 = vld [vmem:[%s2148 + $0x50] sm:$0xff]
        %v2160 = vld [vmem:[%s2148 + $0x58] sm:$0xff]
        %v2161 = vld [vmem:[%s2148 + $0x60] sm:$0xff]
        %v2162 = vld [vmem:[%s2148 + $0x68] sm:$0xff]
        %v2163 = vld [vmem:[%s2148 + $0x70] sm:$0xff]
        %v2164 = vld [vmem:[%s2148 + $0x78] sm:$0xff]
        %v2181 = vunpack.c.l.b16 %v2149
        %v2182 = vunpack.c.h.b16 %v2149
        %v2183 = vunpack.c.l.b16 %v2150
        %v2184 = vunpack.c.h.b16 %v2150
        %v2185 = vunpack.c.l.b16 %v2151
        %v2186 = vunpack.c.h.b16 %v2151
        %v2187 = vunpack.c.l.b16 %v2152
        %v2188 = vunpack.c.h.b16 %v2152
        %v2189 = vunpack.c.l.b16 %v2153
        %v2190 = vunpack.c.h.b16 %v2153
        %v2191 = vunpack.c.l.b16 %v2154
        %v2192 = vunpack.c.h.b16 %v2154
        %v2193 = vunpack.c.l.b16 %v2155
        %v2194 = vunpack.c.h.b16 %v2155
        %v2195 = vunpack.c.l.b16 %v2156
        %v2196 = vunpack.c.h.b16 %v2156
        %v2197 = vunpack.c.l.b16 %v2157
        %v2198 = vunpack.c.h.b16 %v2157
        %v2199 = vunpack.c.l.b16 %v2158
        %v2200 = vunpack.c.h.b16 %v2158
        %v2201 = vunpack.c.l.b16 %v2159
        %v2202 = vunpack.c.h.b16 %v2159
        %v2203 = vunpack.c.l.b16 %v2160
        %v2204 = vunpack.c.h.b16 %v2160
        %v2205 = vunpack.c.l.b16 %v2161
        %v2206 = vunpack.c.h.b16 %v2161
        %v2207 = vunpack.c.l.b16 %v2162
        %v2208 = vunpack.c.h.b16 %v2162
        %v2209 = vunpack.c.l.b16 %v2163
        %v2210 = vunpack.c.h.b16 %v2163
        %v2211 = vunpack.c.l.b16 %v2164
        %v2212 = vunpack.c.h.b16 %v2164
        %v2213 = vpack.c.b16 %v2183, %v2181
        %v2214 = vpack.c.b16 %v2184, %v2182
        %v2215 = vpack.c.b16 %v2187, %v2185
        %v2216 = vpack.c.b16 %v2188, %v2186
        %v2217 = vpack.c.b16 %v2191, %v2189
        %v2218 = vpack.c.b16 %v2192, %v2190
        %v2219 = vpack.c.b16 %v2195, %v2193
        %v2220 = vpack.c.b16 %v2196, %v2194
        %v2221 = vpack.c.b16 %v2199, %v2197
        %v2222 = vpack.c.b16 %v2200, %v2198
        %v2223 = vpack.c.b16 %v2203, %v2201
        %v2224 = vpack.c.b16 %v2204, %v2202
        %v2225 = vpack.c.b16 %v2207, %v2205
        %v2226 = vpack.c.b16 %v2208, %v2206
        %v2227 = vpack.c.b16 %v2211, %v2209
        %v2228 = vpack.c.b16 %v2212, %v2210
        %2245 = vmatprep.subr.bf16.mxu0 %v2228
        %2246 = vmatpush1.bf16.msra.mxu0 %v2227
        %2247 = vmatprep.subr.bf16.mxu0 %v2226
        %2248 = vmatpush1.bf16.msra.mxu0 %v2225
        %2249 = vmatprep.subr.bf16.mxu0 %v2224
        %2250 = vmatpush1.bf16.msra.mxu0 %v2223
        %2251 = vmatprep.subr.bf16.mxu0 %v2222
        %2252 = vmatpush1.bf16.msra.mxu0 %v2221
        %2253 = vmatprep.subr.bf16.mxu0 %v2220
        %2254 = vmatpush1.bf16.msra.mxu0 %v2219
        %2255 = vmatprep.subr.bf16.mxu0 %v2218
        %2256 = vmatpush1.bf16.msra.mxu0 %v2217
        %2257 = vmatprep.subr.bf16.mxu0 %v2216
        %2258 = vmatpush1.bf16.msra.mxu0 %v2215
        %2259 = vmatprep.subr.bf16.mxu0 %v2214
        %2260 = vmatpush1.bf16.msra.mxu0 %v2213
        %2261 = vmatprep.subr.bf16.mxu0 0
        %2262 = vmatpush2.bf16.msra.mxu0 0
        %2263 = vmatprep.subr.bf16.mxu0 0
        %2264 = vmatpush2.bf16.msra.mxu0 0
        %2265 = vmatprep.subr.bf16.mxu0 0
        %2266 = vmatpush2.bf16.msra.mxu0 0
        %2267 = vmatprep.subr.bf16.mxu0 0
        %2268 = vmatpush2.bf16.msra.mxu0 0
        %2269 = vmatprep.subr.bf16.mxu0 0
        %2270 = vmatpush2.bf16.msra.mxu0 0
        %2271 = vmatprep.subr.bf16.mxu0 0
        %2272 = vmatpush2.bf16.msra.mxu0 0
        %2273 = vmatprep.subr.bf16.mxu0 0
        %2274 = vmatpush2.bf16.msra.mxu0 0
        %2275 = vmatprep.subr.bf16.mxu0 0
        %2276 = vmatpush2.bf16.msra.mxu0 0
        %2277 = vmatprep.mubr.bf16.mxu0 0
        %2278 = vmatmul.mubr.bf16.gmra.mxu0 %v2146
        %v2279 = vpop.f32.mrf.mxu0
        %v2280 = vadd.f32 0.0, %v2279
        %v2281 = vpop.f32.mrf.mxu0
        %v2282 = vadd.f32 0.0, %v2281
        %v2283 = vpop.f32.mrf.mxu0
        %v2284 = vadd.f32 0.0, %v2283
        %v2285 = vpop.f32.mrf.mxu0
        %v2286 = vadd.f32 0.0, %v2285
        %2287 = vmatprep.mubr.bf16.mxu0 0
        %2288 = vmatmul.mubr.bf16.gmra.mxu0 %v2147
        %v2289 = vpop.f32.mrf.mxu0
        %v2290 = vadd.f32 0.0, %v2289
        %v2291 = vpop.f32.mrf.mxu0
        %v2292 = vadd.f32 0.0, %v2291
        %v2293 = vpop.f32.mrf.mxu0
        %v2294 = vadd.f32 0.0, %v2293
        %v2295 = vpop.f32.mrf.mxu0
        %v2296 = vadd.f32 0.0, %v2295
        %2297 = vdwg.mxu0
        %v2298 = vadd.f32 %v2101, %v2280
        %v2299 = vadd.f32 %v2102, %v2282
        %v2300 = vadd.f32 %v2103, %v2284
        %v2301 = vadd.f32 %v2104, %v2286
        %v2302 = vadd.f32 %v2105, %v2290
        %v2303 = vadd.f32 %v2106, %v2292
        %v2304 = vadd.f32 %v2107, %v2294
        %v2305 = vadd.f32 %v2108, %v2296
        %v2306 = vrot.slane %v1698, 7
        %v2307 = vrot.slane %v1699, 7
        %v2308 = vrot.slane %v1700, 7
        %v2309 = vrot.slane %v1701, 7
        %vm2310 = vcmp.lt.s32.totalorder %v1708, 1
        %v2311 = vsel %vm2310, %v2308, %v2309
        %v2312 = vsel %vm2310, %v2307, %v2308
        %v2313 = vsel %vm2310, %v2306, %v2307
        %v2314 = vsel %vm2310, %v2309, %v2306
        %vm2315 = vcmp.ge.f32.partialorder %v734, 1.0
        %vm2316 = vcmp.ge.f32.partialorder %v735, 1.0
        %vm2317 = vcmp.ge.f32.partialorder %v736, 1.0
        %vm2318 = vcmp.ge.f32.partialorder %v737, 1.0
        %v2319 = vsel %vm2315, 1, 0
        %v2320 = vsel %vm2316, 1, 0
        %v2321 = vsel %vm2317, 1, 0
        %v2322 = vsel %vm2318, 1, 0
        %2323 = vset.pattern.permute.xlu0 0
        %2324 = vperm.xlu0 %2323, %v2319
        %v2325 = vpop.permute.xlu0 %2324
        %2326 = vset.pattern.permute.xlu0 0
        %2327 = vperm.xlu0 %2326, %v2320
        %v2328 = vpop.permute.xlu0 %2327
        %2329 = vset.pattern.permute.xlu0 0
        %2330 = vperm.xlu0 %2329, %v2321
        %v2331 = vpop.permute.xlu0 %2330
        %2332 = vset.pattern.permute.xlu0 0
        %2333 = vperm.xlu0 %2332, %v2322
        %v2334 = vpop.permute.xlu0 %2333
        %vm2335 = vcmp.eq.s32.totalorder %v2325, 1
        %vm2336 = vcmp.eq.s32.totalorder %v2328, 1
        %vm2337 = vcmp.eq.s32.totalorder %v2331, 1
        %vm2338 = vcmp.eq.s32.totalorder %v2334, 1
        %v2339 = vsel %vm2335, %v2314, 0.0
        %v2340 = vsel %vm2336, %v2313, 0.0
        %v2341 = vsel %vm2337, %v2312, 0.0
        %v2342 = vsel %vm2338, %v2311, 0.0
        %v2343 = vpack.c.bf16 %v2340, %v2339
        %v2344 = vpack.c.bf16 %v2342, %v2341
        %s2345 = scalar_lea.vmem %s694, 384
        %v2346 = vld [vmem:[%s2345] sm:$0xff]
        %v2347 = vld [vmem:[%s2345 + $0x8] sm:$0xff]
        %v2348 = vld [vmem:[%s2345 + $0x10] sm:$0xff]
        %v2349 = vld [vmem:[%s2345 + $0x18] sm:$0xff]
        %v2350 = vld [vmem:[%s2345 + $0x20] sm:$0xff]
        %v2351 = vld [vmem:[%s2345 + $0x28] sm:$0xff]
        %v2352 = vld [vmem:[%s2345 + $0x30] sm:$0xff]
        %v2353 = vld [vmem:[%s2345 + $0x38] sm:$0xff]
        %v2354 = vld [vmem:[%s2345 + $0x40] sm:$0xff]
        %v2355 = vld [vmem:[%s2345 + $0x48] sm:$0xff]
        %v2356 = vld [vmem:[%s2345 + $0x50] sm:$0xff]
        %v2357 = vld [vmem:[%s2345 + $0x58] sm:$0xff]
        %v2358 = vld [vmem:[%s2345 + $0x60] sm:$0xff]
        %v2359 = vld [vmem:[%s2345 + $0x68] sm:$0xff]
        %v2360 = vld [vmem:[%s2345 + $0x70] sm:$0xff]
        %v2361 = vld [vmem:[%s2345 + $0x78] sm:$0xff]
        %v2378 = vunpack.c.l.b16 %v2346
        %v2379 = vunpack.c.h.b16 %v2346
        %v2380 = vunpack.c.l.b16 %v2347
        %v2381 = vunpack.c.h.b16 %v2347
        %v2382 = vunpack.c.l.b16 %v2348
        %v2383 = vunpack.c.h.b16 %v2348
        %v2384 = vunpack.c.l.b16 %v2349
        %v2385 = vunpack.c.h.b16 %v2349
        %v2386 = vunpack.c.l.b16 %v2350
        %v2387 = vunpack.c.h.b16 %v2350
        %v2388 = vunpack.c.l.b16 %v2351
        %v2389 = vunpack.c.h.b16 %v2351
        %v2390 = vunpack.c.l.b16 %v2352
        %v2391 = vunpack.c.h.b16 %v2352
        %v2392 = vunpack.c.l.b16 %v2353
        %v2393 = vunpack.c.h.b16 %v2353
        %v2394 = vunpack.c.l.b16 %v2354
        %v2395 = vunpack.c.h.b16 %v2354
        %v2396 = vunpack.c.l.b16 %v2355
        %v2397 = vunpack.c.h.b16 %v2355
        %v2398 = vunpack.c.l.b16 %v2356
        %v2399 = vunpack.c.h.b16 %v2356
        %v2400 = vunpack.c.l.b16 %v2357
        %v2401 = vunpack.c.h.b16 %v2357
        %v2402 = vunpack.c.l.b16 %v2358
        %v2403 = vunpack.c.h.b16 %v2358
        %v2404 = vunpack.c.l.b16 %v2359
        %v2405 = vunpack.c.h.b16 %v2359
        %v2406 = vunpack.c.l.b16 %v2360
        %v2407 = vunpack.c.h.b16 %v2360
        %v2408 = vunpack.c.l.b16 %v2361
        %v2409 = vunpack.c.h.b16 %v2361
        %v2410 = vpack.c.b16 %v2380, %v2378
        %v2411 = vpack.c.b16 %v2381, %v2379
        %v2412 = vpack.c.b16 %v2384, %v2382
        %v2413 = vpack.c.b16 %v2385, %v2383
        %v2414 = vpack.c.b16 %v2388, %v2386
        %v2415 = vpack.c.b16 %v2389, %v2387
        %v2416 = vpack.c.b16 %v2392, %v2390
        %v2417 = vpack.c.b16 %v2393, %v2391
        %v2418 = vpack.c.b16 %v2396, %v2394
        %v2419 = vpack.c.b16 %v2397, %v2395
        %v2420 = vpack.c.b16 %v2400, %v2398
        %v2421 = vpack.c.b16 %v2401, %v2399
        %v2422 = vpack.c.b16 %v2404, %v2402
        %v2423 = vpack.c.b16 %v2405, %v2403
        %v2424 = vpack.c.b16 %v2408, %v2406
        %v2425 = vpack.c.b16 %v2409, %v2407
        %2442 = vmatprep.subr.bf16.mxu0 %v2425
        %2443 = vmatpush1.bf16.msra.mxu0 %v2424
        %2444 = vmatprep.subr.bf16.mxu0 %v2423
        %2445 = vmatpush1.bf16.msra.mxu0 %v2422
        %2446 = vmatprep.subr.bf16.mxu0 %v2421
        %2447 = vmatpush1.bf16.msra.mxu0 %v2420
        %2448 = vmatprep.subr.bf16.mxu0 %v2419
        %2449 = vmatpush1.bf16.msra.mxu0 %v2418
        %2450 = vmatprep.subr.bf16.mxu0 %v2417
        %2451 = vmatpush1.bf16.msra.mxu0 %v2416
        %2452 = vmatprep.subr.bf16.mxu0 %v2415
        %2453 = vmatpush1.bf16.msra.mxu0 %v2414
        %2454 = vmatprep.subr.bf16.mxu0 %v2413
        %2455 = vmatpush1.bf16.msra.mxu0 %v2412
        %2456 = vmatprep.subr.bf16.mxu0 %v2411
        %2457 = vmatpush1.bf16.msra.mxu0 %v2410
        %2458 = vmatprep.subr.bf16.mxu0 0
        %2459 = vmatpush2.bf16.msra.mxu0 0
        %2460 = vmatprep.subr.bf16.mxu0 0
        %2461 = vmatpush2.bf16.msra.mxu0 0
        %2462 = vmatprep.subr.bf16.mxu0 0
        %2463 = vmatpush2.bf16.msra.mxu0 0
        %2464 = vmatprep.subr.bf16.mxu0 0
        %2465 = vmatpush2.bf16.msra.mxu0 0
        %2466 = vmatprep.subr.bf16.mxu0 0
        %2467 = vmatpush2.bf16.msra.mxu0 0
        %2468 = vmatprep.subr.bf16.mxu0 0
        %2469 = vmatpush2.bf16.msra.mxu0 0
        %2470 = vmatprep.subr.bf16.mxu0 0
        %2471 = vmatpush2.bf16.msra.mxu0 0
        %2472 = vmatprep.subr.bf16.mxu0 0
        %2473 = vmatpush2.bf16.msra.mxu0 0
        %2474 = vmatprep.mubr.bf16.mxu0 0
        %2475 = vmatmul.mubr.bf16.gmra.mxu0 %v2343
        %v2476 = vpop.f32.mrf.mxu0
        %v2477 = vadd.f32 0.0, %v2476
        %v2478 = vpop.f32.mrf.mxu0
        %v2479 = vadd.f32 0.0, %v2478
        %v2480 = vpop.f32.mrf.mxu0
        %v2481 = vadd.f32 0.0, %v2480
        %v2482 = vpop.f32.mrf.mxu0
        %v2483 = vadd.f32 0.0, %v2482
        %2484 = vmatprep.mubr.bf16.mxu0 0
        %2485 = vmatmul.mubr.bf16.gmra.mxu0 %v2344
        %v2486 = vpop.f32.mrf.mxu0
        %v2487 = vadd.f32 0.0, %v2486
        %v2488 = vpop.f32.mrf.mxu0
        %v2489 = vadd.f32 0.0, %v2488
        %v2490 = vpop.f32.mrf.mxu0
        %v2491 = vadd.f32 0.0, %v2490
        %v2492 = vpop.f32.mrf.mxu0
        %v2493 = vadd.f32 0.0, %v2492
        %2494 = vdwg.mxu0
        %v2495 = vadd.f32 %v2298, %v2477
        %v2496 = vadd.f32 %v2299, %v2479
        %v2497 = vadd.f32 %v2300, %v2481
        %v2498 = vadd.f32 %v2301, %v2483
        %v2499 = vadd.f32 %v2302, %v2487
        %v2500 = vadd.f32 %v2303, %v2489
        %v2501 = vadd.f32 %v2304, %v2491
        %v2502 = vadd.f32 %v2305, %v2493
        %v2503 = vpack.c.bf16 %v1699, %v1698
        %v2504 = vpack.c.bf16 %v1701, %v1700
        %s2505 = scalar_lea.vmem %s694, 512
        %v2506 = vld [vmem:[%s2505] sm:$0xff]
        %v2507 = vld [vmem:[%s2505 + $0x8] sm:$0xff]
        %v2508 = vld [vmem:[%s2505 + $0x10] sm:$0xff]
        %v2509 = vld [vmem:[%s2505 + $0x18] sm:$0xff]
        %v2510 = vld [vmem:[%s2505 + $0x20] sm:$0xff]
        %v2511 = vld [vmem:[%s2505 + $0x28] sm:$0xff]
        %v2512 = vld [vmem:[%s2505 + $0x30] sm:$0xff]
        %v2513 = vld [vmem:[%s2505 + $0x38] sm:$0xff]
        %v2514 = vld [vmem:[%s2505 + $0x40] sm:$0xff]
        %v2515 = vld [vmem:[%s2505 + $0x48] sm:$0xff]
        %v2516 = vld [vmem:[%s2505 + $0x50] sm:$0xff]
        %v2517 = vld [vmem:[%s2505 + $0x58] sm:$0xff]
        %v2518 = vld [vmem:[%s2505 + $0x60] sm:$0xff]
        %v2519 = vld [vmem:[%s2505 + $0x68] sm:$0xff]
        %v2520 = vld [vmem:[%s2505 + $0x70] sm:$0xff]
        %v2521 = vld [vmem:[%s2505 + $0x78] sm:$0xff]
        %v2538 = vunpack.c.l.b16 %v2506
        %v2539 = vunpack.c.h.b16 %v2506
        %v2540 = vunpack.c.l.b16 %v2507
        %v2541 = vunpack.c.h.b16 %v2507
        %v2542 = vunpack.c.l.b16 %v2508
        %v2543 = vunpack.c.h.b16 %v2508
        %v2544 = vunpack.c.l.b16 %v2509
        %v2545 = vunpack.c.h.b16 %v2509
        %v2546 = vunpack.c.l.b16 %v2510
        %v2547 = vunpack.c.h.b16 %v2510
        %v2548 = vunpack.c.l.b16 %v2511
        %v2549 = vunpack.c.h.b16 %v2511
        %v2550 = vunpack.c.l.b16 %v2512
        %v2551 = vunpack.c.h.b16 %v2512
        %v2552 = vunpack.c.l.b16 %v2513
        %v2553 = vunpack.c.h.b16 %v2513
        %v2554 = vunpack.c.l.b16 %v2514
        %v2555 = vunpack.c.h.b16 %v2514
        %v2556 = vunpack.c.l.b16 %v2515
        %v2557 = vunpack.c.h.b16 %v2515
        %v2558 = vunpack.c.l.b16 %v2516
        %v2559 = vunpack.c.h.b16 %v2516
        %v2560 = vunpack.c.l.b16 %v2517
        %v2561 = vunpack.c.h.b16 %v2517
        %v2562 = vunpack.c.l.b16 %v2518
        %v2563 = vunpack.c.h.b16 %v2518
        %v2564 = vunpack.c.l.b16 %v2519
        %v2565 = vunpack.c.h.b16 %v2519
        %v2566 = vunpack.c.l.b16 %v2520
        %v2567 = vunpack.c.h.b16 %v2520
        %v2568 = vunpack.c.l.b16 %v2521
        %v2569 = vunpack.c.h.b16 %v2521
        %v2570 = vpack.c.b16 %v2540, %v2538
        %v2571 = vpack.c.b16 %v2541, %v2539
        %v2572 = vpack.c.b16 %v2544, %v2542
        %v2573 = vpack.c.b16 %v2545, %v2543
        %v2574 = vpack.c.b16 %v2548, %v2546
        %v2575 = vpack.c.b16 %v2549, %v2547
        %v2576 = vpack.c.b16 %v2552, %v2550
        %v2577 = vpack.c.b16 %v2553, %v2551
        %v2578 = vpack.c.b16 %v2556, %v2554
        %v2579 = vpack.c.b16 %v2557, %v2555
        %v2580 = vpack.c.b16 %v2560, %v2558
        %v2581 = vpack.c.b16 %v2561, %v2559
        %v2582 = vpack.c.b16 %v2564, %v2562
        %v2583 = vpack.c.b16 %v2565, %v2563
        %v2584 = vpack.c.b16 %v2568, %v2566
        %v2585 = vpack.c.b16 %v2569, %v2567
        %2602 = vmatprep.subr.bf16.mxu0 %v2585
        %2603 = vmatpush1.bf16.msra.mxu0 %v2584
        %2604 = vmatprep.subr.bf16.mxu0 %v2583
        %2605 = vmatpush1.bf16.msra.mxu0 %v2582
        %2606 = vmatprep.subr.bf16.mxu0 %v2581
        %2607 = vmatpush1.bf16.msra.mxu0 %v2580
        %2608 = vmatprep.subr.bf16.mxu0 %v2579
        %2609 = vmatpush1.bf16.msra.mxu0 %v2578
        %2610 = vmatprep.subr.bf16.mxu0 %v2577
        %2611 = vmatpush1.bf16.msra.mxu0 %v2576
        %2612 = vmatprep.subr.bf16.mxu0 %v2575
        %2613 = vmatpush1.bf16.msra.mxu0 %v2574
        %2614 = vmatprep.subr.bf16.mxu0 %v2573
        %2615 = vmatpush1.bf16.msra.mxu0 %v2572
        %2616 = vmatprep.subr.bf16.mxu0 %v2571
        %2617 = vmatpush1.bf16.msra.mxu0 %v2570
        %2618 = vmatprep.subr.bf16.mxu0 0
        %2619 = vmatpush2.bf16.msra.mxu0 0
        %2620 = vmatprep.subr.bf16.mxu0 0
        %2621 = vmatpush2.bf16.msra.mxu0 0
        %2622 = vmatprep.subr.bf16.mxu0 0
        %2623 = vmatpush2.bf16.msra.mxu0 0
        %2624 = vmatprep.subr.bf16.mxu0 0
        %2625 = vmatpush2.bf16.msra.mxu0 0
        %2626 = vmatprep.subr.bf16.mxu0 0
        %2627 = vmatpush2.bf16.msra.mxu0 0
        %2628 = vmatprep.subr.bf16.mxu0 0
        %2629 = vmatpush2.bf16.msra.mxu0 0
        %2630 = vmatprep.subr.bf16.mxu0 0
        %2631 = vmatpush2.bf16.msra.mxu0 0
        %2632 = vmatprep.subr.bf16.mxu0 0
        %2633 = vmatpush2.bf16.msra.mxu0 0
        %2634 = vmatprep.mubr.bf16.mxu0 0
        %2635 = vmatmul.mubr.bf16.gmra.mxu0 %v2503
        %v2636 = vpop.f32.mrf.mxu0
        %v2637 = vadd.f32 0.0, %v2636
        %v2638 = vpop.f32.mrf.mxu0
        %v2639 = vadd.f32 0.0, %v2638
        %v2640 = vpop.f32.mrf.mxu0
        %v2641 = vadd.f32 0.0, %v2640
        %v2642 = vpop.f32.mrf.mxu0
        %v2643 = vadd.f32 0.0, %v2642
        %2644 = vmatprep.mubr.bf16.mxu0 0
        %2645 = vmatmul.mubr.bf16.gmra.mxu0 %v2504
        %v2646 = vpop.f32.mrf.mxu0
        %v2647 = vadd.f32 0.0, %v2646
        %v2648 = vpop.f32.mrf.mxu0
        %v2649 = vadd.f32 0.0, %v2648
        %v2650 = vpop.f32.mrf.mxu0
        %v2651 = vadd.f32 0.0, %v2650
        %v2652 = vpop.f32.mrf.mxu0
        %v2653 = vadd.f32 0.0, %v2652
        %2654 = vdwg.mxu0
        %v2655 = vadd.f32 %v2495, %v2637
        %v2656 = vadd.f32 %v2496, %v2639
        %v2657 = vadd.f32 %v2497, %v2641
        %v2658 = vadd.f32 %v2498, %v2643
        %v2659 = vadd.f32 %v2499, %v2647
        %v2660 = vadd.f32 %v2500, %v2649
        %v2661 = vadd.f32 %v2501, %v2651
        %v2662 = vadd.f32 %v2502, %v2653
        %v2663 = vrot.slane %v1698, 1
        %v2664 = vrot.slane %v1699, 1
        %v2665 = vrot.slane %v1700, 1
        %v2666 = vrot.slane %v1701, 1
        %vm2667 = vcmp.lt.s32.totalorder %v1708, 7
        %v2668 = vsel %vm2667, %v2665, %v2666
        %v2669 = vsel %vm2667, %v2664, %v2665
        %v2670 = vsel %vm2667, %v2663, %v2664
        %v2671 = vsel %vm2667, %v2666, %v2663
        %vm2672 = vcmp.lt.f32.partialorder %v734, 15.0
        %vm2673 = vcmp.lt.f32.partialorder %v735, 15.0
        %vm2674 = vcmp.lt.f32.partialorder %v736, 15.0
        %vm2675 = vcmp.lt.f32.partialorder %v737, 15.0
        %v2676 = vsel %vm2672, 1, 0
        %v2677 = vsel %vm2673, 1, 0
        %v2678 = vsel %vm2674, 1, 0
        %v2679 = vsel %vm2675, 1, 0
        %2680 = vset.pattern.permute.xlu0 0
        %2681 = vperm.xlu0 %2680, %v2676
        %v2682 = vpop.permute.xlu0 %2681
        %2683 = vset.pattern.permute.xlu0 0
        %2684 = vperm.xlu0 %2683, %v2677
        %v2685 = vpop.permute.xlu0 %2684
        %2686 = vset.pattern.permute.xlu0 0
        %2687 = vperm.xlu0 %2686, %v2678
        %v2688 = vpop.permute.xlu0 %2687
        %2689 = vset.pattern.permute.xlu0 0
        %2690 = vperm.xlu0 %2689, %v2679
        %v2691 = vpop.permute.xlu0 %2690
        %vm2692 = vcmp.eq.s32.totalorder %v2682, 1
        %vm2693 = vcmp.eq.s32.totalorder %v2685, 1
        %vm2694 = vcmp.eq.s32.totalorder %v2688, 1
        %vm2695 = vcmp.eq.s32.totalorder %v2691, 1
        %v2696 = vsel %vm2692, %v2670, 0.0
        %v2697 = vsel %vm2693, %v2669, 0.0
        %v2698 = vsel %vm2694, %v2668, 0.0
        %v2699 = vsel %vm2695, %v2671, 0.0
        %v2700 = vpack.c.bf16 %v2697, %v2696
        %v2701 = vpack.c.bf16 %v2699, %v2698
        %s2702 = scalar_lea.vmem %s694, 640
        %v2703 = vld [vmem:[%s2702] sm:$0xff]
        %v2704 = vld [vmem:[%s2702 + $0x8] sm:$0xff]
        %v2705 = vld [vmem:[%s2702 + $0x10] sm:$0xff]
        %v2706 = vld [vmem:[%s2702 + $0x18] sm:$0xff]
        %v2707 = vld [vmem:[%s2702 + $0x20] sm:$0xff]
        %v2708 = vld [vmem:[%s2702 + $0x28] sm:$0xff]
        %v2709 = vld [vmem:[%s2702 + $0x30] sm:$0xff]
        %v2710 = vld [vmem:[%s2702 + $0x38] sm:$0xff]
        %v2711 = vld [vmem:[%s2702 + $0x40] sm:$0xff]
        %v2712 = vld [vmem:[%s2702 + $0x48] sm:$0xff]
        %v2713 = vld [vmem:[%s2702 + $0x50] sm:$0xff]
        %v2714 = vld [vmem:[%s2702 + $0x58] sm:$0xff]
        %v2715 = vld [vmem:[%s2702 + $0x60] sm:$0xff]
        %v2716 = vld [vmem:[%s2702 + $0x68] sm:$0xff]
        %v2717 = vld [vmem:[%s2702 + $0x70] sm:$0xff]
        %v2718 = vld [vmem:[%s2702 + $0x78] sm:$0xff]
        %v2735 = vunpack.c.l.b16 %v2703
        %v2736 = vunpack.c.h.b16 %v2703
        %v2737 = vunpack.c.l.b16 %v2704
        %v2738 = vunpack.c.h.b16 %v2704
        %v2739 = vunpack.c.l.b16 %v2705
        %v2740 = vunpack.c.h.b16 %v2705
        %v2741 = vunpack.c.l.b16 %v2706
        %v2742 = vunpack.c.h.b16 %v2706
        %v2743 = vunpack.c.l.b16 %v2707
        %v2744 = vunpack.c.h.b16 %v2707
        %v2745 = vunpack.c.l.b16 %v2708
        %v2746 = vunpack.c.h.b16 %v2708
        %v2747 = vunpack.c.l.b16 %v2709
        %v2748 = vunpack.c.h.b16 %v2709
        %v2749 = vunpack.c.l.b16 %v2710
        %v2750 = vunpack.c.h.b16 %v2710
        %v2751 = vunpack.c.l.b16 %v2711
        %v2752 = vunpack.c.h.b16 %v2711
        %v2753 = vunpack.c.l.b16 %v2712
        %v2754 = vunpack.c.h.b16 %v2712
        %v2755 = vunpack.c.l.b16 %v2713
        %v2756 = vunpack.c.h.b16 %v2713
        %v2757 = vunpack.c.l.b16 %v2714
        %v2758 = vunpack.c.h.b16 %v2714
        %v2759 = vunpack.c.l.b16 %v2715
        %v2760 = vunpack.c.h.b16 %v2715
        %v2761 = vunpack.c.l.b16 %v2716
        %v2762 = vunpack.c.h.b16 %v2716
        %v2763 = vunpack.c.l.b16 %v2717
        %v2764 = vunpack.c.h.b16 %v2717
        %v2765 = vunpack.c.l.b16 %v2718
        %v2766 = vunpack.c.h.b16 %v2718
        %v2767 = vpack.c.b16 %v2737, %v2735
        %v2768 = vpack.c.b16 %v2738, %v2736
        %v2769 = vpack.c.b16 %v2741, %v2739
        %v2770 = vpack.c.b16 %v2742, %v2740
        %v2771 = vpack.c.b16 %v2745, %v2743
        %v2772 = vpack.c.b16 %v2746, %v2744
        %v2773 = vpack.c.b16 %v2749, %v2747
        %v2774 = vpack.c.b16 %v2750, %v2748
        %v2775 = vpack.c.b16 %v2753, %v2751
        %v2776 = vpack.c.b16 %v2754, %v2752
        %v2777 = vpack.c.b16 %v2757, %v2755
        %v2778 = vpack.c.b16 %v2758, %v2756
        %v2779 = vpack.c.b16 %v2761, %v2759
        %v2780 = vpack.c.b16 %v2762, %v2760
        %v2781 = vpack.c.b16 %v2765, %v2763
        %v2782 = vpack.c.b16 %v2766, %v2764
        %2799 = vmatprep.subr.bf16.mxu0 %v2782
        %2800 = vmatpush1.bf16.msra.mxu0 %v2781
        %2801 = vmatprep.subr.bf16.mxu0 %v2780
        %2802 = vmatpush1.bf16.msra.mxu0 %v2779
        %2803 = vmatprep.subr.bf16.mxu0 %v2778
        %2804 = vmatpush1.bf16.msra.mxu0 %v2777
        %2805 = vmatprep.subr.bf16.mxu0 %v2776
        %2806 = vmatpush1.bf16.msra.mxu0 %v2775
        %2807 = vmatprep.subr.bf16.mxu0 %v2774
        %2808 = vmatpush1.bf16.msra.mxu0 %v2773
        %2809 = vmatprep.subr.bf16.mxu0 %v2772
        %2810 = vmatpush1.bf16.msra.mxu0 %v2771
        %2811 = vmatprep.subr.bf16.mxu0 %v2770
        %2812 = vmatpush1.bf16.msra.mxu0 %v2769
        %2813 = vmatprep.subr.bf16.mxu0 %v2768
        %2814 = vmatpush1.bf16.msra.mxu0 %v2767
        %2815 = vmatprep.subr.bf16.mxu0 0
        %2816 = vmatpush2.bf16.msra.mxu0 0
        %2817 = vmatprep.subr.bf16.mxu0 0
        %2818 = vmatpush2.bf16.msra.mxu0 0
        %2819 = vmatprep.subr.bf16.mxu0 0
        %2820 = vmatpush2.bf16.msra.mxu0 0
        %2821 = vmatprep.subr.bf16.mxu0 0
        %2822 = vmatpush2.bf16.msra.mxu0 0
        %2823 = vmatprep.subr.bf16.mxu0 0
        %2824 = vmatpush2.bf16.msra.mxu0 0
        %2825 = vmatprep.subr.bf16.mxu0 0
        %2826 = vmatpush2.bf16.msra.mxu0 0
        %2827 = vmatprep.subr.bf16.mxu0 0
        %2828 = vmatpush2.bf16.msra.mxu0 0
        %2829 = vmatprep.subr.bf16.mxu0 0
        %2830 = vmatpush2.bf16.msra.mxu0 0
        %2831 = vmatprep.mubr.bf16.mxu0 0
        %2832 = vmatmul.mubr.bf16.gmra.mxu0 %v2700
        %v2833 = vpop.f32.mrf.mxu0
        %v2834 = vadd.f32 0.0, %v2833
        %v2835 = vpop.f32.mrf.mxu0
        %v2836 = vadd.f32 0.0, %v2835
        %v2837 = vpop.f32.mrf.mxu0
        %v2838 = vadd.f32 0.0, %v2837
        %v2839 = vpop.f32.mrf.mxu0
        %v2840 = vadd.f32 0.0, %v2839
        %2841 = vmatprep.mubr.bf16.mxu0 0
        %2842 = vmatmul.mubr.bf16.gmra.mxu0 %v2701
        %v2843 = vpop.f32.mrf.mxu0
        %v2844 = vadd.f32 0.0, %v2843
        %v2845 = vpop.f32.mrf.mxu0
        %v2846 = vadd.f32 0.0, %v2845
        %v2847 = vpop.f32.mrf.mxu0
        %v2848 = vadd.f32 0.0, %v2847
        %v2849 = vpop.f32.mrf.mxu0
        %v2850 = vadd.f32 0.0, %v2849
        %2851 = vdwg.mxu0
        %v2852 = vadd.f32 %v2655, %v2834
        %v2853 = vadd.f32 %v2656, %v2836
        %v2854 = vadd.f32 %v2657, %v2838
        %v2855 = vadd.f32 %v2658, %v2840
        %v2856 = vadd.f32 %v2659, %v2844
        %v2857 = vadd.f32 %v2660, %v2846
        %v2858 = vadd.f32 %v2661, %v2848
        %v2859 = vadd.f32 %v2662, %v2850
        %v2860 = vrot.slane %v1698, 2
        %v2861 = vrot.slane %v1699, 2
        %v2862 = vrot.slane %v1700, 2
        %v2863 = vrot.slane %v1701, 2
        %vm2864 = vcmp.lt.s32.totalorder %v1708, 6
        %v2865 = vsel %vm2864, %v2862, %v2863
        %v2866 = vsel %vm2864, %v2861, %v2862
        %v2867 = vsel %vm2864, %v2860, %v2861
        %v2868 = vsel %vm2864, %v2863, %v2860
        %vm2869 = vcmp.lt.f32.partialorder %v734, 14.0
        %vm2870 = vcmp.lt.f32.partialorder %v735, 14.0
        %vm2871 = vcmp.lt.f32.partialorder %v736, 14.0
        %vm2872 = vcmp.lt.f32.partialorder %v737, 14.0
        %v2873 = vsel %vm2869, 1, 0
        %v2874 = vsel %vm2870, 1, 0
        %v2875 = vsel %vm2871, 1, 0
        %v2876 = vsel %vm2872, 1, 0
        %2877 = vset.pattern.permute.xlu0 0
        %2878 = vperm.xlu0 %2877, %v2873
        %v2879 = vpop.permute.xlu0 %2878
        %2880 = vset.pattern.permute.xlu0 0
        %2881 = vperm.xlu0 %2880, %v2874
        %v2882 = vpop.permute.xlu0 %2881
        %2883 = vset.pattern.permute.xlu0 0
        %2884 = vperm.xlu0 %2883, %v2875
        %v2885 = vpop.permute.xlu0 %2884
        %2886 = vset.pattern.permute.xlu0 0
        %2887 = vperm.xlu0 %2886, %v2876
        %v2888 = vpop.permute.xlu0 %2887
        %vm2889 = vcmp.eq.s32.totalorder %v2879, 1
        %vm2890 = vcmp.eq.s32.totalorder %v2882, 1
        %vm2891 = vcmp.eq.s32.totalorder %v2885, 1
        %vm2892 = vcmp.eq.s32.totalorder %v2888, 1
        %v2893 = vsel %vm2889, %v2867, 0.0
        %v2894 = vsel %vm2890, %v2866, 0.0
        %v2895 = vsel %vm2891, %v2865, 0.0
        %v2896 = vsel %vm2892, %v2868, 0.0
        %v2897 = vpack.c.bf16 %v2894, %v2893
        %v2898 = vpack.c.bf16 %v2896, %v2895
        %s2899 = scalar_lea.vmem %s694, 768
        %v2900 = vld [vmem:[%s2899] sm:$0xff]
        %v2901 = vld [vmem:[%s2899 + $0x8] sm:$0xff]
        %v2902 = vld [vmem:[%s2899 + $0x10] sm:$0xff]
        %v2903 = vld [vmem:[%s2899 + $0x18] sm:$0xff]
        %v2904 = vld [vmem:[%s2899 + $0x20] sm:$0xff]
        %v2905 = vld [vmem:[%s2899 + $0x28] sm:$0xff]
        %v2906 = vld [vmem:[%s2899 + $0x30] sm:$0xff]
        %v2907 = vld [vmem:[%s2899 + $0x38] sm:$0xff]
        %v2908 = vld [vmem:[%s2899 + $0x40] sm:$0xff]
        %v2909 = vld [vmem:[%s2899 + $0x48] sm:$0xff]
        %v2910 = vld [vmem:[%s2899 + $0x50] sm:$0xff]
        %v2911 = vld [vmem:[%s2899 + $0x58] sm:$0xff]
        %v2912 = vld [vmem:[%s2899 + $0x60] sm:$0xff]
        %v2913 = vld [vmem:[%s2899 + $0x68] sm:$0xff]
        %v2914 = vld [vmem:[%s2899 + $0x70] sm:$0xff]
        %v2915 = vld [vmem:[%s2899 + $0x78] sm:$0xff]
        %v2932 = vunpack.c.l.b16 %v2900
        %v2933 = vunpack.c.h.b16 %v2900
        %v2934 = vunpack.c.l.b16 %v2901
        %v2935 = vunpack.c.h.b16 %v2901
        %v2936 = vunpack.c.l.b16 %v2902
        %v2937 = vunpack.c.h.b16 %v2902
        %v2938 = vunpack.c.l.b16 %v2903
        %v2939 = vunpack.c.h.b16 %v2903
        %v2940 = vunpack.c.l.b16 %v2904
        %v2941 = vunpack.c.h.b16 %v2904
        %v2942 = vunpack.c.l.b16 %v2905
        %v2943 = vunpack.c.h.b16 %v2905
        %v2944 = vunpack.c.l.b16 %v2906
        %v2945 = vunpack.c.h.b16 %v2906
        %v2946 = vunpack.c.l.b16 %v2907
        %v2947 = vunpack.c.h.b16 %v2907
        %v2948 = vunpack.c.l.b16 %v2908
        %v2949 = vunpack.c.h.b16 %v2908
        %v2950 = vunpack.c.l.b16 %v2909
        %v2951 = vunpack.c.h.b16 %v2909
        %v2952 = vunpack.c.l.b16 %v2910
        %v2953 = vunpack.c.h.b16 %v2910
        %v2954 = vunpack.c.l.b16 %v2911
        %v2955 = vunpack.c.h.b16 %v2911
        %v2956 = vunpack.c.l.b16 %v2912
        %v2957 = vunpack.c.h.b16 %v2912
        %v2958 = vunpack.c.l.b16 %v2913
        %v2959 = vunpack.c.h.b16 %v2913
        %v2960 = vunpack.c.l.b16 %v2914
        %v2961 = vunpack.c.h.b16 %v2914
        %v2962 = vunpack.c.l.b16 %v2915
        %v2963 = vunpack.c.h.b16 %v2915
        %v2964 = vpack.c.b16 %v2934, %v2932
        %v2965 = vpack.c.b16 %v2935, %v2933
        %v2966 = vpack.c.b16 %v2938, %v2936
        %v2967 = vpack.c.b16 %v2939, %v2937
        %v2968 = vpack.c.b16 %v2942, %v2940
        %v2969 = vpack.c.b16 %v2943, %v2941
        %v2970 = vpack.c.b16 %v2946, %v2944
        %v2971 = vpack.c.b16 %v2947, %v2945
        %v2972 = vpack.c.b16 %v2950, %v2948
        %v2973 = vpack.c.b16 %v2951, %v2949
        %v2974 = vpack.c.b16 %v2954, %v2952
        %v2975 = vpack.c.b16 %v2955, %v2953
        %v2976 = vpack.c.b16 %v2958, %v2956
        %v2977 = vpack.c.b16 %v2959, %v2957
        %v2978 = vpack.c.b16 %v2962, %v2960
        %v2979 = vpack.c.b16 %v2963, %v2961
        %2996 = vmatprep.subr.bf16.mxu0 %v2979
        %2997 = vmatpush1.bf16.msra.mxu0 %v2978
        %2998 = vmatprep.subr.bf16.mxu0 %v2977
        %2999 = vmatpush1.bf16.msra.mxu0 %v2976
        %3000 = vmatprep.subr.bf16.mxu0 %v2975
        %3001 = vmatpush1.bf16.msra.mxu0 %v2974
        %3002 = vmatprep.subr.bf16.mxu0 %v2973
        %3003 = vmatpush1.bf16.msra.mxu0 %v2972
        %3004 = vmatprep.subr.bf16.mxu0 %v2971
        %3005 = vmatpush1.bf16.msra.mxu0 %v2970
        %3006 = vmatprep.subr.bf16.mxu0 %v2969
        %3007 = vmatpush1.bf16.msra.mxu0 %v2968
        %3008 = vmatprep.subr.bf16.mxu0 %v2967
        %3009 = vmatpush1.bf16.msra.mxu0 %v2966
        %3010 = vmatprep.subr.bf16.mxu0 %v2965
        %3011 = vmatpush1.bf16.msra.mxu0 %v2964
        %3012 = vmatprep.subr.bf16.mxu0 0
        %3013 = vmatpush2.bf16.msra.mxu0 0
        %3014 = vmatprep.subr.bf16.mxu0 0
        %3015 = vmatpush2.bf16.msra.mxu0 0
        %3016 = vmatprep.subr.bf16.mxu0 0
        %3017 = vmatpush2.bf16.msra.mxu0 0
        %3018 = vmatprep.subr.bf16.mxu0 0
        %3019 = vmatpush2.bf16.msra.mxu0 0
        %3020 = vmatprep.subr.bf16.mxu0 0
        %3021 = vmatpush2.bf16.msra.mxu0 0
        %3022 = vmatprep.subr.bf16.mxu0 0
        %3023 = vmatpush2.bf16.msra.mxu0 0
        %3024 = vmatprep.subr.bf16.mxu0 0
        %3025 = vmatpush2.bf16.msra.mxu0 0
        %3026 = vmatprep.subr.bf16.mxu0 0
        %3027 = vmatpush2.bf16.msra.mxu0 0
        %3028 = vmatprep.mubr.bf16.mxu0 0
        %3029 = vmatmul.mubr.bf16.gmra.mxu0 %v2897
        %v3030 = vpop.f32.mrf.mxu0
        %v3031 = vadd.f32 0.0, %v3030
        %v3032 = vpop.f32.mrf.mxu0
        %v3033 = vadd.f32 0.0, %v3032
        %v3034 = vpop.f32.mrf.mxu0
        %v3035 = vadd.f32 0.0, %v3034
        %v3036 = vpop.f32.mrf.mxu0
        %v3037 = vadd.f32 0.0, %v3036
        %3038 = vmatprep.mubr.bf16.mxu0 0
        %3039 = vmatmul.mubr.bf16.gmra.mxu0 %v2898
        %v3040 = vpop.f32.mrf.mxu0
        %v3041 = vadd.f32 0.0, %v3040
        %v3042 = vpop.f32.mrf.mxu0
        %v3043 = vadd.f32 0.0, %v3042
        %v3044 = vpop.f32.mrf.mxu0
        %v3045 = vadd.f32 0.0, %v3044
        %v3046 = vpop.f32.mrf.mxu0
        %v3047 = vadd.f32 0.0, %v3046
        %3048 = vdwg.mxu0
        %v3049 = vadd.f32 %v2852, %v3031
        %v3050 = vadd.f32 %v2853, %v3033
        %v3051 = vadd.f32 %v2854, %v3035
        %v3052 = vadd.f32 %v2855, %v3037
        %v3053 = vadd.f32 %v2856, %v3041
        %v3054 = vadd.f32 %v2857, %v3043
        %v3055 = vadd.f32 %v2858, %v3045
        %v3056 = vadd.f32 %v2859, %v3047
        %v3057 = vrot.slane %v1698, 3
        %v3058 = vrot.slane %v1699, 3
        %v3059 = vrot.slane %v1700, 3
        %v3060 = vrot.slane %v1701, 3
        %vm3061 = vcmp.lt.s32.totalorder %v1708, 5
        %v3062 = vsel %vm3061, %v3059, %v3060
        %v3063 = vsel %vm3061, %v3058, %v3059
        %v3064 = vsel %vm3061, %v3057, %v3058
        %v3065 = vsel %vm3061, %v3060, %v3057
        %vm3066 = vcmp.lt.f32.partialorder %v734, 13.0
        %vm3067 = vcmp.lt.f32.partialorder %v735, 13.0
        %vm3068 = vcmp.lt.f32.partialorder %v736, 13.0
        %vm3069 = vcmp.lt.f32.partialorder %v737, 13.0
        %v3070 = vsel %vm3066, 1, 0
        %v3071 = vsel %vm3067, 1, 0
        %v3072 = vsel %vm3068, 1, 0
        %v3073 = vsel %vm3069, 1, 0
        %3074 = vset.pattern.permute.xlu0 0
        %3075 = vperm.xlu0 %3074, %v3070
        %v3076 = vpop.permute.xlu0 %3075
        %3077 = vset.pattern.permute.xlu0 0
        %3078 = vperm.xlu0 %3077, %v3071
        %v3079 = vpop.permute.xlu0 %3078
        %3080 = vset.pattern.permute.xlu0 0
        %3081 = vperm.xlu0 %3080, %v3072
        %v3082 = vpop.permute.xlu0 %3081
        %3083 = vset.pattern.permute.xlu0 0
        %3084 = vperm.xlu0 %3083, %v3073
        %v3085 = vpop.permute.xlu0 %3084
        %vm3086 = vcmp.eq.s32.totalorder %v3076, 1
        %vm3087 = vcmp.eq.s32.totalorder %v3079, 1
        %vm3088 = vcmp.eq.s32.totalorder %v3082, 1
        %vm3089 = vcmp.eq.s32.totalorder %v3085, 1
        %v3090 = vsel %vm3086, %v3064, 0.0
        %v3091 = vsel %vm3087, %v3063, 0.0
        %v3092 = vsel %vm3088, %v3062, 0.0
        %v3093 = vsel %vm3089, %v3065, 0.0
        %v3094 = vpack.c.bf16 %v3091, %v3090
        %v3095 = vpack.c.bf16 %v3093, %v3092
        %s3096 = scalar_lea.vmem %s694, 896
        %v3097 = vld [vmem:[%s3096] sm:$0xff]
        %v3098 = vld [vmem:[%s3096 + $0x8] sm:$0xff]
        %v3099 = vld [vmem:[%s3096 + $0x10] sm:$0xff]
        %v3100 = vld [vmem:[%s3096 + $0x18] sm:$0xff]
        %v3101 = vld [vmem:[%s3096 + $0x20] sm:$0xff]
        %v3102 = vld [vmem:[%s3096 + $0x28] sm:$0xff]
        %v3103 = vld [vmem:[%s3096 + $0x30] sm:$0xff]
        %v3104 = vld [vmem:[%s3096 + $0x38] sm:$0xff]
        %v3105 = vld [vmem:[%s3096 + $0x40] sm:$0xff]
        %v3106 = vld [vmem:[%s3096 + $0x48] sm:$0xff]
        %v3107 = vld [vmem:[%s3096 + $0x50] sm:$0xff]
        %v3108 = vld [vmem:[%s3096 + $0x58] sm:$0xff]
        %v3109 = vld [vmem:[%s3096 + $0x60] sm:$0xff]
        %v3110 = vld [vmem:[%s3096 + $0x68] sm:$0xff]
        %v3111 = vld [vmem:[%s3096 + $0x70] sm:$0xff]
        %v3112 = vld [vmem:[%s3096 + $0x78] sm:$0xff]
        %v3129 = vunpack.c.l.b16 %v3097
        %v3130 = vunpack.c.h.b16 %v3097
        %v3131 = vunpack.c.l.b16 %v3098
        %v3132 = vunpack.c.h.b16 %v3098
        %v3133 = vunpack.c.l.b16 %v3099
        %v3134 = vunpack.c.h.b16 %v3099
        %v3135 = vunpack.c.l.b16 %v3100
        %v3136 = vunpack.c.h.b16 %v3100
        %v3137 = vunpack.c.l.b16 %v3101
        %v3138 = vunpack.c.h.b16 %v3101
        %v3139 = vunpack.c.l.b16 %v3102
        %v3140 = vunpack.c.h.b16 %v3102
        %v3141 = vunpack.c.l.b16 %v3103
        %v3142 = vunpack.c.h.b16 %v3103
        %v3143 = vunpack.c.l.b16 %v3104
        %v3144 = vunpack.c.h.b16 %v3104
        %v3145 = vunpack.c.l.b16 %v3105
        %v3146 = vunpack.c.h.b16 %v3105
        %v3147 = vunpack.c.l.b16 %v3106
        %v3148 = vunpack.c.h.b16 %v3106
        %v3149 = vunpack.c.l.b16 %v3107
        %v3150 = vunpack.c.h.b16 %v3107
        %v3151 = vunpack.c.l.b16 %v3108
        %v3152 = vunpack.c.h.b16 %v3108
        %v3153 = vunpack.c.l.b16 %v3109
        %v3154 = vunpack.c.h.b16 %v3109
        %v3155 = vunpack.c.l.b16 %v3110
        %v3156 = vunpack.c.h.b16 %v3110
        %v3157 = vunpack.c.l.b16 %v3111
        %v3158 = vunpack.c.h.b16 %v3111
        %v3159 = vunpack.c.l.b16 %v3112
        %v3160 = vunpack.c.h.b16 %v3112
        %v3161 = vpack.c.b16 %v3131, %v3129
        %v3162 = vpack.c.b16 %v3132, %v3130
        %v3163 = vpack.c.b16 %v3135, %v3133
        %v3164 = vpack.c.b16 %v3136, %v3134
        %v3165 = vpack.c.b16 %v3139, %v3137
        %v3166 = vpack.c.b16 %v3140, %v3138
        %v3167 = vpack.c.b16 %v3143, %v3141
        %v3168 = vpack.c.b16 %v3144, %v3142
        %v3169 = vpack.c.b16 %v3147, %v3145
        %v3170 = vpack.c.b16 %v3148, %v3146
        %v3171 = vpack.c.b16 %v3151, %v3149
        %v3172 = vpack.c.b16 %v3152, %v3150
        %v3173 = vpack.c.b16 %v3155, %v3153
        %v3174 = vpack.c.b16 %v3156, %v3154
        %v3175 = vpack.c.b16 %v3159, %v3157
        %v3176 = vpack.c.b16 %v3160, %v3158
        %3193 = vmatprep.subr.bf16.mxu0 %v3176
        %3194 = vmatpush1.bf16.msra.mxu0 %v3175
        %3195 = vmatprep.subr.bf16.mxu0 %v3174
        %3196 = vmatpush1.bf16.msra.mxu0 %v3173
        %3197 = vmatprep.subr.bf16.mxu0 %v3172
        %3198 = vmatpush1.bf16.msra.mxu0 %v3171
        %3199 = vmatprep.subr.bf16.mxu0 %v3170
        %3200 = vmatpush1.bf16.msra.mxu0 %v3169
        %3201 = vmatprep.subr.bf16.mxu0 %v3168
        %3202 = vmatpush1.bf16.msra.mxu0 %v3167
        %3203 = vmatprep.subr.bf16.mxu0 %v3166
        %3204 = vmatpush1.bf16.msra.mxu0 %v3165
        %3205 = vmatprep.subr.bf16.mxu0 %v3164
        %3206 = vmatpush1.bf16.msra.mxu0 %v3163
        %3207 = vmatprep.subr.bf16.mxu0 %v3162
        %3208 = vmatpush1.bf16.msra.mxu0 %v3161
        %3209 = vmatprep.subr.bf16.mxu0 0
        %3210 = vmatpush2.bf16.msra.mxu0 0
        %3211 = vmatprep.subr.bf16.mxu0 0
        %3212 = vmatpush2.bf16.msra.mxu0 0
        %3213 = vmatprep.subr.bf16.mxu0 0
        %3214 = vmatpush2.bf16.msra.mxu0 0
        %3215 = vmatprep.subr.bf16.mxu0 0
        %3216 = vmatpush2.bf16.msra.mxu0 0
        %3217 = vmatprep.subr.bf16.mxu0 0
        %3218 = vmatpush2.bf16.msra.mxu0 0
        %3219 = vmatprep.subr.bf16.mxu0 0
        %3220 = vmatpush2.bf16.msra.mxu0 0
        %3221 = vmatprep.subr.bf16.mxu0 0
        %3222 = vmatpush2.bf16.msra.mxu0 0
        %3223 = vmatprep.subr.bf16.mxu0 0
        %3224 = vmatpush2.bf16.msra.mxu0 0
        %3225 = vmatprep.mubr.bf16.mxu0 0
        %3226 = vmatmul.mubr.bf16.gmra.mxu0 %v3094
        %v3227 = vpop.f32.mrf.mxu0
        %v3228 = vadd.f32 0.0, %v3227
        %v3229 = vpop.f32.mrf.mxu0
        %v3230 = vadd.f32 0.0, %v3229
        %v3231 = vpop.f32.mrf.mxu0
        %v3232 = vadd.f32 0.0, %v3231
        %v3233 = vpop.f32.mrf.mxu0
        %v3234 = vadd.f32 0.0, %v3233
        %3235 = vmatprep.mubr.bf16.mxu0 0
        %3236 = vmatmul.mubr.bf16.gmra.mxu0 %v3095
        %v3237 = vpop.f32.mrf.mxu0
        %v3238 = vadd.f32 0.0, %v3237
        %v3239 = vpop.f32.mrf.mxu0
        %v3240 = vadd.f32 0.0, %v3239
        %v3241 = vpop.f32.mrf.mxu0
        %v3242 = vadd.f32 0.0, %v3241
        %v3243 = vpop.f32.mrf.mxu0
        %v3244 = vadd.f32 0.0, %v3243
        %3245 = vdwg.mxu0
        %v3246 = vadd.f32 %v3049, %v3228
        %v3247 = vadd.f32 %v3050, %v3230
        %v3248 = vadd.f32 %v3051, %v3232
        %v3249 = vadd.f32 %v3052, %v3234
        %v3250 = vadd.f32 %v3053, %v3238
        %v3251 = vadd.f32 %v3054, %v3240
        %v3252 = vadd.f32 %v3055, %v3242
        %v3253 = vadd.f32 %v3056, %v3244
        %vm3254 = vcmp.lt.f32.partialorder %v734, 12.0
        %vm3255 = vcmp.lt.f32.partialorder %v735, 12.0
        %vm3256 = vcmp.lt.f32.partialorder %v736, 12.0
        %vm3257 = vcmp.lt.f32.partialorder %v737, 12.0
        %v3258 = vsel %vm3254, 1, 0
        %v3259 = vsel %vm3255, 1, 0
        %v3260 = vsel %vm3256, 1, 0
        %v3261 = vsel %vm3257, 1, 0
        %3262 = vset.pattern.permute.xlu0 0
        %3263 = vperm.xlu0 %3262, %v3258
        %v3264 = vpop.permute.xlu0 %3263
        %3265 = vset.pattern.permute.xlu0 0
        %3266 = vperm.xlu0 %3265, %v3259
        %v3267 = vpop.permute.xlu0 %3266
        %3268 = vset.pattern.permute.xlu0 0
        %3269 = vperm.xlu0 %3268, %v3260
        %v3270 = vpop.permute.xlu0 %3269
        %3271 = vset.pattern.permute.xlu0 0
        %3272 = vperm.xlu0 %3271, %v3261
        %v3273 = vpop.permute.xlu0 %3272
        %vm3274 = vcmp.eq.s32.totalorder %v3264, 1
        %vm3275 = vcmp.eq.s32.totalorder %v3267, 1
        %vm3276 = vcmp.eq.s32.totalorder %v3270, 1
        %vm3277 = vcmp.eq.s32.totalorder %v3273, 1
        %v3278 = vsel %vm3274, %v1712, 0.0
        %v3279 = vsel %vm3275, %v1711, 0.0
        %v3280 = vsel %vm3276, %v1710, 0.0
        %v3281 = vsel %vm3277, %v1713, 0.0
        %v3282 = vpack.c.bf16 %v3279, %v3278
        %v3283 = vpack.c.bf16 %v3281, %v3280
        %s3284 = scalar_lea.vmem %s694, 1024
        %v3285 = vld [vmem:[%s3284] sm:$0xff]
        %v3286 = vld [vmem:[%s3284 + $0x8] sm:$0xff]
        %v3287 = vld [vmem:[%s3284 + $0x10] sm:$0xff]
        %v3288 = vld [vmem:[%s3284 + $0x18] sm:$0xff]
        %v3289 = vld [vmem:[%s3284 + $0x20] sm:$0xff]
        %v3290 = vld [vmem:[%s3284 + $0x28] sm:$0xff]
        %v3291 = vld [vmem:[%s3284 + $0x30] sm:$0xff]
        %v3292 = vld [vmem:[%s3284 + $0x38] sm:$0xff]
        %v3293 = vld [vmem:[%s3284 + $0x40] sm:$0xff]
        %v3294 = vld [vmem:[%s3284 + $0x48] sm:$0xff]
        %v3295 = vld [vmem:[%s3284 + $0x50] sm:$0xff]
        %v3296 = vld [vmem:[%s3284 + $0x58] sm:$0xff]
        %v3297 = vld [vmem:[%s3284 + $0x60] sm:$0xff]
        %v3298 = vld [vmem:[%s3284 + $0x68] sm:$0xff]
        %v3299 = vld [vmem:[%s3284 + $0x70] sm:$0xff]
        %v3300 = vld [vmem:[%s3284 + $0x78] sm:$0xff]
        %v3317 = vunpack.c.l.b16 %v3285
        %v3318 = vunpack.c.h.b16 %v3285
        %v3319 = vunpack.c.l.b16 %v3286
        %v3320 = vunpack.c.h.b16 %v3286
        %v3321 = vunpack.c.l.b16 %v3287
        %v3322 = vunpack.c.h.b16 %v3287
        %v3323 = vunpack.c.l.b16 %v3288
        %v3324 = vunpack.c.h.b16 %v3288
        %v3325 = vunpack.c.l.b16 %v3289
        %v3326 = vunpack.c.h.b16 %v3289
        %v3327 = vunpack.c.l.b16 %v3290
        %v3328 = vunpack.c.h.b16 %v3290
        %v3329 = vunpack.c.l.b16 %v3291
        %v3330 = vunpack.c.h.b16 %v3291
        %v3331 = vunpack.c.l.b16 %v3292
        %v3332 = vunpack.c.h.b16 %v3292
        %v3333 = vunpack.c.l.b16 %v3293
        %v3334 = vunpack.c.h.b16 %v3293
        %v3335 = vunpack.c.l.b16 %v3294
        %v3336 = vunpack.c.h.b16 %v3294
        %v3337 = vunpack.c.l.b16 %v3295
        %v3338 = vunpack.c.h.b16 %v3295
        %v3339 = vunpack.c.l.b16 %v3296
        %v3340 = vunpack.c.h.b16 %v3296
        %v3341 = vunpack.c.l.b16 %v3297
        %v3342 = vunpack.c.h.b16 %v3297
        %v3343 = vunpack.c.l.b16 %v3298
        %v3344 = vunpack.c.h.b16 %v3298
        %v3345 = vunpack.c.l.b16 %v3299
        %v3346 = vunpack.c.h.b16 %v3299
        %v3347 = vunpack.c.l.b16 %v3300
        %v3348 = vunpack.c.h.b16 %v3300
        %v3349 = vpack.c.b16 %v3319, %v3317
        %v3350 = vpack.c.b16 %v3320, %v3318
        %v3351 = vpack.c.b16 %v3323, %v3321
        %v3352 = vpack.c.b16 %v3324, %v3322
        %v3353 = vpack.c.b16 %v3327, %v3325
        %v3354 = vpack.c.b16 %v3328, %v3326
        %v3355 = vpack.c.b16 %v3331, %v3329
        %v3356 = vpack.c.b16 %v3332, %v3330
        %v3357 = vpack.c.b16 %v3335, %v3333
        %v3358 = vpack.c.b16 %v3336, %v3334
        %v3359 = vpack.c.b16 %v3339, %v3337
        %v3360 = vpack.c.b16 %v3340, %v3338
        %v3361 = vpack.c.b16 %v3343, %v3341
        %v3362 = vpack.c.b16 %v3344, %v3342
        %v3363 = vpack.c.b16 %v3347, %v3345
        %v3364 = vpack.c.b16 %v3348, %v3346
        %3381 = vmatprep.subr.bf16.mxu0 %v3364
        %3382 = vmatpush1.bf16.msra.mxu0 %v3363
        %3383 = vmatprep.subr.bf16.mxu0 %v3362
        %3384 = vmatpush1.bf16.msra.mxu0 %v3361
        %3385 = vmatprep.subr.bf16.mxu0 %v3360
        %3386 = vmatpush1.bf16.msra.mxu0 %v3359
        %3387 = vmatprep.subr.bf16.mxu0 %v3358
        %3388 = vmatpush1.bf16.msra.mxu0 %v3357
        %3389 = vmatprep.subr.bf16.mxu0 %v3356
        %3390 = vmatpush1.bf16.msra.mxu0 %v3355
        %3391 = vmatprep.subr.bf16.mxu0 %v3354
        %3392 = vmatpush1.bf16.msra.mxu0 %v3353
        %3393 = vmatprep.subr.bf16.mxu0 %v3352
        %3394 = vmatpush1.bf16.msra.mxu0 %v3351
        %3395 = vmatprep.subr.bf16.mxu0 %v3350
        %3396 = vmatpush1.bf16.msra.mxu0 %v3349
        %3397 = vmatprep.subr.bf16.mxu0 0
        %3398 = vmatpush2.bf16.msra.mxu0 0
        %3399 = vmatprep.subr.bf16.mxu0 0
        %3400 = vmatpush2.bf16.msra.mxu0 0
        %3401 = vmatprep.subr.bf16.mxu0 0
        %3402 = vmatpush2.bf16.msra.mxu0 0
        %3403 = vmatprep.subr.bf16.mxu0 0
        %3404 = vmatpush2.bf16.msra.mxu0 0
        %3405 = vmatprep.subr.bf16.mxu0 0
        %3406 = vmatpush2.bf16.msra.mxu0 0
        %3407 = vmatprep.subr.bf16.mxu0 0
        %3408 = vmatpush2.bf16.msra.mxu0 0
        %3409 = vmatprep.subr.bf16.mxu0 0
        %3410 = vmatpush2.bf16.msra.mxu0 0
        %3411 = vmatprep.subr.bf16.mxu0 0
        %3412 = vmatpush2.bf16.msra.mxu0 0
        %3413 = vmatprep.mubr.bf16.mxu0 0
        %3414 = vmatmul.mubr.bf16.gmra.mxu0 %v3282
        %v3415 = vpop.f32.mrf.mxu0
        %v3416 = vadd.f32 0.0, %v3415
        %v3417 = vpop.f32.mrf.mxu0
        %v3418 = vadd.f32 0.0, %v3417
        %v3419 = vpop.f32.mrf.mxu0
        %v3420 = vadd.f32 0.0, %v3419
        %v3421 = vpop.f32.mrf.mxu0
        %v3422 = vadd.f32 0.0, %v3421
        %3423 = vmatprep.mubr.bf16.mxu0 0
        %3424 = vmatmul.mubr.bf16.gmra.mxu0 %v3283
        %v3425 = vpop.f32.mrf.mxu0
        %v3426 = vadd.f32 0.0, %v3425
        %v3427 = vpop.f32.mrf.mxu0
        %v3428 = vadd.f32 0.0, %v3427
        %v3429 = vpop.f32.mrf.mxu0
        %v3430 = vadd.f32 0.0, %v3429
        %v3431 = vpop.f32.mrf.mxu0
        %v3432 = vadd.f32 0.0, %v3431
        %3433 = vdwg.mxu0
        %v3434 = vadd.f32 %v3246, %v3416
        %v3435 = vadd.f32 %v3247, %v3418
        %v3436 = vadd.f32 %v3248, %v3420
        %v3437 = vadd.f32 %v3249, %v3422
        %v3438 = vadd.f32 %v3250, %v3426
        %v3439 = vadd.f32 %v3251, %v3428
        %v3440 = vadd.f32 %v3252, %v3430
        %v3441 = vadd.f32 %v3253, %v3432
        %v3442 = vmax.f32 %v3434, 0.0
        %v3443 = vmax.f32 %v3435, 0.0
        %v3444 = vmax.f32 %v3436, 0.0
        %v3445 = vmax.f32 %v3437, 0.0
        %v3446 = vmax.f32 %v3438, 0.0
        %v3447 = vmax.f32 %v3439, 0.0
        %v3448 = vmax.f32 %v3440, 0.0
        %v3449 = vmax.f32 %v3441, 0.0
        %v3450 = vpack.c.bf16 %v3444, %v3442
        %v3451 = vpack.c.bf16 %v3445, %v3443
        %v3452 = vpack.c.bf16 %v3448, %v3446
        %v3453 = vpack.c.bf16 %v3449, %v3447
        %v3454 = vld [vmem:[%s703] sm:$0xf]
        %v3455 = vld [vmem:[%s703 + $0x4] sm:$0xf]
        %v3456 = vld [vmem:[%s703 + $0x8] sm:$0xf]
        %v3457 = vld [vmem:[%s703 + $0xc] sm:$0xf]
        %v3458 = vld [vmem:[%s703 + $0x10] sm:$0xf]
        %v3459 = vld [vmem:[%s703 + $0x14] sm:$0xf]
        %v3460 = vld [vmem:[%s703 + $0x18] sm:$0xf]
        %v3461 = vld [vmem:[%s703 + $0x1c] sm:$0xf]
        %v3462 = vld [vmem:[%s703 + $0x20] sm:$0xf]
        %v3463 = vld [vmem:[%s703 + $0x24] sm:$0xf]
        %v3464 = vld [vmem:[%s703 + $0x28] sm:$0xf]
        %v3465 = vld [vmem:[%s703 + $0x2c] sm:$0xf]
        %v3466 = vld [vmem:[%s703 + $0x30] sm:$0xf]
        %v3467 = vld [vmem:[%s703 + $0x34] sm:$0xf]
        %v3468 = vld [vmem:[%s703 + $0x38] sm:$0xf]
        %v3469 = vld [vmem:[%s703 + $0x3c] sm:$0xf]
        %v3470 = vld [vmem:[%s703 + $0x40] sm:$0xf]
        %v3471 = vld [vmem:[%s703 + $0x44] sm:$0xf]
        %v3472 = vld [vmem:[%s703 + $0x48] sm:$0xf]
        %v3473 = vld [vmem:[%s703 + $0x4c] sm:$0xf]
        %v3474 = vld [vmem:[%s703 + $0x50] sm:$0xf]
        %v3475 = vld [vmem:[%s703 + $0x54] sm:$0xf]
        %v3476 = vld [vmem:[%s703 + $0x58] sm:$0xf]
        %v3477 = vld [vmem:[%s703 + $0x5c] sm:$0xf]
        %v3478 = vld [vmem:[%s703 + $0x60] sm:$0xf]
        %v3479 = vld [vmem:[%s703 + $0x64] sm:$0xf]
        %v3480 = vld [vmem:[%s703 + $0x68] sm:$0xf]
        %v3481 = vld [vmem:[%s703 + $0x6c] sm:$0xf]
        %v3482 = vld [vmem:[%s703 + $0x70] sm:$0xf]
        %v3483 = vld [vmem:[%s703 + $0x74] sm:$0xf]
        %v3484 = vld [vmem:[%s703 + $0x78] sm:$0xf]
        %v3485 = vld [vmem:[%s703 + $0x7c] sm:$0xf]
        %v3486 = vld [vmem:[%s706] sm:$0x1]
        %v3488 = vlaneseq
        %v3489 = vshrl.u32 %v3488, 7
        %v3490 = vsub.s32 0, %v3489
        %v3491 = vrot.slane %v3486, %v3490
        %v3525 = vunpack.c.l.b16 %v3454
        %v3526 = vunpack.c.l.b16 %v3455
        %v3527 = vunpack.c.l.b16 %v3456
        %v3528 = vunpack.c.l.b16 %v3457
        %v3529 = vunpack.c.l.b16 %v3458
        %v3530 = vunpack.c.l.b16 %v3459
        %v3531 = vunpack.c.l.b16 %v3460
        %v3532 = vunpack.c.l.b16 %v3461
        %v3533 = vunpack.c.l.b16 %v3462
        %v3534 = vunpack.c.l.b16 %v3463
        %v3535 = vunpack.c.l.b16 %v3464
        %v3536 = vunpack.c.l.b16 %v3465
        %v3537 = vunpack.c.l.b16 %v3466
        %v3538 = vunpack.c.l.b16 %v3467
        %v3539 = vunpack.c.l.b16 %v3468
        %v3540 = vunpack.c.l.b16 %v3469
        %v3541 = vunpack.c.l.b16 %v3470
        %v3542 = vunpack.c.l.b16 %v3471
        %v3543 = vunpack.c.l.b16 %v3472
        %v3544 = vunpack.c.l.b16 %v3473
        %v3545 = vunpack.c.l.b16 %v3474
        %v3546 = vunpack.c.l.b16 %v3475
        %v3547 = vunpack.c.l.b16 %v3476
        %v3548 = vunpack.c.l.b16 %v3477
        %v3549 = vunpack.c.l.b16 %v3478
        %v3550 = vunpack.c.l.b16 %v3479
        %v3551 = vunpack.c.l.b16 %v3480
        %v3552 = vunpack.c.l.b16 %v3481
        %v3553 = vunpack.c.l.b16 %v3482
        %v3554 = vunpack.c.l.b16 %v3483
        %v3555 = vunpack.c.l.b16 %v3484
        %v3556 = vunpack.c.l.b16 %v3485
        %v3557 = vpack.c.b16 %v3526, %v3525
        %v3558 = vpack.c.b16 %v3528, %v3527
        %v3559 = vpack.c.b16 %v3530, %v3529
        %v3560 = vpack.c.b16 %v3532, %v3531
        %v3561 = vpack.c.b16 %v3534, %v3533
        %v3562 = vpack.c.b16 %v3536, %v3535
        %v3563 = vpack.c.b16 %v3538, %v3537
        %v3564 = vpack.c.b16 %v3540, %v3539
        %v3565 = vpack.c.b16 %v3542, %v3541
        %v3566 = vpack.c.b16 %v3544, %v3543
        %v3567 = vpack.c.b16 %v3546, %v3545
        %v3568 = vpack.c.b16 %v3548, %v3547
        %v3569 = vpack.c.b16 %v3550, %v3549
        %v3570 = vpack.c.b16 %v3552, %v3551
        %v3571 = vpack.c.b16 %v3554, %v3553
        %v3572 = vpack.c.b16 %v3556, %v3555
        %3589 = vmatprep.subr.bf16.mxu0 0
        %3590 = vmatpush1.bf16.msra.mxu0 %v3564
        %3591 = vmatprep.subr.bf16.mxu0 0
        %3592 = vmatpush1.bf16.msra.mxu0 %v3563
        %3593 = vmatprep.subr.bf16.mxu0 0
        %3594 = vmatpush1.bf16.msra.mxu0 %v3562
        %3595 = vmatprep.subr.bf16.mxu0 0
        %3596 = vmatpush1.bf16.msra.mxu0 %v3561
        %3597 = vmatprep.subr.bf16.mxu0 0
        %3598 = vmatpush1.bf16.msra.mxu0 %v3560
        %3599 = vmatprep.subr.bf16.mxu0 0
        %3600 = vmatpush1.bf16.msra.mxu0 %v3559
        %3601 = vmatprep.subr.bf16.mxu0 0
        %3602 = vmatpush1.bf16.msra.mxu0 %v3558
        %3603 = vmatprep.subr.bf16.mxu0 0
        %3604 = vmatpush1.bf16.msra.mxu0 %v3557
        %3605 = vmatprep.subr.bf16.mxu0 0
        %3606 = vmatpush2.bf16.msra.mxu0 %v3572
        %3607 = vmatprep.subr.bf16.mxu0 0
        %3608 = vmatpush2.bf16.msra.mxu0 %v3571
        %3609 = vmatprep.subr.bf16.mxu0 0
        %3610 = vmatpush2.bf16.msra.mxu0 %v3570
        %3611 = vmatprep.subr.bf16.mxu0 0
        %3612 = vmatpush2.bf16.msra.mxu0 %v3569
        %3613 = vmatprep.subr.bf16.mxu0 0
        %3614 = vmatpush2.bf16.msra.mxu0 %v3568
        %3615 = vmatprep.subr.bf16.mxu0 0
        %3616 = vmatpush2.bf16.msra.mxu0 %v3567
        %3617 = vmatprep.subr.bf16.mxu0 0
        %3618 = vmatpush2.bf16.msra.mxu0 %v3566
        %3619 = vmatprep.subr.bf16.mxu0 0
        %3620 = vmatpush2.bf16.msra.mxu0 %v3565
        %3621 = vmatprep.mubr.bf16.mxu0 %v3451
        %3622 = vmatmul.mubr.bf16.gmra.mxu0 %v3450
        %v3623 = vpop.f32.mrf.mxu0
        %v3624 = vadd.f32 %v3491, %v3623
        %v3625 = vpop.f32.mrf.mxu0
        %v3626 = vpop.f32.mrf.mxu0
        %v3627 = vadd.f32 %v3491, %v3626
        %v3628 = vpop.f32.mrf.mxu0
        %3629 = vmatprep.mubr.bf16.mxu0 %v3453
        %3630 = vmatmul.mubr.bf16.gmra.mxu0 %v3452
        %v3631 = vpop.f32.mrf.mxu0
        %v3632 = vadd.f32 %v3491, %v3631
        %v3633 = vpop.f32.mrf.mxu0
        %v3634 = vpop.f32.mrf.mxu0
        %v3635 = vadd.f32 %v3491, %v3634
        %v3636 = vpop.f32.mrf.mxu0
        %3637 = vdwg.mxu0
        %v3638 = vadd.f32 %v3624, %v1698
        %v3639 = vadd.f32 %v3627, %v1699
        %v3640 = vadd.f32 %v3632, %v1700
        %v3641 = vadd.f32 %v3635, %v1701
        %v3642 = vld [vmem:[%s709] sm:$0x1]
        %v3643 = vld [vmem:[%s712] sm:$0x1]
        %3644 = vadd.xlane.f32.xlu0 %v3638
        %v3645 = vpop.xlane.xlu0 %3644
        %3646 = vadd.xlane.f32.xlu0 %v3639
        %v3647 = vpop.xlane.xlu0 %3646
        %3648 = vadd.xlane.f32.xlu0 %v3640
        %v3649 = vpop.xlane.xlu0 %3648
        %3650 = vadd.xlane.f32.xlu0 %v3641
        %v3651 = vpop.xlane.xlu0 %3650
        %v3652 = vmul.f32 %v3645, %v1621
        %v3653 = vmul.f32 %v3647, %v1621
        %v3654 = vmul.f32 %v3649, %v1621
        %v3655 = vmul.f32 %v3651, %v1621
        %v3656 = vsub.f32 %v3638, %v3652
        %v3657 = vsub.f32 %v3639, %v3653
        %v3658 = vsub.f32 %v3640, %v3654
        %v3659 = vsub.f32 %v3641, %v3655
        %v3660 = vmul.f32 %v3656, %v3656
        %v3661 = vmul.f32 %v3657, %v3657
        %v3662 = vmul.f32 %v3658, %v3658
        %v3663 = vmul.f32 %v3659, %v3659
        %3664 = vadd.xlane.f32.xlu0 %v3660
        %v3665 = vpop.xlane.xlu0 %3664
        %3666 = vadd.xlane.f32.xlu0 %v3661
        %v3667 = vpop.xlane.xlu0 %3666
        %3668 = vadd.xlane.f32.xlu0 %v3662
        %v3669 = vpop.xlane.xlu0 %3668
        %3670 = vadd.xlane.f32.xlu0 %v3663
        %v3671 = vpop.xlane.xlu0 %3670
        %v3672 = vmul.f32 %v3665, %v1621
        %v3673 = vmul.f32 %v3667, %v1621
        %v3674 = vmul.f32 %v3669, %v1621
        %v3675 = vmul.f32 %v3671, %v1621
        %v3676 = vadd.f32 %v3672, 1e-05
        %v3677 = vadd.f32 %v3673, 1e-05
        %v3678 = vadd.f32 %v3674, 1e-05
        %v3679 = vadd.f32 %v3675, 1e-05
        %v3680 = vrsqrt.pop %v3676
        %v3681 = vrsqrt.pop %v3677
        %v3682 = vrsqrt.pop %v3678
        %v3683 = vrsqrt.pop %v3679
        %v3684 = vmul.f32 %v3656, %v3680
        %v3685 = vmul.f32 %v3657, %v3681
        %v3686 = vmul.f32 %v3658, %v3682
        %v3687 = vmul.f32 %v3659, %v3683
        %v3689 = vlaneseq
        %v3690 = vshrl.u32 %v3689, 7
        %v3691 = vsub.s32 0, %v3690
        %v3692 = vrot.slane %v3642, %v3691
        %v3694 = vmul.f32 %v3684, %v3692
        %v3695 = vmul.f32 %v3685, %v3692
        %v3696 = vmul.f32 %v3686, %v3692
        %v3697 = vmul.f32 %v3687, %v3692
        %v3699 = vlaneseq
        %v3700 = vshrl.u32 %v3699, 7
        %v3701 = vsub.s32 0, %v3700
        %v3702 = vrot.slane %v3643, %v3701
        %v3704 = vadd.f32 %v3694, %v3702
        %v3705 = vadd.f32 %v3695, %v3702
        %v3706 = vadd.f32 %v3696, %v3702
        %v3707 = vadd.f32 %v3697, %v3702
        %v3708 = vmul.f32 %v3704, %v1681
        %v3709 = vmul.f32 %v3705, %v1686
        %v3710 = vmul.f32 %v3706, %v1691
        %v3711 = vmul.f32 %v3707, %v1696
        %3712 = vst [vmem:[#allocation2] sm:$0xff] %v3708
        %3713 = vst [vmem:[#allocation2 + $0x8] sm:$0xff] %v3709
        %3714 = vst [vmem:[#allocation2 + $0x10] sm:$0xff] %v3710
        %3715 = vst [vmem:[#allocation2 + $0x18] sm:$0xff] %v3711
        %p3716 = scmp.eq.s32.totalorder %s29, 1
        // Predicated region
        $region93: #{encoder_forward.1} parent=87 // pred_check
          %p3717 = pneg %p3716
        $region94: #{encoder_forward.1} parent=87 // pred_check_branch
          %3719 = sbr.rel (%p3717) target = $region96
        $region95: #{encoder_forward.1} parent=87 // pred_region
          %v3720 = vld [vmem:[#allocation2] sm:$0xff]
          %v3721 = vld [vmem:[#allocation2 + $0x8] sm:$0xff]
          %v3722 = vld [vmem:[#allocation2 + $0x10] sm:$0xff]
          %v3723 = vld [vmem:[#allocation2 + $0x18] sm:$0xff]
          %3724 = vst [vmem:[#allocation3] sm:$0xff] %v3720
          %3725 = vst [vmem:[#allocation3 + $0x8] sm:$0xff] %v3721
          %3726 = vst [vmem:[#allocation3 + $0x10] sm:$0xff] %v3722
          %3727 = vst [vmem:[#allocation3 + $0x18] sm:$0xff] %v3723
        $region96: #{encoder_forward.1} parent=87 // pred_fallthru
          _
        // Predicated region
        $region97: #{encoder_forward.1} parent=87 // pred_check
          %p3728 = pneg %p459
        $region98: #{encoder_forward.1} parent=87 // pred_check_branch
          %3730 = sbr.rel (%p3728) target = $region100
        $region99: #{encoder_forward.1} parent=87 // pred_region
          %s3732 = ssub.s32 512, 512
          %3733 = vsyncadd [#allocation4], %s3732
          %s3734 = sshll.u32 [#allocation3], 4
          %s3735 = int_to_ptr.vmem [resolvable:$true] %s3734
          %3740 = dma.vmem_to_hbm [thread:$0]  %s3735, 512, %s17, [#allocation4], 128, 128, 8
        $region100: #{encoder_forward.1} parent=87 // pred_fallthru
          _
        // Predicated region
        $region101: #{encoder_forward.1} parent=87 // pred_check
          %p3741 = pneg %p459
        $region102: #{encoder_forward.1} parent=87 // pred_check_branch
          %3743 = sbr.rel (%p3741) target = $region104
        $region103: #{encoder_forward.1} parent=87 // pred_region
          %3744 = dma.done [#allocation4], 512
        $region104: #{encoder_forward.1} parent=87 // pred_fallthru
          _
      $region88: #{encoder_forward.1} parent=5 // pred_fallthru
        _
      %p3745 = scmp.le.s32.totalorder 2, %s24
      // Predicated region
      $region105: #{encoder_forward.1} parent=5 // pred_check
        %p3746 = pneg %p3745
      $region106: #{encoder_forward.1} parent=5 // pred_check_branch
        %3748 = sbr.rel (%p3746) target = $region108
      $region107: #{encoder_forward.1} parent=5 // pred_region
        %s3749 = ssub.s32 %s24, 2
      $region108: #{encoder_forward.1} parent=5 // pred_fallthru
        _
    $region6: #{encoder_forward.1} parent=1 // loop_footer
      %s28 = sadd.s32 1, %s24
    $region7: #{encoder_forward.1} parent=1 // loop_footer_branch
      %23 = sbr.rel target = $region3
    $region8: #{encoder_forward.1} parent=1 // loop_exit
      _
    %3750 = vsyncpa [#allocation4], 1
    %s3751 = scalar_lea.sflag [#allocation4], 1
    %3752 = vsyncpa %s3751, 1

</llo_original>
